<compile_context>
chip_gen: v5e
topology: v5e:2x2
jax: 0.10.0
libtpu: 0.0.40
codegen_flags: <defaults>
</compile_context>

<pallas_src>
import functools
import math

import jax
import jax.numpy as jnp
import numpy as np
from jax.experimental import pallas as pl
from jax.experimental.pallas import tpu as pltpu


_PAR1 = pltpu.CompilerParams(dimension_semantics=("parallel",))
_PAR2 = pltpu.CompilerParams(dimension_semantics=("parallel", "parallel"))

NEG_BIG = 1000000000.0


def _cost(flops, bytes_accessed, transcendentals=0):
    return pl.CostEstimate(flops=int(flops), transcendentals=int(transcendentals),
                           bytes_accessed=int(bytes_accessed))


# ----------------------------- in-kernel helpers -----------------------------

def _layernorm(x, alpha, beta):
    """torch-style LayerNorm: unbiased (N-1) std, eps added to std (not var)."""
    d = x.shape[-1]
    mean = jnp.mean(x, axis=-1, keepdims=True)
    diff = x - mean
    var = jnp.sum(diff * diff, axis=-1, keepdims=True) / (d - 1)
    std = jnp.sqrt(var)
    inv = pl.reciprocal(std + 1e-07)        # per-row reciprocal, then multiply
    return alpha * (diff * inv) + beta


# ----------------------------- Pallas kernels -----------------------------

def _ln_proj_kernel(x_ref, a_ref, b_ref, w_ref, wb_ref, o_ref):
    """o = layernorm(x) @ W + b     (W may be a concatenated QKV weight)."""
    xn = _layernorm(x_ref[0], a_ref[...], b_ref[...])
    o_ref[0] = jnp.dot(xn, w_ref[...], preferred_element_type=jnp.float32) + wb_ref[...]


def _cross_proj_kernel(x_ref, a_ref, b_ref, wq_ref, bq_ref,
                       e_ref, wkv_ref, bkv_ref, q_ref, kv_ref):
    """q = layernorm(x) @ Wq + bq ;  kv = e_out @ Wkv + bkv   (single launch)."""
    xn = _layernorm(x_ref[0], a_ref[...], b_ref[...])
    q_ref[0] = jnp.dot(xn, wq_ref[...], preferred_element_type=jnp.float32) + bq_ref[...]
    kv_ref[0] = (jnp.dot(e_ref[0], wkv_ref[...], preferred_element_type=jnp.float32)
                 + bkv_ref[...])


def _attention_kernel(q_ref, k_ref, v_ref, bias_ref, o_ref):
    """Attention core for one (batch, head).  1/sqrt(dh) is folded into q;
    the mask is an additive bias (0 keep / -1e9 masked)."""
    q = q_ref[0, 0]                       # (Sq, dh)
    k = k_ref[0, 0]                       # (Sk, dh)
    v = v_ref[0, 0]                       # (Sk, dh)
    s = jax.lax.dot_general(q, k, (((1,), (1,)), ((), ())),
                            preferred_element_type=jnp.float32)   # (Sq, Sk)
    s = s + bias_ref[0]                                           # (Mq, Sk) broadcasts
    s = s - jnp.max(s, axis=-1, keepdims=True)
    p = jnp.exp(s)
    # TODO(synk): approx=True (EUP reciprocal) is fine at production tolerances.
    p = p * pl.reciprocal(jnp.sum(p, axis=-1, keepdims=True))
    o_ref[0, 0] = jnp.dot(p, v, preferred_element_type=jnp.float32)


def _proj_residual_kernel(s_ref, w_ref, b_ref, res_ref, o_ref):
    """o = res + s @ Wo + bo   (output aliases the residual buffer)."""
    y = jnp.dot(s_ref[0], w_ref[...], preferred_element_type=jnp.float32) + b_ref[...]
    o_ref[0] = res_ref[0] + y


def _ln_ffn_residual_kernel(x_ref, a_ref, b_ref, w1_ref, b1_ref, w2_ref, b2_ref, o_ref):
    """o = x + FC2(relu(FC1(layernorm(x))))   — whole FFN sub-block, x read once."""
    x = x_ref[0]
    xn = _layernorm(x, a_ref[...], b_ref[...])
    h = jnp.dot(xn, w1_ref[...], preferred_element_type=jnp.float32) + b1_ref[...]
    h = jnp.maximum(h, 0.0)
    y = jnp.dot(h, w2_ref[...], preferred_element_type=jnp.float32) + b2_ref[...]
    o_ref[0] = x + y


# ----------------------------- wrappers -----------------------------

def ln_proj(x, ln_a, ln_b, w, b):
    B, S, D = x.shape
    Dout = w.shape[1]
    return pl.pallas_call(
        _ln_proj_kernel,
        out_shape=jax.ShapeDtypeStruct((B, S, Dout), x.dtype),
        grid=(B,),
        in_specs=[pl.BlockSpec((1, S, D), lambda bb: (bb, 0, 0)),
                  pl.BlockSpec((1, D), lambda bb: (0, 0)),
                  pl.BlockSpec((1, D), lambda bb: (0, 0)),
                  pl.BlockSpec((D, Dout), lambda bb: (0, 0)),
                  pl.BlockSpec((1, Dout), lambda bb: (0, 0))],
        out_specs=pl.BlockSpec((1, S, Dout), lambda bb: (bb, 0, 0)),
        compiler_params=_PAR1,
        cost_estimate=_cost(2 * B * S * D * Dout + 10 * B * S * D,
                            4 * (B * S * (D + Dout) + D * Dout + Dout + 2 * D),
                            transcendentals=2 * B * S),
    )(x, ln_a, ln_b, w, b)


def cross_proj(x, ln_a, ln_b, wq, bq, e_out, wkv, bkv):
    B, S, D = x.shape
    Se = e_out.shape[1]
    Dq = wq.shape[1]
    Dkv = wkv.shape[1]
    return pl.pallas_call(
        _cross_proj_kernel,
        out_shape=(jax.ShapeDtypeStruct((B, S, Dq), x.dtype),
                   jax.ShapeDtypeStruct((B, Se, Dkv), x.dtype)),
        grid=(B,),
        in_specs=[pl.BlockSpec((1, S, D), lambda bb: (bb, 0, 0)),
                  pl.BlockSpec((1, D), lambda bb: (0, 0)),
                  pl.BlockSpec((1, D), lambda bb: (0, 0)),
                  pl.BlockSpec((D, Dq), lambda bb: (0, 0)),
                  pl.BlockSpec((1, Dq), lambda bb: (0, 0)),
                  pl.BlockSpec((1, Se, D), lambda bb: (bb, 0, 0)),
                  pl.BlockSpec((D, Dkv), lambda bb: (0, 0)),
                  pl.BlockSpec((1, Dkv), lambda bb: (0, 0))],
        out_specs=(pl.BlockSpec((1, S, Dq), lambda bb: (bb, 0, 0)),
                   pl.BlockSpec((1, Se, Dkv), lambda bb: (bb, 0, 0))),
        compiler_params=_PAR1,
        cost_estimate=_cost(2 * B * S * D * Dq + 2 * B * Se * D * Dkv + 10 * B * S * D,
                            4 * (B * S * (D + Dq) + B * Se * (D + Dkv)
                                 + D * (Dq + Dkv) + Dq + Dkv + 2 * D),
                            transcendentals=2 * B * S),
    )(x, ln_a, ln_b, wq, bq, e_out, wkv, bkv)


def attention_core(qh, kh, vh, mask_bias):
    B, H, Sq, dh = qh.shape
    Sk = kh.shape[2]
    Mq = mask_bias.shape[1]
    return pl.pallas_call(
        _attention_kernel,
        out_shape=jax.ShapeDtypeStruct((B, H, Sq, dh), qh.dtype),
        grid=(B, H),
        in_specs=[pl.BlockSpec((1, 1, Sq, dh), lambda b, h: (b, h, 0, 0)),
                  pl.BlockSpec((1, 1, Sk, dh), lambda b, h: (b, h, 0, 0)),
                  pl.BlockSpec((1, 1, Sk, dh), lambda b, h: (b, h, 0, 0)),
                  pl.BlockSpec((1, Mq, Sk), lambda b, h: (b, 0, 0))],
        out_specs=pl.BlockSpec((1, 1, Sq, dh), lambda b, h: (b, h, 0, 0)),
        compiler_params=_PAR2,
        cost_estimate=_cost(4 * B * H * Sq * Sk * dh + 6 * B * H * Sq * Sk,
                            4 * (B * H * (2 * Sq * dh + 2 * Sk * dh) + B * Mq * Sk),
                            transcendentals=B * H * Sq * Sk),
    )(qh, kh, vh, mask_bias)


def proj_residual(s, w, b, res):
    B, S, Din = s.shape
    Dout = w.shape[1]
    return pl.pallas_call(
        _proj_residual_kernel,
        out_shape=jax.ShapeDtypeStruct((B, S, Dout), s.dtype),
        grid=(B,),
        in_specs=[pl.BlockSpec((1, S, Din), lambda bb: (bb, 0, 0)),
                  pl.BlockSpec((Din, Dout), lambda bb: (0, 0)),
                  pl.BlockSpec((1, Dout), lambda bb: (0, 0)),
                  pl.BlockSpec((1, S, Dout), lambda bb: (bb, 0, 0))],
        out_specs=pl.BlockSpec((1, S, Dout), lambda bb: (bb, 0, 0)),
        input_output_aliases={3: 0},          # residual stream updated in place
        compiler_params=_PAR1,
        cost_estimate=_cost(2 * B * S * Din * Dout + 2 * B * S * Dout,
                            4 * (B * S * (Din + 2 * Dout) + Din * Dout + Dout)),
    )(s, w, b, res)


def ln_ffn_residual(x, ln_a, ln_b, w1, b1, w2, b2):
    B, S, D = x.shape
    F = w1.shape[1]
    return pl.pallas_call(
        _ln_ffn_residual_kernel,
        out_shape=jax.ShapeDtypeStruct((B, S, D), x.dtype),
        grid=(B,),
        in_specs=[pl.BlockSpec((1, S, D), lambda bb: (bb, 0, 0)),
                  pl.BlockSpec((1, D), lambda bb: (0, 0)),
                  pl.BlockSpec((1, D), lambda bb: (0, 0)),
                  pl.BlockSpec((D, F), lambda bb: (0, 0)),
                  pl.BlockSpec((1, F), lambda bb: (0, 0)),
                  pl.BlockSpec((F, D), lambda bb: (0, 0)),
                  pl.BlockSpec((1, D), lambda bb: (0, 0))],
        out_specs=pl.BlockSpec((1, S, D), lambda bb: (bb, 0, 0)),
        input_output_aliases={0: 0},          # x is both LN input and residual
        compiler_params=_PAR1,
        cost_estimate=_cost(4 * B * S * D * F + 14 * B * S * D,
                            4 * (2 * B * S * D + 2 * D * F + F + 3 * D),
                            transcendentals=2 * B * S),
    )(x, ln_a, ln_b, w1, b1, w2, b2)


# ----------------------------- decoder layer -----------------------------

def decoder_layer(x, e_out, src_mask, trg_mask, pp, n_heads):
    B, S, D = x.shape
    dh = D // n_heads

    # additive mask bias: 0 where keep, -1e9 where masked
    trg_bias = (trg_mask - 1.0) * NEG_BIG
    src_bias = (src_mask - 1.0) * NEG_BIG

    # ---- sublayer 1: x = x + attn1(norm1(x), norm1(x), norm1(x), trg_mask)
    a1 = pp['attn1']
    qkv = ln_proj(x, pp['ln1_a'], pp['ln1_b'], a1['wqkv'], a1['bqkv'])   # (B,S,3D)
    qh = qkv[:, :, :D].reshape(B, n_heads, -1, dh)
    kh = qkv[:, :, D:2 * D].reshape(B, n_heads, -1, dh)
    vh = qkv[:, :, 2 * D:].reshape(B, n_heads, -1, dh)
    s1 = attention_core(qh, kh, vh, trg_bias).reshape(B, -1, D)
    x = proj_residual(s1, a1['wo'], a1['bo'], x)

    # ---- sublayer 2: x = x + attn2(norm2(x), e_out, e_out, src_mask)
    a2 = pp['attn2']
    q2, kv2 = cross_proj(x, pp['ln2_a'], pp['ln2_b'], a2['wq'], a2['bq'],
                         e_out, a2['wkv'], a2['bkv'])
    qh2 = q2.reshape(B, n_heads, -1, dh)
    kh2 = kv2[:, :, :D].reshape(B, n_heads, -1, dh)
    vh2 = kv2[:, :, D:].reshape(B, n_heads, -1, dh)
    s2 = attention_core(qh2, kh2, vh2, src_bias).reshape(B, -1, D)
    x = proj_residual(s2, a2['wo'], a2['bo'], x)

    # ---- sublayer 3: x = x + ff(norm3(x))
    x = ln_ffn_residual(x, pp['ln3_a'], pp['ln3_b'],
                        pp['ff_w1'], pp['ff_b1'], pp['ff_w2'], pp['ff_b2'])
    return x


# ------------------- one-time parameter preparation (outside jit) -------------------

def prepare_params(p, n_heads):
    """Pre-transpose PyTorch-layout (out,in) weights to (in,out), concatenate
    Q/K/V (self) and K/V (cross) weights, and fold 1/sqrt(dh) into Wq/bq."""
    d_model = p['ff_w1'].shape[1]
    dh = d_model // n_heads
    inv = 1.0 / math.sqrt(dh)

    def prep_self(a):
        wqkv = jnp.concatenate([a['wq'].T * inv, a['wk'].T, a['wv'].T], axis=1)
        bqkv = jnp.concatenate([a['bq'] * inv, a['bk'], a['bv']]).reshape(1, -1)
        return dict(wqkv=wqkv, bqkv=bqkv, wo=a['wo'].T, bo=a['bo'].reshape(1, -1))

    def prep_cross(a):
        return dict(wq=a['wq'].T * inv, bq=(a['bq'] * inv).reshape(1, -1),
                    wkv=jnp.concatenate([a['wk'].T, a['wv'].T], axis=1),
                    bkv=jnp.concatenate([a['bk'], a['bv']]).reshape(1, -1),
                    wo=a['wo'].T, bo=a['bo'].reshape(1, -1))

    return dict(
        ln1_a=p['ln1_a'].reshape(1, -1), ln1_b=p['ln1_b'].reshape(1, -1),
        ln2_a=p['ln2_a'].reshape(1, -1), ln2_b=p['ln2_b'].reshape(1, -1),
        ln3_a=p['ln3_a'].reshape(1, -1), ln3_b=p['ln3_b'].reshape(1, -1),
        attn1=prep_self(p['attn1']), attn2=prep_cross(p['attn2']),
        ff_w1=p['ff_w1'].T, ff_b1=p['ff_b1'].reshape(1, -1),
        ff_w2=p['ff_w2'].T, ff_b2=p['ff_b2'].reshape(1, -1),
    )


# ----------------------------- pure-JAX reference -----------------------------

def _ref_linear(x, W, b):
    return x @ W.T + b


def _ref_layernorm(x, a, b):
    mean = x.mean(-1, keepdims=True)
    std = jnp.sqrt(((x - mean) ** 2).sum(-1, keepdims=True) / (x.shape[-1] - 1))
    return a * (x - mean) / (std + 1e-07) + b


def _ref_mha(q_in, k_in, v_in, mask, p, n_heads):
    B = q_in.shape[0]
    d = q_in.shape[-1]
    dh = d // n_heads
    q = _ref_linear(q_in, p['wq'], p['bq']).reshape(B, n_heads, -1, dh)
    k = _ref_linear(k_in, p['wk'], p['bk']).reshape(B, n_heads, -1, dh)
    v = _ref_linear(v_in, p['wv'], p['bv']).reshape(B, n_heads, -1, dh)
    scores = q @ jnp.swapaxes(k, -2, -1) / math.sqrt(dh)
    scores = jnp.where(mask[:, None] == 0, -1000000000.0, scores)
    scores = jax.nn.softmax(scores, axis=-1)
    out = (scores @ v).reshape(B, -1, d)
    return _ref_linear(out, p['wo'], p['bo'])


def ref_decoder_layer(x, e_out, src_mask, trg_mask, p, n_heads):
    x1 = _ref_layernorm(x, p['ln1_a'], p['ln1_b'])
    x = x + _ref_mha(x1, x1, x1, trg_mask, p['attn1'], n_heads)
    x1 = _ref_layernorm(x, p['ln2_a'], p['ln2_b'])
    x = x + _ref_mha(x1, e_out, e_out, src_mask, p['attn2'], n_heads)
    x1 = _ref_layernorm(x, p['ln3_a'], p['ln3_b'])
    h = jnp.maximum(_ref_linear(x1, p['ff_w1'], p['ff_b1']), 0.0)
    return x + _ref_linear(h, p['ff_w2'], p['ff_b2'])


# ----------------------------- params & main -----------------------------

def init_params(key, d_model, n_heads, ff_dim):
    def lin(k, out_d, in_d):
        kw, kb = jax.random.split(k)
        W = jax.random.normal(kw, (out_d, in_d), jnp.float32) / math.sqrt(in_d)
        b = jax.random.normal(kb, (out_d,), jnp.float32) * 0.01
        return W, b

    def attn(k):
        k1, k2, k3, k4 = jax.random.split(k, 4)
        wq, bq = lin(k1, d_model, d_model)
        wk, bk = lin(k2, d_model, d_model)
        wv, bv = lin(k3, d_model, d_model)
        wo, bo = lin(k4, d_model, d_model)
        return dict(wq=wq, bq=bq, wk=wk, bk=bk, wv=wv, bv=bv, wo=wo, bo=bo)

    ks = jax.random.split(key, 4)
    p = dict(
        ln1_a=jnp.ones((d_model,), jnp.float32), ln1_b=jnp.zeros((d_model,), jnp.float32),
        ln2_a=jnp.ones((d_model,), jnp.float32), ln2_b=jnp.zeros((d_model,), jnp.float32),
        ln3_a=jnp.ones((d_model,), jnp.float32), ln3_b=jnp.zeros((d_model,), jnp.float32),
        attn1=attn(ks[0]), attn2=attn(ks[1]),
    )
    p['ff_w1'], p['ff_b1'] = lin(ks[2], ff_dim, d_model)
    p['ff_w2'], p['ff_b2'] = lin(ks[3], d_model, ff_dim)
    return p


if __name__ == "__main__":
    B, S, Se = 2, 8, 8
    d_model, n_heads, ff_dim = 32, 4, 64

    key = jax.random.PRNGKey(0)
    kx, ke, kp = jax.random.split(key, 3)
    x = jax.random.normal(kx, (B, S, d_model), jnp.float32)
    e_out = jax.random.normal(ke, (B, Se, d_model), jnp.float32)
    trg_mask = jnp.tile(jnp.tril(jnp.ones((S, S), jnp.float32))[None], (B, 1, 1))
    src_mask = jnp.ones((B, 1, Se), jnp.float32)

    params = init_params(kp, d_model, n_heads, ff_dim)
    prepared = prepare_params(params, n_heads)          # once, outside the forward

    fwd = jax.jit(functools.partial(decoder_layer, n_heads=n_heads))
    out = jax.block_until_ready(fwd(x, e_out, src_mask, trg_mask, prepared))

    ref = ref_decoder_layer(x, e_out, src_mask, trg_mask, params, n_heads)
    np.testing.assert_allclose(np.asarray(out), np.asarray(ref),
                               rtol=1e-4, atol=1e-4)
    print("KERNEL_OK")
</pallas_src>

<mosaic_0001>
module attributes {stable_mosaic.version = 11 : i64} {
  func.func @_ln_proj_kernel(%arg0: i32, %arg1: memref<1x8x32xf32, #tpu.memory_space<vmem>>, %arg2: memref<1x32xf32, #tpu.memory_space<vmem>>, %arg3: memref<1x32xf32, #tpu.memory_space<vmem>>, %arg4: memref<32x96xf32, #tpu.memory_space<vmem>>, %arg5: memref<1x96xf32, #tpu.memory_space<vmem>>, %arg6: memref<1x8x96xf32, #tpu.memory_space<vmem>>) attributes {dimension_semantics = [#tpu.dimension_semantics<parallel>], iteration_bounds = array<i64: 2>, scalar_prefetch = 0 : i64, scratch_operands = 0 : i64, tpu.core_type = #tpu.core_type<tc>, window_params = [{transform_indices = @transform_0, window_bounds = array<i64: 1, 8, 32>}, {pipeline_mode = #tpu.pipeline_mode<synchronous>, transform_indices = @transform_1, window_bounds = array<i64: 1, 32>}, {pipeline_mode = #tpu.pipeline_mode<synchronous>, transform_indices = @transform_2, window_bounds = array<i64: 1, 32>}, {pipeline_mode = #tpu.pipeline_mode<synchronous>, transform_indices = @transform_3, window_bounds = array<i64: 32, 96>}, {pipeline_mode = #tpu.pipeline_mode<synchronous>, transform_indices = @transform_4, window_bounds = array<i64: 1, 96>}, {transform_indices = @transform_5, window_bounds = array<i64: 1, 8, 96>}]} {
    %c0 = arith.constant 0 : index
    %c0_0 = arith.constant 0 : index
    %c0_1 = arith.constant 0 : index
    %0 = vector.load %arg1[%c0, %c0_0, %c0_1] : memref<1x8x32xf32, #tpu.memory_space<vmem>>, vector<1x8x32xf32>
    %1 = vector.shape_cast %0 : vector<1x8x32xf32> to vector<8x32xf32>
    %c0_2 = arith.constant 0 : index
    %c0_3 = arith.constant 0 : index
    %2 = vector.load %arg2[%c0_2, %c0_3] : memref<1x32xf32, #tpu.memory_space<vmem>>, vector<1x32xf32>
    %c0_4 = arith.constant 0 : index
    %c0_5 = arith.constant 0 : index
    %3 = vector.load %arg3[%c0_4, %c0_5] : memref<1x32xf32, #tpu.memory_space<vmem>>, vector<1x32xf32>
    %cst = arith.constant dense<0.000000e+00> : vector<8xf32>
    %4 = vector.multi_reduction <add>, %1, %cst [1] : vector<8x32xf32> to vector<8xf32>
    %5 = vector.shape_cast %4 : vector<8xf32> to vector<8x1xf32>
    %cst_6 = arith.constant 3.200000e+01 : f32
    %6 = vector.broadcast %cst_6 : f32 to vector<8x1xf32>
    %7 = arith.divf %5, %6 : vector<8x1xf32>
    %8 = vector.broadcast %7 : vector<8x1xf32> to vector<8x32xf32>
    %9 = arith.subf %1, %8 : vector<8x32xf32>
    %10 = arith.mulf %9, %9 : vector<8x32xf32>
    %cst_7 = arith.constant dense<0.000000e+00> : vector<8xf32>
    %11 = vector.multi_reduction <add>, %10, %cst_7 [1] : vector<8x32xf32> to vector<8xf32>
    %12 = vector.shape_cast %11 : vector<8xf32> to vector<8x1xf32>
    %cst_8 = arith.constant 3.100000e+01 : f32
    %13 = vector.broadcast %cst_8 : f32 to vector<8x1xf32>
    %14 = arith.divf %12, %13 : vector<8x1xf32>
    %15 = math.sqrt %14 : vector<8x1xf32>
    %cst_9 = arith.constant 1.000000e-07 : f32
    %16 = vector.broadcast %cst_9 : f32 to vector<8x1xf32>
    %17 = arith.addf %15, %16 : vector<8x1xf32>
    %18 = tpu.reciprocal %17 : vector<8x1xf32> -> vector<8x1xf32>
    %19 = vector.broadcast %18 : vector<8x1xf32> to vector<8x32xf32>
    %20 = arith.mulf %9, %19 : vector<8x32xf32>
    %21 = vector.broadcast %2 : vector<1x32xf32> to vector<8x32xf32>
    %22 = arith.mulf %21, %20 : vector<8x32xf32>
    %23 = vector.broadcast %3 : vector<1x32xf32> to vector<8x32xf32>
    %24 = arith.addf %22, %23 : vector<8x32xf32>
    %c0_10 = arith.constant 0 : index
    %c0_11 = arith.constant 0 : index
    %25 = vector.load %arg4[%c0_10, %c0_11] : memref<32x96xf32, #tpu.memory_space<vmem>>, vector<32x96xf32>
    %cst_12 = arith.constant dense<0.000000e+00> : vector<8x96xf32>
    %26 = tpu.matmul %24, %25, %cst_12 {dimension_numbers = #tpu.dot_dimension_numbers<[1], [0], [0], [1], [0, 0, 1, 1], [], []>} : vector<8x32xf32>, vector<32x96xf32>, vector<8x96xf32> -> vector<8x96xf32>
    %c0_13 = arith.constant 0 : index
    %c0_14 = arith.constant 0 : index
    %27 = vector.load %arg5[%c0_13, %c0_14] : memref<1x96xf32, #tpu.memory_space<vmem>>, vector<1x96xf32>
    %28 = vector.broadcast %27 : vector<1x96xf32> to vector<8x96xf32>
    %29 = arith.addf %26, %28 : vector<8x96xf32>
    %c0_15 = arith.constant 0 : index
    %c0_16 = arith.constant 0 : index
    %c0_17 = arith.constant 0 : index
    %30 = vector.load %arg6[%c0_15, %c0_16, %c0_17] : memref<1x8x96xf32, #tpu.memory_space<vmem>>, vector<1x8x96xf32>
    %31 = vector.shape_cast %30 : vector<1x8x96xf32> to vector<8x96xf32>
    %32 = vector.shape_cast %29 : vector<8x96xf32> to vector<1x8x96xf32>
    tpu.vector_store %arg6[%c0_15, %c0_16, %c0_17], %32 {strides = array<i32>} : memref<1x8x96xf32, #tpu.memory_space<vmem>>, vector<1x8x96xf32>,
    return
  }
  func.func @transform_0(%arg0: i32) -> (i32, i32, i32) {
    %c0_i32 = arith.constant 0 : i32
    %c0_i32_0 = arith.constant 0 : i32
    %c0_i32_1 = arith.constant 0 : i32
    return %arg0, %c0_i32, %c0_i32_0 : i32, i32, i32
  }
  func.func @transform_1(%arg0: i32) -> (i32, i32) {
    %c0_i32 = arith.constant 0 : i32
    %c0_i32_0 = arith.constant 0 : i32
    %c0_i32_1 = arith.constant 0 : i32
    return %c0_i32, %c0_i32_0 : i32, i32
  }
  func.func @transform_2(%arg0: i32) -> (i32, i32) {
    %c0_i32 = arith.constant 0 : i32
    %c0_i32_0 = arith.constant 0 : i32
    %c0_i32_1 = arith.constant 0 : i32
    return %c0_i32, %c0_i32_0 : i32, i32
  }
  func.func @transform_3(%arg0: i32) -> (i32, i32) {
    %c0_i32 = arith.constant 0 : i32
    %c0_i32_0 = arith.constant 0 : i32
    %c0_i32_1 = arith.constant 0 : i32
    return %c0_i32, %c0_i32_0 : i32, i32
  }
  func.func @transform_4(%arg0: i32) -> (i32, i32) {
    %c0_i32 = arith.constant 0 : i32
    %c0_i32_0 = arith.constant 0 : i32
    %c0_i32_1 = arith.constant 0 : i32
    return %c0_i32, %c0_i32_0 : i32, i32
  }
  func.func @transform_5(%arg0: i32) -> (i32, i32, i32) {
    %c0_i32 = arith.constant 0 : i32
    %c0_i32_0 = arith.constant 0 : i32
    %c0_i32_1 = arith.constant 0 : i32
    return %arg0, %c0_i32, %c0_i32_0 : i32, i32, i32
  }
}

module attributes {stable_mosaic.version = 11 : i64} {
  func.func @_attention_kernel(%arg0: i32, %arg1: i32, %arg2: memref<1x1x8x8xf32, #tpu.memory_space<vmem>>, %arg3: memref<1x1x8x8xf32, #tpu.memory_space<vmem>>, %arg4: memref<1x1x8x8xf32, #tpu.memory_space<vmem>>, %arg5: memref<1x8x8xf32, #tpu.memory_space<vmem>>, %arg6: memref<1x1x8x8xf32, #tpu.memory_space<vmem>>) attributes {dimension_semantics = [#tpu.dimension_semantics<parallel>, #tpu.dimension_semantics<parallel>], iteration_bounds = array<i64: 2, 4>, scalar_prefetch = 0 : i64, scratch_operands = 0 : i64, tpu.core_type = #tpu.core_type<tc>, window_params = [{transform_indices = @transform_0, window_bounds = array<i64: 1, 1, 8, 8>}, {transform_indices = @transform_1, window_bounds = array<i64: 1, 1, 8, 8>}, {transform_indices = @transform_2, window_bounds = array<i64: 1, 1, 8, 8>}, {transform_indices = @transform_3, window_bounds = array<i64: 1, 8, 8>}, {transform_indices = @transform_4, window_bounds = array<i64: 1, 1, 8, 8>}]} {
    %c0 = arith.constant 0 : index
    %c0_0 = arith.constant 0 : index
    %c0_1 = arith.constant 0 : index
    %c0_2 = arith.constant 0 : index
    %0 = vector.load %arg2[%c0, %c0_0, %c0_1, %c0_2] : memref<1x1x8x8xf32, #tpu.memory_space<vmem>>, vector<1x1x8x8xf32>
    %1 = vector.shape_cast %0 : vector<1x1x8x8xf32> to vector<8x8xf32>
    %c0_3 = arith.constant 0 : index
    %c0_4 = arith.constant 0 : index
    %c0_5 = arith.constant 0 : index
    %c0_6 = arith.constant 0 : index
    %2 = vector.load %arg3[%c0_3, %c0_4, %c0_5, %c0_6] : memref<1x1x8x8xf32, #tpu.memory_space<vmem>>, vector<1x1x8x8xf32>
    %3 = vector.shape_cast %2 : vector<1x1x8x8xf32> to vector<8x8xf32>
    %c0_7 = arith.constant 0 : index
    %c0_8 = arith.constant 0 : index
    %c0_9 = arith.constant 0 : index
    %c0_10 = arith.constant 0 : index
    %4 = vector.load %arg4[%c0_7, %c0_8, %c0_9, %c0_10] : memref<1x1x8x8xf32, #tpu.memory_space<vmem>>, vector<1x1x8x8xf32>
    %5 = vector.shape_cast %4 : vector<1x1x8x8xf32> to vector<8x8xf32>
    %cst = arith.constant dense<0.000000e+00> : vector<8x8xf32>
    %6 = tpu.matmul %1, %3, %cst {dimension_numbers = #tpu.dot_dimension_numbers<[1], [1], [0], [0], [0, 0, 1, 0], [], []>} : vector<8x8xf32>, vector<8x8xf32>, vector<8x8xf32> -> vector<8x8xf32>
    %c0_11 = arith.constant 0 : index
    %c0_12 = arith.constant 0 : index
    %c0_13 = arith.constant 0 : index
    %7 = vector.load %arg5[%c0_11, %c0_12, %c0_13] : memref<1x8x8xf32, #tpu.memory_space<vmem>>, vector<1x8x8xf32>
    %8 = vector.shape_cast %7 : vector<1x8x8xf32> to vector<8x8xf32>
    %9 = arith.addf %6, %8 : vector<8x8xf32>
    %cst_14 = arith.constant dense<0xFF800000> : vector<8xf32>
    %10 = vector.multi_reduction <maximumf>, %9, %cst_14 [1] : vector<8x8xf32> to vector<8xf32>
    %11 = vector.shape_cast %10 : vector<8xf32> to vector<8x1xf32>
    %12 = vector.broadcast %11 : vector<8x1xf32> to vector<8x8xf32>
    %13 = arith.subf %9, %12 : vector<8x8xf32>
    %14 = math.exp %13 : vector<8x8xf32>
    %cst_15 = arith.constant dense<0.000000e+00> : vector<8xf32>
    %15 = vector.multi_reduction <add>, %14, %cst_15 [1] : vector<8x8xf32> to vector<8xf32>
    %16 = vector.shape_cast %15 : vector<8xf32> to vector<8x1xf32>
    %17 = tpu.reciprocal %16 : vector<8x1xf32> -> vector<8x1xf32>
    %18 = vector.broadcast %17 : vector<8x1xf32> to vector<8x8xf32>
    %19 = arith.mulf %14, %18 : vector<8x8xf32>
    %cst_16 = arith.constant dense<0.000000e+00> : vector<8x8xf32>
    %20 = tpu.matmul %19, %5, %cst_16 {dimension_numbers = #tpu.dot_dimension_numbers<[1], [0], [0], [1], [0, 0, 1, 1], [], []>} : vector<8x8xf32>, vector<8x8xf32>, vector<8x8xf32> -> vector<8x8xf32>
    %c0_17 = arith.constant 0 : index
    %c0_18 = arith.constant 0 : index
    %c0_19 = arith.constant 0 : index
    %c0_20 = arith.constant 0 : index
    %21 = vector.load %arg6[%c0_17, %c0_18, %c0_19, %c0_20] : memref<1x1x8x8xf32, #tpu.memory_space<vmem>>, vector<1x1x8x8xf32>
    %22 = vector.shape_cast %21 : vector<1x1x8x8xf32> to vector<8x8xf32>
    %23 = vector.shape_cast %20 : vector<8x8xf32> to vector<1x1x8x8xf32>
    tpu.vector_store %arg6[%c0_17, %c0_18, %c0_19, %c0_20], %23 {strides = array<i32>} : memref<1x1x8x8xf32, #tpu.memory_space<vmem>>, vector<1x1x8x8xf32>,
    return
  }
  func.func @transform_0(%arg0: i32, %arg1: i32) -> (i32, i32, i32, i32) {
    %c0_i32 = arith.constant 0 : i32
    %c0_i32_0 = arith.constant 0 : i32
    %c0_i32_1 = arith.constant 0 : i32
    return %arg0, %arg1, %c0_i32, %c0_i32_0 : i32, i32, i32, i32
  }
  func.func @transform_1(%arg0: i32, %arg1: i32) -> (i32, i32, i32, i32) {
    %c0_i32 = arith.constant 0 : i32
    %c0_i32_0 = arith.constant 0 : i32
    %c0_i32_1 = arith.constant 0 : i32
    return %arg0, %arg1, %c0_i32, %c0_i32_0 : i32, i32, i32, i32
  }
  func.func @transform_2(%arg0: i32, %arg1: i32) -> (i32, i32, i32, i32) {
    %c0_i32 = arith.constant 0 : i32
    %c0_i32_0 = arith.constant 0 : i32
    %c0_i32_1 = arith.constant 0 : i32
    return %arg0, %arg1, %c0_i32, %c0_i32_0 : i32, i32, i32, i32
  }
  func.func @transform_3(%arg0: i32, %arg1: i32) -> (i32, i32, i32) {
    %c0_i32 = arith.constant 0 : i32
    %c0_i32_0 = arith.constant 0 : i32
    %c0_i32_1 = arith.constant 0 : i32
    return %arg0, %c0_i32, %c0_i32_0 : i32, i32, i32
  }
  func.func @transform_4(%arg0: i32, %arg1: i32) -> (i32, i32, i32, i32) {
    %c0_i32 = arith.constant 0 : i32
    %c0_i32_0 = arith.constant 0 : i32
    %c0_i32_1 = arith.constant 0 : i32
    return %arg0, %arg1, %c0_i32, %c0_i32_0 : i32, i32, i32, i32
  }
}

module attributes {stable_mosaic.version = 11 : i64} {
  func.func @_proj_residual_kernel(%arg0: i32, %arg1: memref<1x8x32xf32, #tpu.memory_space<vmem>>, %arg2: memref<32x32xf32, #tpu.memory_space<vmem>>, %arg3: memref<1x32xf32, #tpu.memory_space<vmem>>, %arg4: memref<1x8x32xf32, #tpu.memory_space<vmem>>, %arg5: memref<1x8x32xf32, #tpu.memory_space<vmem>>) attributes {dimension_semantics = [#tpu.dimension_semantics<parallel>], iteration_bounds = array<i64: 2>, scalar_prefetch = 0 : i64, scratch_operands = 0 : i64, tpu.core_type = #tpu.core_type<tc>, window_params = [{transform_indices = @transform_0, window_bounds = array<i64: 1, 8, 32>}, {pipeline_mode = #tpu.pipeline_mode<synchronous>, transform_indices = @transform_1, window_bounds = array<i64: 32, 32>}, {pipeline_mode = #tpu.pipeline_mode<synchronous>, transform_indices = @transform_2, window_bounds = array<i64: 1, 32>}, {transform_indices = @transform_3, window_bounds = array<i64: 1, 8, 32>}, {transform_indices = @transform_4, window_bounds = array<i64: 1, 8, 32>}]} {
    %c0 = arith.constant 0 : index
    %c0_0 = arith.constant 0 : index
    %c0_1 = arith.constant 0 : index
    %0 = vector.load %arg1[%c0, %c0_0, %c0_1] : memref<1x8x32xf32, #tpu.memory_space<vmem>>, vector<1x8x32xf32>
    %1 = vector.shape_cast %0 : vector<1x8x32xf32> to vector<8x32xf32>
    %c0_2 = arith.constant 0 : index
    %c0_3 = arith.constant 0 : index
    %2 = vector.load %arg2[%c0_2, %c0_3] : memref<32x32xf32, #tpu.memory_space<vmem>>, vector<32x32xf32>
    %cst = arith.constant dense<0.000000e+00> : vector<8x32xf32>
    %3 = tpu.matmul %1, %2, %cst {dimension_numbers = #tpu.dot_dimension_numbers<[1], [0], [0], [1], [0, 0, 1, 1], [], []>} : vector<8x32xf32>, vector<32x32xf32>, vector<8x32xf32> -> vector<8x32xf32>
    %c0_4 = arith.constant 0 : index
    %c0_5 = arith.constant 0 : index
    %4 = vector.load %arg3[%c0_4, %c0_5] : memref<1x32xf32, #tpu.memory_space<vmem>>, vector<1x32xf32>
    %5 = vector.broadcast %4 : vector<1x32xf32> to vector<8x32xf32>
    %6 = arith.addf %3, %5 : vector<8x32xf32>
    %c0_6 = arith.constant 0 : index
    %c0_7 = arith.constant 0 : index
    %c0_8 = arith.constant 0 : index
    %7 = vector.load %arg4[%c0_6, %c0_7, %c0_8] : memref<1x8x32xf32, #tpu.memory_space<vmem>>, vector<1x8x32xf32>
    %8 = vector.shape_cast %7 : vector<1x8x32xf32> to vector<8x32xf32>
    %9 = arith.addf %8, %6 : vector<8x32xf32>
    %c0_9 = arith.constant 0 : index
    %c0_10 = arith.constant 0 : index
    %c0_11 = arith.constant 0 : index
    %10 = vector.load %arg5[%c0_9, %c0_10, %c0_11] : memref<1x8x32xf32, #tpu.memory_space<vmem>>, vector<1x8x32xf32>
    %11 = vector.shape_cast %10 : vector<1x8x32xf32> to vector<8x32xf32>
    %12 = vector.shape_cast %9 : vector<8x32xf32> to vector<1x8x32xf32>
    tpu.vector_store %arg5[%c0_9, %c0_10, %c0_11], %12 {strides = array<i32>} : memref<1x8x32xf32, #tpu.memory_space<vmem>>, vector<1x8x32xf32>,
    return
  }
  func.func @transform_0(%arg0: i32) -> (i32, i32, i32) {
    %c0_i32 = arith.constant 0 : i32
    %c0_i32_0 = arith.constant 0 : i32
    %c0_i32_1 = arith.constant 0 : i32
    return %arg0, %c0_i32, %c0_i32_0 : i32, i32, i32
  }
  func.func @transform_1(%arg0: i32) -> (i32, i32) {
    %c0_i32 = arith.constant 0 : i32
    %c0_i32_0 = arith.constant 0 : i32
    %c0_i32_1 = arith.constant 0 : i32
    return %c0_i32, %c0_i32_0 : i32, i32
  }
  func.func @transform_2(%arg0: i32) -> (i32, i32) {
    %c0_i32 = arith.constant 0 : i32
    %c0_i32_0 = arith.constant 0 : i32
    %c0_i32_1 = arith.constant 0 : i32
    return %c0_i32, %c0_i32_0 : i32, i32
  }
  func.func @transform_3(%arg0: i32) -> (i32, i32, i32) {
    %c0_i32 = arith.constant 0 : i32
    %c0_i32_0 = arith.constant 0 : i32
    %c0_i32_1 = arith.constant 0 : i32
    return %arg0, %c0_i32, %c0_i32_0 : i32, i32, i32
  }
  func.func @transform_4(%arg0: i32) -> (i32, i32, i32) {
    %c0_i32 = arith.constant 0 : i32
    %c0_i32_0 = arith.constant 0 : i32
    %c0_i32_1 = arith.constant 0 : i32
    return %arg0, %c0_i32, %c0_i32_0 : i32, i32, i32
  }
}

module attributes {stable_mosaic.version = 11 : i64} {
  func.func @_cross_proj_kernel(%arg0: i32, %arg1: memref<1x8x32xf32, #tpu.memory_space<vmem>>, %arg2: memref<1x32xf32, #tpu.memory_space<vmem>>, %arg3: memref<1x32xf32, #tpu.memory_space<vmem>>, %arg4: memref<32x32xf32, #tpu.memory_space<vmem>>, %arg5: memref<1x32xf32, #tpu.memory_space<vmem>>, %arg6: memref<1x8x32xf32, #tpu.memory_space<vmem>>, %arg7: memref<32x64xf32, #tpu.memory_space<vmem>>, %arg8: memref<1x64xf32, #tpu.memory_space<vmem>>, %arg9: memref<1x8x32xf32, #tpu.memory_space<vmem>>, %arg10: memref<1x8x64xf32, #tpu.memory_space<vmem>>) attributes {dimension_semantics = [#tpu.dimension_semantics<parallel>], iteration_bounds = array<i64: 2>, scalar_prefetch = 0 : i64, scratch_operands = 0 : i64, tpu.core_type = #tpu.core_type<tc>, window_params = [{transform_indices = @transform_0, window_bounds = array<i64: 1, 8, 32>}, {pipeline_mode = #tpu.pipeline_mode<synchronous>, transform_indices = @transform_1, window_bounds = array<i64: 1, 32>}, {pipeline_mode = #tpu.pipeline_mode<synchronous>, transform_indices = @transform_2, window_bounds = array<i64: 1, 32>}, {pipeline_mode = #tpu.pipeline_mode<synchronous>, transform_indices = @transform_3, window_bounds = array<i64: 32, 32>}, {pipeline_mode = #tpu.pipeline_mode<synchronous>, transform_indices = @transform_4, window_bounds = array<i64: 1, 32>}, {transform_indices = @transform_5, window_bounds = array<i64: 1, 8, 32>}, {pipeline_mode = #tpu.pipeline_mode<synchronous>, transform_indices = @transform_6, window_bounds = array<i64: 32, 64>}, {pipeline_mode = #tpu.pipeline_mode<synchronous>, transform_indices = @transform_7, window_bounds = array<i64: 1, 64>}, {transform_indices = @transform_8, window_bounds = array<i64: 1, 8, 32>}, {transform_indices = @transform_9, window_bounds = array<i64: 1, 8, 64>}]} {
    %c0 = arith.constant 0 : index
    %c0_0 = arith.constant 0 : index
    %c0_1 = arith.constant 0 : index
    %0 = vector.load %arg1[%c0, %c0_0, %c0_1] : memref<1x8x32xf32, #tpu.memory_space<vmem>>, vector<1x8x32xf32>
    %1 = vector.shape_cast %0 : vector<1x8x32xf32> to vector<8x32xf32>
    %c0_2 = arith.constant 0 : index
    %c0_3 = arith.constant 0 : index
    %2 = vector.load %arg2[%c0_2, %c0_3] : memref<1x32xf32, #tpu.memory_space<vmem>>, vector<1x32xf32>
    %c0_4 = arith.constant 0 : index
    %c0_5 = arith.constant 0 : index
    %3 = vector.load %arg3[%c0_4, %c0_5] : memref<1x32xf32, #tpu.memory_space<vmem>>, vector<1x32xf32>
    %cst = arith.constant dense<0.000000e+00> : vector<8xf32>
    %4 = vector.multi_reduction <add>, %1, %cst [1] : vector<8x32xf32> to vector<8xf32>
    %5 = vector.shape_cast %4 : vector<8xf32> to vector<8x1xf32>
    %cst_6 = arith.constant 3.200000e+01 : f32
    %6 = vector.broadcast %cst_6 : f32 to vector<8x1xf32>
    %7 = arith.divf %5, %6 : vector<8x1xf32>
    %8 = vector.broadcast %7 : vector<8x1xf32> to vector<8x32xf32>
    %9 = arith.subf %1, %8 : vector<8x32xf32>
    %10 = arith.mulf %9, %9 : vector<8x32xf32>
    %cst_7 = arith.constant dense<0.000000e+00> : vector<8xf32>
    %11 = vector.multi_reduction <add>, %10, %cst_7 [1] : vector<8x32xf32> to vector<8xf32>
    %12 = vector.shape_cast %11 : vector<8xf32> to vector<8x1xf32>
    %cst_8 = arith.constant 3.100000e+01 : f32
    %13 = vector.broadcast %cst_8 : f32 to vector<8x1xf32>
    %14 = arith.divf %12, %13 : vector<8x1xf32>
    %15 = math.sqrt %14 : vector<8x1xf32>
    %cst_9 = arith.constant 1.000000e-07 : f32
    %16 = vector.broadcast %cst_9 : f32 to vector<8x1xf32>
    %17 = arith.addf %15, %16 : vector<8x1xf32>
    %18 = tpu.reciprocal %17 : vector<8x1xf32> -> vector<8x1xf32>
    %19 = vector.broadcast %18 : vector<8x1xf32> to vector<8x32xf32>
    %20 = arith.mulf %9, %19 : vector<8x32xf32>
    %21 = vector.broadcast %2 : vector<1x32xf32> to vector<8x32xf32>
    %22 = arith.mulf %21, %20 : vector<8x32xf32>
    %23 = vector.broadcast %3 : vector<1x32xf32> to vector<8x32xf32>
    %24 = arith.addf %22, %23 : vector<8x32xf32>
    %c0_10 = arith.constant 0 : index
    %c0_11 = arith.constant 0 : index
    %25 = vector.load %arg4[%c0_10, %c0_11] : memref<32x32xf32, #tpu.memory_space<vmem>>, vector<32x32xf32>
    %cst_12 = arith.constant dense<0.000000e+00> : vector<8x32xf32>
    %26 = tpu.matmul %24, %25, %cst_12 {dimension_numbers = #tpu.dot_dimension_numbers<[1], [0], [0], [1], [0, 0, 1, 1], [], []>} : vector<8x32xf32>, vector<32x32xf32>, vector<8x32xf32> -> vector<8x32xf32>
    %c0_13 = arith.constant 0 : index
    %c0_14 = arith.constant 0 : index
    %27 = vector.load %arg5[%c0_13, %c0_14] : memref<1x32xf32, #tpu.memory_space<vmem>>, vector<1x32xf32>
    %28 = vector.broadcast %27 : vector<1x32xf32> to vector<8x32xf32>
    %29 = arith.addf %26, %28 : vector<8x32xf32>
    %c0_15 = arith.constant 0 : index
    %c0_16 = arith.constant 0 : index
    %c0_17 = arith.constant 0 : index
    %30 = vector.load %arg9[%c0_15, %c0_16, %c0_17] : memref<1x8x32xf32, #tpu.memory_space<vmem>>, vector<1x8x32xf32>
    %31 = vector.shape_cast %30 : vector<1x8x32xf32> to vector<8x32xf32>
    %32 = vector.shape_cast %29 : vector<8x32xf32> to vector<1x8x32xf32>
    tpu.vector_store %arg9[%c0_15, %c0_16, %c0_17], %32 {strides = array<i32>} : memref<1x8x32xf32, #tpu.memory_space<vmem>>, vector<1x8x32xf32>,
    %c0_18 = arith.constant 0 : index
    %c0_19 = arith.constant 0 : index
    %c0_20 = arith.constant 0 : index
    %33 = vector.load %arg6[%c0_18, %c0_19, %c0_20] : memref<1x8x32xf32, #tpu.memory_space<vmem>>, vector<1x8x32xf32>
    %34 = vector.shape_cast %33 : vector<1x8x32xf32> to vector<8x32xf32>
    %c0_21 = arith.constant 0 : index
    %c0_22 = arith.constant 0 : index
    %35 = vector.load %arg7[%c0_21, %c0_22] : memref<32x64xf32, #tpu.memory_space<vmem>>, vector<32x64xf32>
    %cst_23 = arith.constant dense<0.000000e+00> : vector<8x64xf32>
    %36 = tpu.matmul %34, %35, %cst_23 {dimension_numbers = #tpu.dot_dimension_numbers<[1], [0], [0], [1], [0, 0, 1, 1], [], []>} : vector<8x32xf32>, vector<32x64xf32>, vector<8x64xf32> -> vector<8x64xf32>
    %c0_24 = arith.constant 0 : index
    %c0_25 = arith.constant 0 : index
    %37 = vector.load %arg8[%c0_24, %c0_25] : memref<1x64xf32, #tpu.memory_space<vmem>>, vector<1x64xf32>
    %38 = vector.broadcast %37 : vector<1x64xf32> to vector<8x64xf32>
    %39 = arith.addf %36, %38 : vector<8x64xf32>
    %c0_26 = arith.constant 0 : index
    %c0_27 = arith.constant 0 : index
    %c0_28 = arith.constant 0 : index
    %40 = vector.load %arg10[%c0_26, %c0_27, %c0_28] : memref<1x8x64xf32, #tpu.memory_space<vmem>>, vector<1x8x64xf32>
    %41 = vector.shape_cast %40 : vector<1x8x64xf32> to vector<8x64xf32>
    %42 = vector.shape_cast %39 : vector<8x64xf32> to vector<1x8x64xf32>
    tpu.vector_store %arg10[%c0_26, %c0_27, %c0_28], %42 {strides = array<i32>} : memref<1x8x64xf32, #tpu.memory_space<vmem>>, vector<1x8x64xf32>,
    return
  }
  func.func @transform_0(%arg0: i32) -> (i32, i32, i32) {
    %c0_i32 = arith.constant 0 : i32
    %c0_i32_0 = arith.constant 0 : i32
    %c0_i32_1 = arith.constant 0 : i32
    return %arg0, %c0_i32, %c0_i32_0 : i32, i32, i32
  }
  func.func @transform_1(%arg0: i32) -> (i32, i32) {
    %c0_i32 = arith.constant 0 : i32
    %c0_i32_0 = arith.constant 0 : i32
    %c0_i32_1 = arith.constant 0 : i32
    return %c0_i32, %c0_i32_0 : i32, i32
  }
  func.func @transform_2(%arg0: i32) -> (i32, i32) {
    %c0_i32 = arith.constant 0 : i32
    %c0_i32_0 = arith.constant 0 : i32
    %c0_i32_1 = arith.constant 0 : i32
    return %c0_i32, %c0_i32_0 : i32, i32
  }
  func.func @transform_3(%arg0: i32) -> (i32, i32) {
    %c0_i32 = arith.constant 0 : i32
    %c0_i32_0 = arith.constant 0 : i32
    %c0_i32_1 = arith.constant 0 : i32
    return %c0_i32, %c0_i32_0 : i32, i32
  }
  func.func @transform_4(%arg0: i32) -> (i32, i32) {
    %c0_i32 = arith.constant 0 : i32
    %c0_i32_0 = arith.constant 0 : i32
    %c0_i32_1 = arith.constant 0 : i32
    return %c0_i32, %c0_i32_0 : i32, i32
  }
  func.func @transform_5(%arg0: i32) -> (i32, i32, i32) {
    %c0_i32 = arith.constant 0 : i32
    %c0_i32_0 = arith.constant 0 : i32
    %c0_i32_1 = arith.constant 0 : i32
    return %arg0, %c0_i32, %c0_i32_0 : i32, i32, i32
  }
  func.func @transform_6(%arg0: i32) -> (i32, i32) {
    %c0_i32 = arith.constant 0 : i32
    %c0_i32_0 = arith.constant 0 : i32
    %c0_i32_1 = arith.constant 0 : i32
    return %c0_i32, %c0_i32_0 : i32, i32
  }
  func.func @transform_7(%arg0: i32) -> (i32, i32) {
    %c0_i32 = arith.constant 0 : i32
    %c0_i32_0 = arith.constant 0 : i32
    %c0_i32_1 = arith.constant 0 : i32
    return %c0_i32, %c0_i32_0 : i32, i32
  }
  func.func @transform_8(%arg0: i32) -> (i32, i32, i32) {
    %c0_i32 = arith.constant 0 : i32
    %c0_i32_0 = arith.constant 0 : i32
    %c0_i32_1 = arith.constant 0 : i32
    return %arg0, %c0_i32, %c0_i32_0 : i32, i32, i32
  }
  func.func @transform_9(%arg0: i32) -> (i32, i32, i32) {
    %c0_i32 = arith.constant 0 : i32
    %c0_i32_0 = arith.constant 0 : i32
    %c0_i32_1 = arith.constant 0 : i32
    return %arg0, %c0_i32, %c0_i32_0 : i32, i32, i32
  }
}

module attributes {stable_mosaic.version = 11 : i64} {
  func.func @_attention_kernel(%arg0: i32, %arg1: i32, %arg2: memref<1x1x8x8xf32, #tpu.memory_space<vmem>>, %arg3: memref<1x1x8x8xf32, #tpu.memory_space<vmem>>, %arg4: memref<1x1x8x8xf32, #tpu.memory_space<vmem>>, %arg5: memref<1x1x8xf32, #tpu.memory_space<vmem>>, %arg6: memref<1x1x8x8xf32, #tpu.memory_space<vmem>>) attributes {dimension_semantics = [#tpu.dimension_semantics<parallel>, #tpu.dimension_semantics<parallel>], iteration_bounds = array<i64: 2, 4>, scalar_prefetch = 0 : i64, scratch_operands = 0 : i64, tpu.core_type = #tpu.core_type<tc>, window_params = [{transform_indices = @transform_0, window_bounds = array<i64: 1, 1, 8, 8>}, {transform_indices = @transform_1, window_bounds = array<i64: 1, 1, 8, 8>}, {transform_indices = @transform_2, window_bounds = array<i64: 1, 1, 8, 8>}, {transform_indices = @transform_3, window_bounds = array<i64: 1, 1, 8>}, {transform_indices = @transform_4, window_bounds = array<i64: 1, 1, 8, 8>}]} {
    %c0 = arith.constant 0 : index
    %c0_0 = arith.constant 0 : index
    %c0_1 = arith.constant 0 : index
    %c0_2 = arith.constant 0 : index
    %0 = vector.load %arg2[%c0, %c0_0, %c0_1, %c0_2] : memref<1x1x8x8xf32, #tpu.memory_space<vmem>>, vector<1x1x8x8xf32>
    %1 = vector.shape_cast %0 : vector<1x1x8x8xf32> to vector<8x8xf32>
    %c0_3 = arith.constant 0 : index
    %c0_4 = arith.constant 0 : index
    %c0_5 = arith.constant 0 : index
    %c0_6 = arith.constant 0 : index
    %2 = vector.load %arg3[%c0_3, %c0_4, %c0_5, %c0_6] : memref<1x1x8x8xf32, #tpu.memory_space<vmem>>, vector<1x1x8x8xf32>
    %3 = vector.shape_cast %2 : vector<1x1x8x8xf32> to vector<8x8xf32>
    %c0_7 = arith.constant 0 : index
    %c0_8 = arith.constant 0 : index
    %c0_9 = arith.constant 0 : index
    %c0_10 = arith.constant 0 : index
    %4 = vector.load %arg4[%c0_7, %c0_8, %c0_9, %c0_10] : memref<1x1x8x8xf32, #tpu.memory_space<vmem>>, vector<1x1x8x8xf32>
    %5 = vector.shape_cast %4 : vector<1x1x8x8xf32> to vector<8x8xf32>
    %cst = arith.constant dense<0.000000e+00> : vector<8x8xf32>
    %6 = tpu.matmul %1, %3, %cst {dimension_numbers = #tpu.dot_dimension_numbers<[1], [1], [0], [0], [0, 0, 1, 0], [], []>} : vector<8x8xf32>, vector<8x8xf32>, vector<8x8xf32> -> vector<8x8xf32>
    %c0_11 = arith.constant 0 : index
    %c0_12 = arith.constant 0 : index
    %c0_13 = arith.constant 0 : index
    %7 = vector.load %arg5[%c0_11, %c0_12, %c0_13] : memref<1x1x8xf32, #tpu.memory_space<vmem>>, vector<1x1x8xf32>
    %8 = vector.shape_cast %7 : vector<1x1x8xf32> to vector<1x8xf32>
    %9 = vector.broadcast %8 : vector<1x8xf32> to vector<8x8xf32>
    %10 = arith.addf %6, %9 : vector<8x8xf32>
    %cst_14 = arith.constant dense<0xFF800000> : vector<8xf32>
    %11 = vector.multi_reduction <maximumf>, %10, %cst_14 [1] : vector<8x8xf32> to vector<8xf32>
    %12 = vector.shape_cast %11 : vector<8xf32> to vector<8x1xf32>
    %13 = vector.broadcast %12 : vector<8x1xf32> to vector<8x8xf32>
    %14 = arith.subf %10, %13 : vector<8x8xf32>
    %15 = math.exp %14 : vector<8x8xf32>
    %cst_15 = arith.constant dense<0.000000e+00> : vector<8xf32>
    %16 = vector.multi_reduction <add>, %15, %cst_15 [1] : vector<8x8xf32> to vector<8xf32>
    %17 = vector.shape_cast %16 : vector<8xf32> to vector<8x1xf32>
    %18 = tpu.reciprocal %17 : vector<8x1xf32> -> vector<8x1xf32>
    %19 = vector.broadcast %18 : vector<8x1xf32> to vector<8x8xf32>
    %20 = arith.mulf %15, %19 : vector<8x8xf32>
    %cst_16 = arith.constant dense<0.000000e+00> : vector<8x8xf32>
    %21 = tpu.matmul %20, %5, %cst_16 {dimension_numbers = #tpu.dot_dimension_numbers<[1], [0], [0], [1], [0, 0, 1, 1], [], []>} : vector<8x8xf32>, vector<8x8xf32>, vector<8x8xf32> -> vector<8x8xf32>
    %c0_17 = arith.constant 0 : index
    %c0_18 = arith.constant 0 : index
    %c0_19 = arith.constant 0 : index
    %c0_20 = arith.constant 0 : index
    %22 = vector.load %arg6[%c0_17, %c0_18, %c0_19, %c0_20] : memref<1x1x8x8xf32, #tpu.memory_space<vmem>>, vector<1x1x8x8xf32>
    %23 = vector.shape_cast %22 : vector<1x1x8x8xf32> to vector<8x8xf32>
    %24 = vector.shape_cast %21 : vector<8x8xf32> to vector<1x1x8x8xf32>
    tpu.vector_store %arg6[%c0_17, %c0_18, %c0_19, %c0_20], %24 {strides = array<i32>} : memref<1x1x8x8xf32, #tpu.memory_space<vmem>>, vector<1x1x8x8xf32>,
    return
  }
  func.func @transform_0(%arg0: i32, %arg1: i32) -> (i32, i32, i32, i32) {
    %c0_i32 = arith.constant 0 : i32
    %c0_i32_0 = arith.constant 0 : i32
    %c0_i32_1 = arith.constant 0 : i32
    return %arg0, %arg1, %c0_i32, %c0_i32_0 : i32, i32, i32, i32
  }
  func.func @transform_1(%arg0: i32, %arg1: i32) -> (i32, i32, i32, i32) {
    %c0_i32 = arith.constant 0 : i32
    %c0_i32_0 = arith.constant 0 : i32
    %c0_i32_1 = arith.constant 0 : i32
    return %arg0, %arg1, %c0_i32, %c0_i32_0 : i32, i32, i32, i32
  }
  func.func @transform_2(%arg0: i32, %arg1: i32) -> (i32, i32, i32, i32) {
    %c0_i32 = arith.constant 0 : i32
    %c0_i32_0 = arith.constant 0 : i32
    %c0_i32_1 = arith.constant 0 : i32
    return %arg0, %arg1, %c0_i32, %c0_i32_0 : i32, i32, i32, i32
  }
  func.func @transform_3(%arg0: i32, %arg1: i32) -> (i32, i32, i32) {
    %c0_i32 = arith.constant 0 : i32
    %c0_i32_0 = arith.constant 0 : i32
    %c0_i32_1 = arith.constant 0 : i32
    return %arg0, %c0_i32, %c0_i32_0 : i32, i32, i32
  }
  func.func @transform_4(%arg0: i32, %arg1: i32) -> (i32, i32, i32, i32) {
    %c0_i32 = arith.constant 0 : i32
    %c0_i32_0 = arith.constant 0 : i32
    %c0_i32_1 = arith.constant 0 : i32
    return %arg0, %arg1, %c0_i32, %c0_i32_0 : i32, i32, i32, i32
  }
}

module attributes {stable_mosaic.version = 11 : i64} {
  func.func @_ln_ffn_residual_kernel(%arg0: i32, %arg1: memref<1x8x32xf32, #tpu.memory_space<vmem>>, %arg2: memref<1x32xf32, #tpu.memory_space<vmem>>, %arg3: memref<1x32xf32, #tpu.memory_space<vmem>>, %arg4: memref<32x64xf32, #tpu.memory_space<vmem>>, %arg5: memref<1x64xf32, #tpu.memory_space<vmem>>, %arg6: memref<64x32xf32, #tpu.memory_space<vmem>>, %arg7: memref<1x32xf32, #tpu.memory_space<vmem>>, %arg8: memref<1x8x32xf32, #tpu.memory_space<vmem>>) attributes {dimension_semantics = [#tpu.dimension_semantics<parallel>], iteration_bounds = array<i64: 2>, scalar_prefetch = 0 : i64, scratch_operands = 0 : i64, tpu.core_type = #tpu.core_type<tc>, window_params = [{transform_indices = @transform_0, window_bounds = array<i64: 1, 8, 32>}, {pipeline_mode = #tpu.pipeline_mode<synchronous>, transform_indices = @transform_1, window_bounds = array<i64: 1, 32>}, {pipeline_mode = #tpu.pipeline_mode<synchronous>, transform_indices = @transform_2, window_bounds = array<i64: 1, 32>}, {pipeline_mode = #tpu.pipeline_mode<synchronous>, transform_indices = @transform_3, window_bounds = array<i64: 32, 64>}, {pipeline_mode = #tpu.pipeline_mode<synchronous>, transform_indices = @transform_4, window_bounds = array<i64: 1, 64>}, {pipeline_mode = #tpu.pipeline_mode<synchronous>, transform_indices = @transform_5, window_bounds = array<i64: 64, 32>}, {pipeline_mode = #tpu.pipeline_mode<synchronous>, transform_indices = @transform_6, window_bounds = array<i64: 1, 32>}, {transform_indices = @transform_7, window_bounds = array<i64: 1, 8, 32>}]} {
    %c0 = arith.constant 0 : index
    %c0_0 = arith.constant 0 : index
    %c0_1 = arith.constant 0 : index
    %0 = vector.load %arg1[%c0, %c0_0, %c0_1] : memref<1x8x32xf32, #tpu.memory_space<vmem>>, vector<1x8x32xf32>
    %1 = vector.shape_cast %0 : vector<1x8x32xf32> to vector<8x32xf32>
    %c0_2 = arith.constant 0 : index
    %c0_3 = arith.constant 0 : index
    %2 = vector.load %arg2[%c0_2, %c0_3] : memref<1x32xf32, #tpu.memory_space<vmem>>, vector<1x32xf32>
    %c0_4 = arith.constant 0 : index
    %c0_5 = arith.constant 0 : index
    %3 = vector.load %arg3[%c0_4, %c0_5] : memref<1x32xf32, #tpu.memory_space<vmem>>, vector<1x32xf32>
    %cst = arith.constant dense<0.000000e+00> : vector<8xf32>
    %4 = vector.multi_reduction <add>, %1, %cst [1] : vector<8x32xf32> to vector<8xf32>
    %5 = vector.shape_cast %4 : vector<8xf32> to vector<8x1xf32>
    %cst_6 = arith.constant 3.200000e+01 : f32
    %6 = vector.broadcast %cst_6 : f32 to vector<8x1xf32>
    %7 = arith.divf %5, %6 : vector<8x1xf32>
    %8 = vector.broadcast %7 : vector<8x1xf32> to vector<8x32xf32>
    %9 = arith.subf %1, %8 : vector<8x32xf32>
    %10 = arith.mulf %9, %9 : vector<8x32xf32>
    %cst_7 = arith.constant dense<0.000000e+00> : vector<8xf32>
    %11 = vector.multi_reduction <add>, %10, %cst_7 [1] : vector<8x32xf32> to vector<8xf32>
    %12 = vector.shape_cast %11 : vector<8xf32> to vector<8x1xf32>
    %cst_8 = arith.constant 3.100000e+01 : f32
    %13 = vector.broadcast %cst_8 : f32 to vector<8x1xf32>
    %14 = arith.divf %12, %13 : vector<8x1xf32>
    %15 = math.sqrt %14 : vector<8x1xf32>
    %cst_9 = arith.constant 1.000000e-07 : f32
    %16 = vector.broadcast %cst_9 : f32 to vector<8x1xf32>
    %17 = arith.addf %15, %16 : vector<8x1xf32>
    %18 = tpu.reciprocal %17 : vector<8x1xf32> -> vector<8x1xf32>
    %19 = vector.broadcast %18 : vector<8x1xf32> to vector<8x32xf32>
    %20 = arith.mulf %9, %19 : vector<8x32xf32>
    %21 = vector.broadcast %2 : vector<1x32xf32> to vector<8x32xf32>
    %22 = arith.mulf %21, %20 : vector<8x32xf32>
    %23 = vector.broadcast %3 : vector<1x32xf32> to vector<8x32xf32>
    %24 = arith.addf %22, %23 : vector<8x32xf32>
    %c0_10 = arith.constant 0 : index
    %c0_11 = arith.constant 0 : index
    %25 = vector.load %arg4[%c0_10, %c0_11] : memref<32x64xf32, #tpu.memory_space<vmem>>, vector<32x64xf32>
    %cst_12 = arith.constant dense<0.000000e+00> : vector<8x64xf32>
    %26 = tpu.matmul %24, %25, %cst_12 {dimension_numbers = #tpu.dot_dimension_numbers<[1], [0], [0], [1], [0, 0, 1, 1], [], []>} : vector<8x32xf32>, vector<32x64xf32>, vector<8x64xf32> -> vector<8x64xf32>
    %c0_13 = arith.constant 0 : index
    %c0_14 = arith.constant 0 : index
    %27 = vector.load %arg5[%c0_13, %c0_14] : memref<1x64xf32, #tpu.memory_space<vmem>>, vector<1x64xf32>
    %28 = vector.broadcast %27 : vector<1x64xf32> to vector<8x64xf32>
    %29 = arith.addf %26, %28 : vector<8x64xf32>
    %cst_15 = arith.constant 0.000000e+00 : f32
    %30 = vector.broadcast %cst_15 : f32 to vector<8x64xf32>
    %31 = arith.maximumf %29, %30 : vector<8x64xf32>
    %c0_16 = arith.constant 0 : index
    %c0_17 = arith.constant 0 : index
    %32 = vector.load %arg6[%c0_16, %c0_17] : memref<64x32xf32, #tpu.memory_space<vmem>>, vector<64x32xf32>
    %cst_18 = arith.constant dense<0.000000e+00> : vector<8x32xf32>
    %33 = tpu.matmul %31, %32, %cst_18 {dimension_numbers = #tpu.dot_dimension_numbers<[1], [0], [0], [1], [0, 0, 1, 1], [], []>} : vector<8x64xf32>, vector<64x32xf32>, vector<8x32xf32> -> vector<8x32xf32>
    %c0_19 = arith.constant 0 : index
    %c0_20 = arith.constant 0 : index
    %34 = vector.load %arg7[%c0_19, %c0_20] : memref<1x32xf32, #tpu.memory_space<vmem>>, vector<1x32xf32>
    %35 = vector.broadcast %34 : vector<1x32xf32> to vector<8x32xf32>
    %36 = arith.addf %33, %35 : vector<8x32xf32>
    %37 = arith.addf %1, %36 : vector<8x32xf32>
    %c0_21 = arith.constant 0 : index
    %c0_22 = arith.constant 0 : index
    %c0_23 = arith.constant 0 : index
    %38 = vector.load %arg8[%c0_21, %c0_22, %c0_23] : memref<1x8x32xf32, #tpu.memory_space<vmem>>, vector<1x8x32xf32>
    %39 = vector.shape_cast %38 : vector<1x8x32xf32> to vector<8x32xf32>
    %40 = vector.shape_cast %37 : vector<8x32xf32> to vector<1x8x32xf32>
    tpu.vector_store %arg8[%c0_21, %c0_22, %c0_23], %40 {strides = array<i32>} : memref<1x8x32xf32, #tpu.memory_space<vmem>>, vector<1x8x32xf32>,
    return
  }
  func.func @transform_0(%arg0: i32) -> (i32, i32, i32) {
    %c0_i32 = arith.constant 0 : i32
    %c0_i32_0 = arith.constant 0 : i32
    %c0_i32_1 = arith.constant 0 : i32
    return %arg0, %c0_i32, %c0_i32_0 : i32, i32, i32
  }
  func.func @transform_1(%arg0: i32) -> (i32, i32) {
    %c0_i32 = arith.constant 0 : i32
    %c0_i32_0 = arith.constant 0 : i32
    %c0_i32_1 = arith.constant 0 : i32
    return %c0_i32, %c0_i32_0 : i32, i32
  }
  func.func @transform_2(%arg0: i32) -> (i32, i32) {
    %c0_i32 = arith.constant 0 : i32
    %c0_i32_0 = arith.constant 0 : i32
    %c0_i32_1 = arith.constant 0 : i32
    return %c0_i32, %c0_i32_0 : i32, i32
  }
  func.func @transform_3(%arg0: i32) -> (i32, i32) {
    %c0_i32 = arith.constant 0 : i32
    %c0_i32_0 = arith.constant 0 : i32
    %c0_i32_1 = arith.constant 0 : i32
    return %c0_i32, %c0_i32_0 : i32, i32
  }
  func.func @transform_4(%arg0: i32) -> (i32, i32) {
    %c0_i32 = arith.constant 0 : i32
    %c0_i32_0 = arith.constant 0 : i32
    %c0_i32_1 = arith.constant 0 : i32
    return %c0_i32, %c0_i32_0 : i32, i32
  }
  func.func @transform_5(%arg0: i32) -> (i32, i32) {
    %c0_i32 = arith.constant 0 : i32
    %c0_i32_0 = arith.constant 0 : i32
    %c0_i32_1 = arith.constant 0 : i32
    return %c0_i32, %c0_i32_0 : i32, i32
  }
  func.func @transform_6(%arg0: i32) -> (i32, i32) {
    %c0_i32 = arith.constant 0 : i32
    %c0_i32_0 = arith.constant 0 : i32
    %c0_i32_1 = arith.constant 0 : i32
    return %c0_i32, %c0_i32_0 : i32, i32
  }
  func.func @transform_7(%arg0: i32) -> (i32, i32, i32) {
    %c0_i32 = arith.constant 0 : i32
    %c0_i32_0 = arith.constant 0 : i32
    %c0_i32_1 = arith.constant 0 : i32
    return %arg0, %c0_i32, %c0_i32_0 : i32, i32, i32
  }
}

</mosaic_0001>

<llo_original>
// kernel: decoder_layer.7
$region0: #{decoder_layer.7}
  #allocation0 [shape = 'u32[]', space=smem, size = 0x4, offset = 0x4, fixed_abs, tag = 'smem constant byte address 0x4 - core index']
  #allocation1 [shape = 'u32[72,128]{1,0:T(1,128)}', space=vmem, size = 0x9000, scoped, tag = 'internal scratch']
  %s0 = inlined_call_operand.vmem [shape: f32[2,8,32], index: 0, kind: input, shape index: {}]
  %s1 = inlined_call_operand.vmem [shape: f32[1,32], index: 1, kind: input, shape index: {}]
  %s2 = inlined_call_operand.vmem [shape: f32[1,32], index: 2, kind: input, shape index: {}]
  %s3 = inlined_call_operand.vmem [shape: f32[32,96], index: 3, kind: input, shape index: {}]
  %s4 = inlined_call_operand.vmem [shape: f32[1,96], index: 4, kind: input, shape index: {}]
  %s5 = inlined_call_operand.vmem [shape: f32[2,8,96], index: 5, kind: output, shape index: {}]
  %s6 = sld [smem:[#allocation0]]
  $region53: #{decoder_layer.7} parent=0
    _
  %s8 = ssub.s32 1, %s6
  %s9 = scalar_select 0, %s8, %s6
  loop: start=0, step=1, limit=4
  $region2: #{decoder_layer.7} parent=0 // loop_pre_header
    _
  $region3: #{decoder_layer.7} parent=0 // loop_header
    %s11 = sphi 0, %s15
    %p12 = scmp.ge.s32.totalorder %s11, 4
    %s21 = sphi 0, %s23
    %s24 = sphi 0, %s21
    %s25 = sphi 0, %s24
    %s41 = sphi 0, %s25
    %s45 = sphi 0, %s45
    %s47 = sphi 0, %s45
    %s48 = sphi 0, %s47
    %s62 = sphi 0, %s48
    %s66 = sphi 0, %s66
    %s68 = sphi 0, %s66
    %s69 = sphi 0, %s68
    %s83 = sphi 0, %s69
    %s87 = sphi 0, %s87
    %s89 = sphi 0, %s87
    %s90 = sphi 0, %s89
    %s104 = sphi 0, %s90
    %s108 = sphi 0, %s108
    %s110 = sphi 0, %s108
    %s111 = sphi 0, %s110
    %s125 = sphi 0, %s111
    %s131 = sphi 0, %s133
    %s134 = sphi 0, %s131
    %s135 = sphi 0, %s134
    %s151 = sphi 0, %s135
  $region4: #{decoder_layer.7} parent=0 // loop_header_branch
    %14 = sbr.rel (%p12) target = $region8
  $region5: #{decoder_layer.7} parent=0 // loop_body
    %s16 = ssub.s32 %s11, 1
    %s17 = ssub.s32 %s11, 2
    %s18 = sadd.s32 %s11, 1
    %s19 = ssub.s32 %s11, %s18
    %p20 = scmp.eq.s32.totalorder %s19, 0
    %s22 = sadd.s32 %s21, 1
    %s23 = scalar_select %p20, %s21, %s22
    %p26 = pneg %p20
    %p27 = scmp.eq.s32.totalorder %s11, 1
    %p28 = por %p26, %p27
    %p29 = scmp.ne.s32.totalorder %s21, %s24
    %p30 = scmp.eq.s32.totalorder %s11, 0
    %p31 = por %p29, %p30
    %p32 = scmp.ne.s32.totalorder %s21, %s24
    %p33 = scmp.eq.s32.totalorder %s16, 1
    %p34 = por %p32, %p33
    %p35 = scmp.ne.s32.totalorder %s24, %s25
    %p36 = scmp.eq.s32.totalorder %s16, 0
    %p37 = por %p35, %p36
    %p38 = scmp.ne.s32.totalorder %s24, %s25
    %p39 = scmp.eq.s32.totalorder %s17, 1
    %p40 = por %p38, %p39
    %p42 = scmp.ne.s32.totalorder %s25, %s41
    %p43 = scmp.eq.s32.totalorder %s17, 0
    %p44 = por %p42, %p43
    %s46 = sadd.s32 %s45, 1
    %p49 = scmp.eq.s32.totalorder %s11, 1
    %p50 = scmp.ne.s32.totalorder %s45, %s47
    %p51 = scmp.eq.s32.totalorder %s11, 0
    %p52 = por %p50, %p51
    %p53 = scmp.ne.s32.totalorder %s45, %s47
    %p54 = scmp.eq.s32.totalorder %s16, 1
    %p55 = por %p53, %p54
    %p56 = scmp.ne.s32.totalorder %s47, %s48
    %p57 = scmp.eq.s32.totalorder %s16, 0
    %p58 = por %p56, %p57
    %p59 = scmp.ne.s32.totalorder %s47, %s48
    %p60 = scmp.eq.s32.totalorder %s17, 1
    %p61 = por %p59, %p60
    %p63 = scmp.ne.s32.totalorder %s48, %s62
    %p64 = scmp.eq.s32.totalorder %s17, 0
    %p65 = por %p63, %p64
    %s67 = sadd.s32 %s66, 1
    %p70 = scmp.eq.s32.totalorder %s11, 1
    %p71 = scmp.ne.s32.totalorder %s66, %s68
    %p72 = scmp.eq.s32.totalorder %s11, 0
    %p73 = por %p71, %p72
    %p74 = scmp.ne.s32.totalorder %s66, %s68
    %p75 = scmp.eq.s32.totalorder %s16, 1
    %p76 = por %p74, %p75
    %p77 = scmp.ne.s32.totalorder %s68, %s69
    %p78 = scmp.eq.s32.totalorder %s16, 0
    %p79 = por %p77, %p78
    %p80 = scmp.ne.s32.totalorder %s68, %s69
    %p81 = scmp.eq.s32.totalorder %s17, 1
    %p82 = por %p80, %p81
    %p84 = scmp.ne.s32.totalorder %s69, %s83
    %p85 = scmp.eq.s32.totalorder %s17, 0
    %p86 = por %p84, %p85
    %s88 = sadd.s32 %s87, 1
    %p91 = scmp.eq.s32.totalorder %s11, 1
    %p92 = scmp.ne.s32.totalorder %s87, %s89
    %p93 = scmp.eq.s32.totalorder %s11, 0
    %p94 = por %p92, %p93
    %p95 = scmp.ne.s32.totalorder %s87, %s89
    %p96 = scmp.eq.s32.totalorder %s16, 1
    %p97 = por %p95, %p96
    %p98 = scmp.ne.s32.totalorder %s89, %s90
    %p99 = scmp.eq.s32.totalorder %s16, 0
    %p100 = por %p98, %p99
    %p101 = scmp.ne.s32.totalorder %s89, %s90
    %p102 = scmp.eq.s32.totalorder %s17, 1
    %p103 = por %p101, %p102
    %p105 = scmp.ne.s32.totalorder %s90, %s104
    %p106 = scmp.eq.s32.totalorder %s17, 0
    %p107 = por %p105, %p106
    %s109 = sadd.s32 %s108, 1
    %p112 = scmp.eq.s32.totalorder %s11, 1
    %p113 = scmp.ne.s32.totalorder %s108, %s110
    %p114 = scmp.eq.s32.totalorder %s11, 0
    %p115 = por %p113, %p114
    %p116 = scmp.ne.s32.totalorder %s108, %s110
    %p117 = scmp.eq.s32.totalorder %s16, 1
    %p118 = por %p116, %p117
    %p119 = scmp.ne.s32.totalorder %s110, %s111
    %p120 = scmp.eq.s32.totalorder %s16, 0
    %p121 = por %p119, %p120
    %p122 = scmp.ne.s32.totalorder %s110, %s111
    %p123 = scmp.eq.s32.totalorder %s17, 1
    %p124 = por %p122, %p123
    %p126 = scmp.ne.s32.totalorder %s111, %s125
    %p127 = scmp.eq.s32.totalorder %s17, 0
    %p128 = por %p126, %p127
    %s129 = ssub.s32 %s11, %s18
    %p130 = scmp.eq.s32.totalorder %s129, 0
    %s132 = sadd.s32 %s131, 1
    %s133 = scalar_select %p130, %s131, %s132
    %p136 = pneg %p130
    %p137 = scmp.eq.s32.totalorder %s11, 1
    %p138 = por %p136, %p137
    %p139 = scmp.ne.s32.totalorder %s131, %s134
    %p140 = scmp.eq.s32.totalorder %s11, 0
    %p141 = por %p139, %p140
    %p142 = scmp.ne.s32.totalorder %s131, %s134
    %p143 = scmp.eq.s32.totalorder %s16, 1
    %p144 = por %p142, %p143
    %p145 = scmp.ne.s32.totalorder %s134, %s135
    %p146 = scmp.eq.s32.totalorder %s16, 0
    %p147 = por %p145, %p146
    %p148 = scmp.ne.s32.totalorder %s134, %s135
    %p149 = scmp.eq.s32.totalorder %s17, 1
    %p150 = por %p148, %p149
    %p152 = scmp.ne.s32.totalorder %s135, %s151
    %p153 = scmp.eq.s32.totalorder %s17, 0
    %p154 = por %p152, %p153
    %p155 = scmp.le.s32.totalorder 1, %s11
    %p156 = scmp.lt.s32.totalorder %s11, 3
    %p157 = pnand %p155, %p156
    %p158 = pneg %p157
    // Predicated region
    $region9: #{decoder_layer.7} parent=5 // pred_check
      _
    $region10: #{decoder_layer.7} parent=5 // pred_check_branch
      %160 = sbr.rel (%p157) target = $region12
    $region11: #{decoder_layer.7} parent=5 // pred_region
      %s161 = ssub.s32 %s11, 1
      // Predicated region
      $region13: #{decoder_layer.7} parent=11 // pred_check
        %p162 = pneg %p58
      $region14: #{decoder_layer.7} parent=11 // pred_check_branch
        %164 = sbr.rel (%p162) target = $region16
      $region15: #{decoder_layer.7} parent=11 // pred_region
        _
      $region16: #{decoder_layer.7} parent=11 // pred_fallthru
        _
      // Predicated region
      $region17: #{decoder_layer.7} parent=11 // pred_check
        %p165 = pneg %p79
      $region18: #{decoder_layer.7} parent=11 // pred_check_branch
        %167 = sbr.rel (%p165) target = $region20
      $region19: #{decoder_layer.7} parent=11 // pred_region
        _
      $region20: #{decoder_layer.7} parent=11 // pred_fallthru
        _
      // Predicated region
      $region21: #{decoder_layer.7} parent=11 // pred_check
        %p168 = pneg %p100
      $region22: #{decoder_layer.7} parent=11 // pred_check_branch
        %170 = sbr.rel (%p168) target = $region24
      $region23: #{decoder_layer.7} parent=11 // pred_region
        _
      $region24: #{decoder_layer.7} parent=11 // pred_fallthru
        _
      // Predicated region
      $region25: #{decoder_layer.7} parent=11 // pred_check
        %p171 = pneg %p121
      $region26: #{decoder_layer.7} parent=11 // pred_check_branch
        %173 = sbr.rel (%p171) target = $region28
      $region27: #{decoder_layer.7} parent=11 // pred_region
        _
      $region28: #{decoder_layer.7} parent=11 // pred_fallthru
        _
    $region12: #{decoder_layer.7} parent=5 // pred_fallthru
      _
    %p174 = scmp.lt.s32.totalorder %s11, 2
    // Predicated region
    $region29: #{decoder_layer.7} parent=5 // pred_check
      %p175 = pneg %p174
    $region30: #{decoder_layer.7} parent=5 // pred_check_branch
      %177 = sbr.rel (%p175) target = $region32
    $region31: #{decoder_layer.7} parent=5 // pred_region
      // Predicated region
      $region33: #{decoder_layer.7} parent=31 // pred_check
        %p178 = pneg %p31
      $region34: #{decoder_layer.7} parent=31 // pred_check_branch
        %180 = sbr.rel (%p178) target = $region36
      $region35: #{decoder_layer.7} parent=31 // pred_region
        %p181 = scmp.lt.s32.totalorder %s11, 1
        %s182 = scalar_select %p181, %s11, 1
        %s183 = smul.addr %s182, 8
        %s184 = scalar_lea.vmem %s0, %s183
      $region36: #{decoder_layer.7} parent=31 // pred_fallthru
        _
    $region32: #{decoder_layer.7} parent=5 // pred_fallthru
      _
    %p185 = scmp.le.s32.totalorder 1, %s11
    %p186 = scmp.lt.s32.totalorder %s11, 3
    %p187 = pnand %p185, %p186
    %p188 = pneg %p187
    // Predicated region
    $region37: #{decoder_layer.7} parent=5 // pred_check
      _
    $region38: #{decoder_layer.7} parent=5 // pred_check_branch
      %190 = sbr.rel (%p187) target = $region40
    $region39: #{decoder_layer.7} parent=5 // pred_region
      %s191 = ssub.s32 %s11, 1
      %p192 = scmp.lt.s32.totalorder %s16, 1
      %s193 = scalar_select %p192, %s16, 1
      %s194 = smul.addr %s193, 8
      %s195 = scalar_lea.vmem %s0, %s194
      %p196 = pneg %p37
      %p197 = pneg %p34
      %p198 = pneg %p58
      %p199 = pneg %p55
      %p200 = pneg %p79
      %p201 = pneg %p76
      %p202 = pneg %p100
      %p203 = pneg %p97
      %p204 = pneg %p121
      %p205 = pneg %p118
      %p206 = pneg %p147
      %p207 = pneg %p144
      %p208 = scmp.lt.s32.totalorder %s16, 1
      %s209 = scalar_select %p208, %s16, 1
      %s210 = smul.addr %s209, 8
      %s211 = scalar_lea.vmem %s5, %s210
      %p212 = scmp.lt.s32.totalorder %s16, 1
      %s213 = scalar_select %p212, %s16, 1
      %s214 = smul.addr %s213, 8
      %s215 = scalar_lea.vmem %s0, %s214
      %p216 = scmp.lt.s32.totalorder %s16, 1
      %s217 = scalar_select %p216, %s16, 1
      %s218 = smul.addr %s217, 8
      %s219 = scalar_lea.vmem %s5, %s218
      %v220 = vld [vmem:[%s215] sm:$0xff]
      %v221 = vld [vmem:[%s1] sm:$0x1]
      %v222 = vld [vmem:[%s2] sm:$0x1]
      %vm223 = vcmask 261120
      %v224 = vsel %vm223, %v220, 0.0
      %225 = vadd.xlane.f32.xlu0 %v224
      %v226 = vpop.xlane.xlu0 %225
      %v227 = vrcp.pop 32.0
      %v228 = vmul.f32 32.0, %v227
      %v229 = vsub.f32 1.0, %v228
      %v230 = vmul.f32 %v227, %v229
      %v231 = vadd.f32 %v227, %v230
      %vm232 = vweird.f32 %v227
      %v233 = vsel %vm232, %v227, %v231
      %v234 = vmul.f32 %v226, %v233
      %v235 = vsub.f32 %v220, %v234
      %v236 = vmul.f32 %v235, %v235
      %v237 = vsel %vm223, %v236, 0.0
      %238 = vadd.xlane.f32.xlu0 %v237
      %v239 = vpop.xlane.xlu0 %238
      %v240 = vrcp.pop 31.0
      %v241 = vmul.f32 31.0, %v240
      %v242 = vsub.f32 1.0, %v241
      %v243 = vmul.f32 %v240, %v242
      %v244 = vadd.f32 %v240, %v243
      %vm245 = vweird.f32 %v240
      %v246 = vsel %vm245, %v240, %v244
      %v247 = vmul.f32 %v239, %v246
      %v248 = vrsqrt.pop %v247
      %v249 = vmul.f32 %v248, %v247
      %v250 = vmul.f32 %v249, %v248
      %v251 = vmul.f32 0.5, %v250
      %v252 = vsub.f32 1.5, %v251
      %v253 = vmul.f32 %v248, %v252
      %v254 = vmul.f32 %v247, %v253
      %vm255 = vcmp.eq.f32.partialorder %v247, inf
      %v256 = vsel %vm255, %v247, %v254
      %vm257 = vcmp.eq.f32.partialorder %v247, 0.0
      %v258 = vand.u32 %v247, 2147483648
      %v259 = vsel %vm257, %v258, %v256
      %v260 = vadd.f32 %v259, 1e-07
      %v261 = vrcp.pop %v260
      %v262 = vmul.f32 %v260, %v261
      %v263 = vsub.f32 1.0, %v262
      %v264 = vmul.f32 %v261, %v263
      %v265 = vadd.f32 %v261, %v264
      %vm266 = vweird.f32 %v260
      %vm267 = vweird.f32 %v261
      %vm268 = vmor %vm266, %vm267
      %v269 = vsel %vm268, %v261, %v265
      %v270 = vand.u32 2147483647, %v260
      %vm271 = vcmp.eq.f32.partialorder %v270, 8.507059e+37
      %v272 = vand.u32 %v260, 2147483648
      %v273 = vor.u32 1.1754944e-38, %v272
      %v274 = vsel %vm271, %v273, %v269
      %v275 = vmul.f32 %v235, %v274
      %v277 = vperm.slane %v221, 0
      %v279 = vmul.f32 %v277, %v275
      %v281 = vperm.slane %v222, 0
      %v283 = vadd.f32 %v279, %v281
      %v284 = vld [vmem:[%s3] sm:$0xff]
      %v285 = vld [vmem:[%s3 + $0x8] sm:$0xff]
      %v286 = vld [vmem:[%s3 + $0x10] sm:$0xff]
      %v287 = vld [vmem:[%s3 + $0x18] sm:$0xff]
      %v288 = vld [vmem:[%s4] sm:$0x1]
      %v290 = vperm.slane %v288, 0
      %v293 = vsel %vm223, %v283, 0
      %295 = vmatpush.msra.mxu0 0.0
      %296 = vmatpush.msra.mxu0 0.0
      %297 = vmatpush.msra.mxu0 0.0
      %298 = vmatpush.msra.mxu0 0.0
      %299 = vmatpush.msra.mxu0 0.0
      %300 = vmatpush.msra.mxu0 0.0
      %301 = vmatpush.msra.mxu0 0.0
      %302 = vmatpush.msra.mxu0 0.0
      %303 = vmatpush.msra.mxu0 0.0
      %304 = vmatpush.msra.mxu0 0.0
      %305 = vmatpush.msra.mxu0 0.0
      %306 = vmatpush.msra.mxu0 0.0
      %307 = vmatpush.msra.mxu0 %v287
      %308 = vmatpush.msra.mxu0 %v286
      %309 = vmatpush.msra.mxu0 %v285
      %310 = vmatpush.msra.mxu0 %v284
      %311 = vmatmul.f32.gmra.mxu0 %v293
      %v312 = vpop.f32.mrf.mxu0
      %v313 = vadd.f32 %v290, %v312
      %314 = vdwg.mxu0
      %vm315 = vcmask 785408
      %316 = vst.msk [vmem:[%s219] sm:$0xff] %vm315, %v313
      %p317 = scmp.lt.s32.totalorder %s16, 1
      %s318 = scalar_select %p317, %s16, 1
      %s319 = smul.addr %s318, 8
      %s320 = scalar_lea.vmem %s5, %s319
      // Predicated region
      $region41: #{decoder_layer.7} parent=39 // pred_check
        %p321 = pneg %p144
      $region42: #{decoder_layer.7} parent=39 // pred_check_branch
        %323 = sbr.rel (%p321) target = $region44
      $region43: #{decoder_layer.7} parent=39 // pred_region
        _
      $region44: #{decoder_layer.7} parent=39 // pred_fallthru
        _
    $region40: #{decoder_layer.7} parent=5 // pred_fallthru
      _
    %p324 = scmp.le.s32.totalorder 2, %s11
    // Predicated region
    $region45: #{decoder_layer.7} parent=5 // pred_check
      %p325 = pneg %p324
    $region46: #{decoder_layer.7} parent=5 // pred_check_branch
      %327 = sbr.rel (%p325) target = $region48
    $region47: #{decoder_layer.7} parent=5 // pred_region
      %s328 = ssub.s32 %s11, 2
      // Predicated region
      $region49: #{decoder_layer.7} parent=47 // pred_check
        %p329 = pneg %p150
      $region50: #{decoder_layer.7} parent=47 // pred_check_branch
        %331 = sbr.rel (%p329) target = $region52
      $region51: #{decoder_layer.7} parent=47 // pred_region
        %p332 = scmp.lt.s32.totalorder %s17, 1
        %s333 = scalar_select %p332, %s17, 1
        %s334 = smul.addr %s333, 8
        %s335 = scalar_lea.vmem %s5, %s334
      $region52: #{decoder_layer.7} parent=47 // pred_fallthru
        _
    $region48: #{decoder_layer.7} parent=5 // pred_fallthru
      _
  $region6: #{decoder_layer.7} parent=0 // loop_footer
    %s15 = sadd.s32 1, %s11
  $region7: #{decoder_layer.7} parent=0 // loop_footer_branch
    %10 = sbr.rel target = $region3
  $region8: #{decoder_layer.7} parent=0 // loop_exit
    _

// kernel: decoder_layer.8
$region0: #{decoder_layer.8}
  #allocation0 [shape = 'u32[]', space=smem, size = 0x4, offset = 0x4, fixed_abs, tag = 'smem constant byte address 0x4 - core index']
  #allocation1 [shape = 'u32[72,128]{1,0:T(1,128)}', space=vmem, size = 0x9000, scoped, tag = 'internal scratch']
  %s0 = inlined_call_operand.vmem [shape: f32[2,4,8,8], index: 0, kind: input, shape index: {}]
  %s1 = inlined_call_operand.vmem [shape: f32[2,4,8,8], index: 1, kind: input, shape index: {}]
  %s2 = inlined_call_operand.vmem [shape: f32[2,4,8,8], index: 2, kind: input, shape index: {}]
  %s3 = inlined_call_operand.vmem [shape: f32[2,8,8], index: 3, kind: input, shape index: {}]
  %s4 = inlined_call_operand.vmem [shape: f32[2,4,8,8], index: 4, kind: output, shape index: {}]
  %s5 = sld [smem:[#allocation0]]
  $region49: #{decoder_layer.8} parent=0
    _
  %s7 = ssub.s32 1, %s5
  %s8 = scalar_select 0, %s7, %s5
  loop: start=0, step=1, limit=10
  $region2: #{decoder_layer.8} parent=0 // loop_pre_header
    _
  $region3: #{decoder_layer.8} parent=0 // loop_header
    %s10 = sphi 0, %s14
    %p11 = scmp.ge.s32.totalorder %s10, 10
    %s17 = sphi 0, %s29
    %s18 = sphi 0, %s25
    %s19 = sphi 0, %s17
    %s20 = sphi 0, %s18
    %s21 = sphi 0, %s19
    %s22 = sphi 0, %s20
    %s34 = sphi 0, %s36
    %s37 = sphi 0, %s34
    %s38 = sphi 0, %s37
    %s54 = sphi 0, %s38
    %s62 = sphi 0, %s64
    %s65 = sphi 0, %s62
    %s66 = sphi 0, %s65
    %s82 = sphi 0, %s66
    %s90 = sphi 0, %s92
    %s93 = sphi 0, %s90
    %s94 = sphi 0, %s93
    %s110 = sphi 0, %s94
    %s116 = sphi 0, %s118
    %s119 = sphi 0, %s116
    %s120 = sphi 0, %s119
    %s136 = sphi 0, %s120
    %s144 = sphi 0, %s146
    %s147 = sphi 0, %s144
    %s148 = sphi 0, %s147
    %s164 = sphi 0, %s148
  $region4: #{decoder_layer.8} parent=0 // loop_header_branch
    %13 = sbr.rel (%p11) target = $region8
  $region5: #{decoder_layer.8} parent=0 // loop_body
    %s15 = ssub.s32 %s10, 1
    %s16 = ssub.s32 %s10, 2
    %s23 = sadd.s32 1, %s18
    %p24 = scmp.ge.s32.totalorder %s23, 4
    %s25 = scalar_select %p24, 0, %s23
    %s26 = sadd.s32 1, %s17
    %s27 = scalar_select %p24, %s26, %s17
    %p28 = scmp.ge.s32.totalorder %s27, 2
    %s29 = scalar_select %p28, 0, %s27
    %s30 = ssub.s32 %s17, %s29
    %s31 = ssub.s32 %s18, %s25
    %s32 = sor.u32 %s30, %s31
    %p33 = scmp.eq.s32.totalorder %s32, 0
    %s35 = sadd.s32 %s34, 1
    %s36 = scalar_select %p33, %s34, %s35
    %p39 = pneg %p33
    %p40 = scmp.eq.s32.totalorder %s10, 7
    %p41 = por %p39, %p40
    %p42 = scmp.ne.s32.totalorder %s34, %s37
    %p43 = scmp.eq.s32.totalorder %s10, 0
    %p44 = por %p42, %p43
    %p45 = scmp.ne.s32.totalorder %s34, %s37
    %p46 = scmp.eq.s32.totalorder %s15, 7
    %p47 = por %p45, %p46
    %p48 = scmp.ne.s32.totalorder %s37, %s38
    %p49 = scmp.eq.s32.totalorder %s15, 0
    %p50 = por %p48, %p49
    %p51 = scmp.ne.s32.totalorder %s37, %s38
    %p52 = scmp.eq.s32.totalorder %s16, 7
    %p53 = por %p51, %p52
    %p55 = scmp.ne.s32.totalorder %s38, %s54
    %p56 = scmp.eq.s32.totalorder %s16, 0
    %p57 = por %p55, %p56
    %s58 = ssub.s32 %s17, %s29
    %s59 = ssub.s32 %s18, %s25
    %s60 = sor.u32 %s58, %s59
    %p61 = scmp.eq.s32.totalorder %s60, 0
    %s63 = sadd.s32 %s62, 1
    %s64 = scalar_select %p61, %s62, %s63
    %p67 = pneg %p61
    %p68 = scmp.eq.s32.totalorder %s10, 7
    %p69 = por %p67, %p68
    %p70 = scmp.ne.s32.totalorder %s62, %s65
    %p71 = scmp.eq.s32.totalorder %s10, 0
    %p72 = por %p70, %p71
    %p73 = scmp.ne.s32.totalorder %s62, %s65
    %p74 = scmp.eq.s32.totalorder %s15, 7
    %p75 = por %p73, %p74
    %p76 = scmp.ne.s32.totalorder %s65, %s66
    %p77 = scmp.eq.s32.totalorder %s15, 0
    %p78 = por %p76, %p77
    %p79 = scmp.ne.s32.totalorder %s65, %s66
    %p80 = scmp.eq.s32.totalorder %s16, 7
    %p81 = por %p79, %p80
    %p83 = scmp.ne.s32.totalorder %s66, %s82
    %p84 = scmp.eq.s32.totalorder %s16, 0
    %p85 = por %p83, %p84
    %s86 = ssub.s32 %s17, %s29
    %s87 = ssub.s32 %s18, %s25
    %s88 = sor.u32 %s86, %s87
    %p89 = scmp.eq.s32.totalorder %s88, 0
    %s91 = sadd.s32 %s90, 1
    %s92 = scalar_select %p89, %s90, %s91
    %p95 = pneg %p89
    %p96 = scmp.eq.s32.totalorder %s10, 7
    %p97 = por %p95, %p96
    %p98 = scmp.ne.s32.totalorder %s90, %s93
    %p99 = scmp.eq.s32.totalorder %s10, 0
    %p100 = por %p98, %p99
    %p101 = scmp.ne.s32.totalorder %s90, %s93
    %p102 = scmp.eq.s32.totalorder %s15, 7
    %p103 = por %p101, %p102
    %p104 = scmp.ne.s32.totalorder %s93, %s94
    %p105 = scmp.eq.s32.totalorder %s15, 0
    %p106 = por %p104, %p105
    %p107 = scmp.ne.s32.totalorder %s93, %s94
    %p108 = scmp.eq.s32.totalorder %s16, 7
    %p109 = por %p107, %p108
    %p111 = scmp.ne.s32.totalorder %s94, %s110
    %p112 = scmp.eq.s32.totalorder %s16, 0
    %p113 = por %p111, %p112
    %s114 = ssub.s32 %s17, %s29
    %p115 = scmp.eq.s32.totalorder %s114, 0
    %s117 = sadd.s32 %s116, 1
    %s118 = scalar_select %p115, %s116, %s117
    %p121 = pneg %p115
    %p122 = scmp.eq.s32.totalorder %s10, 7
    %p123 = por %p121, %p122
    %p124 = scmp.ne.s32.totalorder %s116, %s119
    %p125 = scmp.eq.s32.totalorder %s10, 0
    %p126 = por %p124, %p125
    %p127 = scmp.ne.s32.totalorder %s116, %s119
    %p128 = scmp.eq.s32.totalorder %s15, 7
    %p129 = por %p127, %p128
    %p130 = scmp.ne.s32.totalorder %s119, %s120
    %p131 = scmp.eq.s32.totalorder %s15, 0
    %p132 = por %p130, %p131
    %p133 = scmp.ne.s32.totalorder %s119, %s120
    %p134 = scmp.eq.s32.totalorder %s16, 7
    %p135 = por %p133, %p134
    %p137 = scmp.ne.s32.totalorder %s120, %s136
    %p138 = scmp.eq.s32.totalorder %s16, 0
    %p139 = por %p137, %p138
    %s140 = ssub.s32 %s17, %s29
    %s141 = ssub.s32 %s18, %s25
    %s142 = sor.u32 %s140, %s141
    %p143 = scmp.eq.s32.totalorder %s142, 0
    %s145 = sadd.s32 %s144, 1
    %s146 = scalar_select %p143, %s144, %s145
    %p149 = pneg %p143
    %p150 = scmp.eq.s32.totalorder %s10, 7
    %p151 = por %p149, %p150
    %p152 = scmp.ne.s32.totalorder %s144, %s147
    %p153 = scmp.eq.s32.totalorder %s10, 0
    %p154 = por %p152, %p153
    %p155 = scmp.ne.s32.totalorder %s144, %s147
    %p156 = scmp.eq.s32.totalorder %s15, 7
    %p157 = por %p155, %p156
    %p158 = scmp.ne.s32.totalorder %s147, %s148
    %p159 = scmp.eq.s32.totalorder %s15, 0
    %p160 = por %p158, %p159
    %p161 = scmp.ne.s32.totalorder %s147, %s148
    %p162 = scmp.eq.s32.totalorder %s16, 7
    %p163 = por %p161, %p162
    %p165 = scmp.ne.s32.totalorder %s148, %s164
    %p166 = scmp.eq.s32.totalorder %s16, 0
    %p167 = por %p165, %p166
    %p168 = scmp.le.s32.totalorder 1, %s10
    %p169 = scmp.lt.s32.totalorder %s10, 9
    %p170 = pnand %p168, %p169
    %p171 = pneg %p170
    // Predicated region
    $region9: #{decoder_layer.8} parent=5 // pred_check
      _
    $region10: #{decoder_layer.8} parent=5 // pred_check_branch
      %173 = sbr.rel (%p170) target = $region12
    $region11: #{decoder_layer.8} parent=5 // pred_region
      %s174 = ssub.s32 %s10, 1
    $region12: #{decoder_layer.8} parent=5 // pred_fallthru
      _
    %p175 = scmp.lt.s32.totalorder %s10, 8
    // Predicated region
    $region13: #{decoder_layer.8} parent=5 // pred_check
      %p176 = pneg %p175
    $region14: #{decoder_layer.8} parent=5 // pred_check_branch
      %178 = sbr.rel (%p176) target = $region16
    $region15: #{decoder_layer.8} parent=5 // pred_region
      // Predicated region
      $region17: #{decoder_layer.8} parent=15 // pred_check
        %p179 = pneg %p44
      $region18: #{decoder_layer.8} parent=15 // pred_check_branch
        %181 = sbr.rel (%p179) target = $region20
      $region19: #{decoder_layer.8} parent=15 // pred_region
        %p182 = scmp.lt.s32.totalorder %s17, 1
        %s183 = scalar_select %p182, %s17, 1
        %p184 = scmp.lt.s32.totalorder %s18, 3
        %s185 = scalar_select %p184, %s18, 3
        %s186 = smul.addr %s183, 4
        %s187 = sadd.s32 %s185, %s186
        %s188 = smul.addr %s187, 8
        %s189 = scalar_lea.vmem %s0, %s188
      $region20: #{decoder_layer.8} parent=15 // pred_fallthru
        _
      // Predicated region
      $region21: #{decoder_layer.8} parent=15 // pred_check
        %p190 = pneg %p72
      $region22: #{decoder_layer.8} parent=15 // pred_check_branch
        %192 = sbr.rel (%p190) target = $region24
      $region23: #{decoder_layer.8} parent=15 // pred_region
        %p193 = scmp.lt.s32.totalorder %s17, 1
        %s194 = scalar_select %p193, %s17, 1
        %p195 = scmp.lt.s32.totalorder %s18, 3
        %s196 = scalar_select %p195, %s18, 3
        %s197 = smul.addr %s194, 4
        %s198 = sadd.s32 %s196, %s197
        %s199 = smul.addr %s198, 8
        %s200 = scalar_lea.vmem %s1, %s199
      $region24: #{decoder_layer.8} parent=15 // pred_fallthru
        _
      // Predicated region
      $region25: #{decoder_layer.8} parent=15 // pred_check
        %p201 = pneg %p100
      $region26: #{decoder_layer.8} parent=15 // pred_check_branch
        %203 = sbr.rel (%p201) target = $region28
      $region27: #{decoder_layer.8} parent=15 // pred_region
        %p204 = scmp.lt.s32.totalorder %s17, 1
        %s205 = scalar_select %p204, %s17, 1
        %p206 = scmp.lt.s32.totalorder %s18, 3
        %s207 = scalar_select %p206, %s18, 3
        %s208 = smul.addr %s205, 4
        %s209 = sadd.s32 %s207, %s208
        %s210 = smul.addr %s209, 8
        %s211 = scalar_lea.vmem %s2, %s210
      $region28: #{decoder_layer.8} parent=15 // pred_fallthru
        _
      // Predicated region
      $region29: #{decoder_layer.8} parent=15 // pred_check
        %p212 = pneg %p126
      $region30: #{decoder_layer.8} parent=15 // pred_check_branch
        %214 = sbr.rel (%p212) target = $region32
      $region31: #{decoder_layer.8} parent=15 // pred_region
        %p215 = scmp.lt.s32.totalorder %s17, 1
        %s216 = scalar_select %p215, %s17, 1
        %s217 = smul.addr %s216, 8
        %s218 = scalar_lea.vmem %s3, %s217
      $region32: #{decoder_layer.8} parent=15 // pred_fallthru
        _
    $region16: #{decoder_layer.8} parent=5 // pred_fallthru
      _
    %p219 = scmp.le.s32.totalorder 1, %s10
    %p220 = scmp.lt.s32.totalorder %s10, 9
    %p221 = pnand %p219, %p220
    %p222 = pneg %p221
    // Predicated region
    $region33: #{decoder_layer.8} parent=5 // pred_check
      _
    $region34: #{decoder_layer.8} parent=5 // pred_check_branch
      %224 = sbr.rel (%p221) target = $region36
    $region35: #{decoder_layer.8} parent=5 // pred_region
      %s225 = ssub.s32 %s10, 1
      %p226 = scmp.lt.s32.totalorder %s19, 1
      %s227 = scalar_select %p226, %s19, 1
      %p228 = scmp.lt.s32.totalorder %s20, 3
      %s229 = scalar_select %p228, %s20, 3
      %s230 = smul.addr %s227, 4
      %s231 = sadd.s32 %s229, %s230
      %s232 = smul.addr %s231, 8
      %s233 = scalar_lea.vmem %s0, %s232
      %p234 = pneg %p50
      %p235 = pneg %p47
      %p236 = scmp.lt.s32.totalorder %s19, 1
      %s237 = scalar_select %p236, %s19, 1
      %p238 = scmp.lt.s32.totalorder %s20, 3
      %s239 = scalar_select %p238, %s20, 3
      %s240 = smul.addr %s237, 4
      %s241 = sadd.s32 %s239, %s240
      %s242 = smul.addr %s241, 8
      %s243 = scalar_lea.vmem %s1, %s242
      %p244 = pneg %p78
      %p245 = pneg %p75
      %p246 = scmp.lt.s32.totalorder %s19, 1
      %s247 = scalar_select %p246, %s19, 1
      %p248 = scmp.lt.s32.totalorder %s20, 3
      %s249 = scalar_select %p248, %s20, 3
      %s250 = smul.addr %s247, 4
      %s251 = sadd.s32 %s249, %s250
      %s252 = smul.addr %s251, 8
      %s253 = scalar_lea.vmem %s2, %s252
      %p254 = pneg %p106
      %p255 = pneg %p103
      %p256 = scmp.lt.s32.totalorder %s19, 1
      %s257 = scalar_select %p256, %s19, 1
      %s258 = smul.addr %s257, 8
      %s259 = scalar_lea.vmem %s3, %s258
      %p260 = pneg %p132
      %p261 = pneg %p129
      %p262 = pneg %p160
      %p263 = pneg %p157
      %p264 = scmp.lt.s32.totalorder %s19, 1
      %s265 = scalar_select %p264, %s19, 1
      %p266 = scmp.lt.s32.totalorder %s20, 3
      %s267 = scalar_select %p266, %s20, 3
      %s268 = smul.addr %s265, 4
      %s269 = sadd.s32 %s267, %s268
      %s270 = smul.addr %s269, 8
      %s271 = scalar_lea.vmem %s4, %s270
      %p272 = scmp.lt.s32.totalorder %s19, 1
      %s273 = scalar_select %p272, %s19, 1
      %p274 = scmp.lt.s32.totalorder %s20, 3
      %s275 = scalar_select %p274, %s20, 3
      %s276 = smul.addr %s273, 4
      %s277 = sadd.s32 %s275, %s276
      %s278 = smul.addr %s277, 8
      %s279 = scalar_lea.vmem %s0, %s278
      %p280 = scmp.lt.s32.totalorder %s19, 1
      %s281 = scalar_select %p280, %s19, 1
      %p282 = scmp.lt.s32.totalorder %s20, 3
      %s283 = scalar_select %p282, %s20, 3
      %s284 = smul.addr %s281, 4
      %s285 = sadd.s32 %s283, %s284
      %s286 = smul.addr %s285, 8
      %s287 = scalar_lea.vmem %s1, %s286
      %p288 = scmp.lt.s32.totalorder %s19, 1
      %s289 = scalar_select %p288, %s19, 1
      %p290 = scmp.lt.s32.totalorder %s20, 3
      %s291 = scalar_select %p290, %s20, 3
      %s292 = smul.addr %s289, 4
      %s293 = sadd.s32 %s291, %s292
      %s294 = smul.addr %s293, 8
      %s295 = scalar_lea.vmem %s2, %s294
      %p296 = scmp.lt.s32.totalorder %s19, 1
      %s297 = scalar_select %p296, %s19, 1
      %s298 = smul.addr %s297, 8
      %s299 = scalar_lea.vmem %s3, %s298
      %p300 = scmp.lt.s32.totalorder %s19, 1
      %s301 = scalar_select %p300, %s19, 1
      %p302 = scmp.lt.s32.totalorder %s20, 3
      %s303 = scalar_select %p302, %s20, 3
      %s304 = smul.addr %s301, 4
      %s305 = sadd.s32 %s303, %s304
      %s306 = smul.addr %s305, 8
      %s307 = scalar_lea.vmem %s4, %s306
      %v308 = vld [vmem:[%s279] sm:$0xff]
      %v309 = vld [vmem:[%s287] sm:$0xff]
      %v310 = vld [vmem:[%s295] sm:$0xff]
      %v311 = vld [vmem:[%s299] sm:$0xff]
      %vm312 = vcmask 64512
      %v314 = vsel %vm312, %v308, 0
      %v317 = vsel %vm312, %v309, 0
      %319 = vmatpush.xpose.msra.mxu0 0.0
      %320 = vmatpush.xpose.msra.mxu0 0.0
      %321 = vmatpush.xpose.msra.mxu0 0.0
      %322 = vmatpush.xpose.msra.mxu0 0.0
      %323 = vmatpush.xpose.msra.mxu0 0.0
      %324 = vmatpush.xpose.msra.mxu0 0.0
      %325 = vmatpush.xpose.msra.mxu0 0.0
      %326 = vmatpush.xpose.msra.mxu0 0.0
      %327 = vmatpush.xpose.msra.mxu0 0.0
      %328 = vmatpush.xpose.msra.mxu0 0.0
      %329 = vmatpush.xpose.msra.mxu0 0.0
      %330 = vmatpush.xpose.msra.mxu0 0.0
      %331 = vmatpush.xpose.msra.mxu0 0.0
      %332 = vmatpush.xpose.msra.mxu0 0.0
      %333 = vmatpush.xpose.msra.mxu0 0.0
      %334 = vmatpush.xpose.msra.mxu0 %v317
      %335 = vmatmul.f32.gmra.mxu0 %v314
      %v336 = vpop.f32.mrf.mxu0
      %v337 = vadd.f32 %v311, %v336
      %338 = vdwg.mxu0
      %v339 = vsel %vm312, %v337, -inf
      %340 = vmax.xlane.f32.xlu0 %v339
      %v341 = vpop.xlane.xlu0 %340
      %v342 = vsub.f32 %v337, %v341
      %v343 = vmul.f32 %v342, 1.442695
      %v344 = vpow.pop %v343
      %v345 = vsel %vm312, %v344, 0.0
      %346 = vadd.xlane.f32.xlu0 %v345
      %v347 = vpop.xlane.xlu0 %346
      %v348 = vrcp.pop %v347
      %v349 = vmul.f32 %v347, %v348
      %v350 = vsub.f32 1.0, %v349
      %v351 = vmul.f32 %v348, %v350
      %v352 = vadd.f32 %v348, %v351
      %vm353 = vweird.f32 %v347
      %vm354 = vweird.f32 %v348
      %vm355 = vmor %vm353, %vm354
      %v356 = vsel %vm355, %v348, %v352
      %v357 = vand.u32 2147483647, %v347
      %vm358 = vcmp.eq.f32.partialorder %v357, 8.507059e+37
      %v359 = vand.u32 %v347, 2147483648
      %v360 = vor.u32 1.1754944e-38, %v359
      %v361 = vsel %vm358, %v360, %v356
      %v362 = vmul.f32 %v344, %v361
      %v364 = vsel %vm312, %v362, 0
      %366 = vmatpush.msra.mxu0 0.0
      %367 = vmatpush.msra.mxu0 0.0
      %368 = vmatpush.msra.mxu0 0.0
      %369 = vmatpush.msra.mxu0 0.0
      %370 = vmatpush.msra.mxu0 0.0
      %371 = vmatpush.msra.mxu0 0.0
      %372 = vmatpush.msra.mxu0 0.0
      %373 = vmatpush.msra.mxu0 0.0
      %374 = vmatpush.msra.mxu0 0.0
      %375 = vmatpush.msra.mxu0 0.0
      %376 = vmatpush.msra.mxu0 0.0
      %377 = vmatpush.msra.mxu0 0.0
      %378 = vmatpush.msra.mxu0 0.0
      %379 = vmatpush.msra.mxu0 0.0
      %380 = vmatpush.msra.mxu0 0.0
      %381 = vmatpush.msra.mxu0 %v310
      %382 = vmatmul.f32.gmra.mxu0 %v364
      %v383 = vpop.f32.mrf.mxu0
      %v384 = vadd.f32 0.0, %v383
      %385 = vdwg.mxu0
      %386 = vst.msk [vmem:[%s307] sm:$0xff] %vm312, %v384
      %p387 = scmp.lt.s32.totalorder %s19, 1
      %s388 = scalar_select %p387, %s19, 1
      %p389 = scmp.lt.s32.totalorder %s20, 3
      %s390 = scalar_select %p389, %s20, 3
      %s391 = smul.addr %s388, 4
      %s392 = sadd.s32 %s390, %s391
      %s393 = smul.addr %s392, 8
      %s394 = scalar_lea.vmem %s4, %s393
      // Predicated region
      $region37: #{decoder_layer.8} parent=35 // pred_check
        %p395 = pneg %p157
      $region38: #{decoder_layer.8} parent=35 // pred_check_branch
        %397 = sbr.rel (%p395) target = $region40
      $region39: #{decoder_layer.8} parent=35 // pred_region
        _
      $region40: #{decoder_layer.8} parent=35 // pred_fallthru
        _
    $region36: #{decoder_layer.8} parent=5 // pred_fallthru
      _
    %p398 = scmp.le.s32.totalorder 2, %s10
    // Predicated region
    $region41: #{decoder_layer.8} parent=5 // pred_check
      %p399 = pneg %p398
    $region42: #{decoder_layer.8} parent=5 // pred_check_branch
      %401 = sbr.rel (%p399) target = $region44
    $region43: #{decoder_layer.8} parent=5 // pred_region
      %s402 = ssub.s32 %s10, 2
      // Predicated region
      $region45: #{decoder_layer.8} parent=43 // pred_check
        %p403 = pneg %p163
      $region46: #{decoder_layer.8} parent=43 // pred_check_branch
        %405 = sbr.rel (%p403) target = $region48
      $region47: #{decoder_layer.8} parent=43 // pred_region
        %p406 = scmp.lt.s32.totalorder %s21, 1
        %s407 = scalar_select %p406, %s21, 1
        %p408 = scmp.lt.s32.totalorder %s22, 3
        %s409 = scalar_select %p408, %s22, 3
        %s410 = smul.addr %s407, 4
        %s411 = sadd.s32 %s409, %s410
        %s412 = smul.addr %s411, 8
        %s413 = scalar_lea.vmem %s4, %s412
      $region48: #{decoder_layer.8} parent=43 // pred_fallthru
        _
    $region44: #{decoder_layer.8} parent=5 // pred_fallthru
      _
  $region6: #{decoder_layer.8} parent=0 // loop_footer
    %s14 = sadd.s32 1, %s10
  $region7: #{decoder_layer.8} parent=0 // loop_footer_branch
    %9 = sbr.rel target = $region3
  $region8: #{decoder_layer.8} parent=0 // loop_exit
    _

// kernel: decoder_layer.9
$region0: #{decoder_layer.9}
  #allocation0 [shape = 'u32[]', space=smem, size = 0x4, offset = 0x4, fixed_abs, tag = 'smem constant byte address 0x4 - core index']
  #allocation1 [shape = 'u32[72,128]{1,0:T(1,128)}', space=vmem, size = 0x9000, scoped, tag = 'internal scratch']
  %s0 = inlined_call_operand.vmem [shape: f32[2,8,32], index: 0, kind: input, shape index: {}]
  %s1 = inlined_call_operand.vmem [shape: f32[32,32], index: 1, kind: input, shape index: {}]
  %s2 = inlined_call_operand.vmem [shape: f32[1,32], index: 2, kind: input, shape index: {}]
  %s3 = inlined_call_operand.vmem [shape: f32[2,8,32], index: 3, kind: input, shape index: {}, may-alias: {3,4}]
  %s4 = inlined_call_operand.vmem [shape: f32[2,8,32], index: 4, kind: output, shape index: {}, may-alias: {3,4}]
  %s5 = sld [smem:[#allocation0]]
  $region49: #{decoder_layer.9} parent=0
    _
  %s7 = ssub.s32 1, %s5
  %s8 = scalar_select 0, %s7, %s5
  loop: start=0, step=1, limit=4
  $region2: #{decoder_layer.9} parent=0 // loop_pre_header
    _
  $region3: #{decoder_layer.9} parent=0 // loop_header
    %s10 = sphi 0, %s14
    %p11 = scmp.ge.s32.totalorder %s10, 4
    %s20 = sphi 0, %s22
    %s23 = sphi 0, %s20
    %s24 = sphi 0, %s23
    %s40 = sphi 0, %s24
    %s44 = sphi 0, %s44
    %s46 = sphi 0, %s44
    %s47 = sphi 0, %s46
    %s61 = sphi 0, %s47
    %s65 = sphi 0, %s65
    %s67 = sphi 0, %s65
    %s68 = sphi 0, %s67
    %s82 = sphi 0, %s68
    %s88 = sphi 0, %s90
    %s91 = sphi 0, %s88
    %s92 = sphi 0, %s91
    %s108 = sphi 0, %s92
    %s114 = sphi 0, %s116
    %s117 = sphi 0, %s114
    %s118 = sphi 0, %s117
    %s134 = sphi 0, %s118
  $region4: #{decoder_layer.9} parent=0 // loop_header_branch
    %13 = sbr.rel (%p11) target = $region8
  $region5: #{decoder_layer.9} parent=0 // loop_body
    %s15 = ssub.s32 %s10, 1
    %s16 = ssub.s32 %s10, 2
    %s17 = sadd.s32 %s10, 1
    %s18 = ssub.s32 %s10, %s17
    %p19 = scmp.eq.s32.totalorder %s18, 0
    %s21 = sadd.s32 %s20, 1
    %s22 = scalar_select %p19, %s20, %s21
    %p25 = pneg %p19
    %p26 = scmp.eq.s32.totalorder %s10, 1
    %p27 = por %p25, %p26
    %p28 = scmp.ne.s32.totalorder %s20, %s23
    %p29 = scmp.eq.s32.totalorder %s10, 0
    %p30 = por %p28, %p29
    %p31 = scmp.ne.s32.totalorder %s20, %s23
    %p32 = scmp.eq.s32.totalorder %s15, 1
    %p33 = por %p31, %p32
    %p34 = scmp.ne.s32.totalorder %s23, %s24
    %p35 = scmp.eq.s32.totalorder %s15, 0
    %p36 = por %p34, %p35
    %p37 = scmp.ne.s32.totalorder %s23, %s24
    %p38 = scmp.eq.s32.totalorder %s16, 1
    %p39 = por %p37, %p38
    %p41 = scmp.ne.s32.totalorder %s24, %s40
    %p42 = scmp.eq.s32.totalorder %s16, 0
    %p43 = por %p41, %p42
    %s45 = sadd.s32 %s44, 1
    %p48 = scmp.eq.s32.totalorder %s10, 1
    %p49 = scmp.ne.s32.totalorder %s44, %s46
    %p50 = scmp.eq.s32.totalorder %s10, 0
    %p51 = por %p49, %p50
    %p52 = scmp.ne.s32.totalorder %s44, %s46
    %p53 = scmp.eq.s32.totalorder %s15, 1
    %p54 = por %p52, %p53
    %p55 = scmp.ne.s32.totalorder %s46, %s47
    %p56 = scmp.eq.s32.totalorder %s15, 0
    %p57 = por %p55, %p56
    %p58 = scmp.ne.s32.totalorder %s46, %s47
    %p59 = scmp.eq.s32.totalorder %s16, 1
    %p60 = por %p58, %p59
    %p62 = scmp.ne.s32.totalorder %s47, %s61
    %p63 = scmp.eq.s32.totalorder %s16, 0
    %p64 = por %p62, %p63
    %s66 = sadd.s32 %s65, 1
    %p69 = scmp.eq.s32.totalorder %s10, 1
    %p70 = scmp.ne.s32.totalorder %s65, %s67
    %p71 = scmp.eq.s32.totalorder %s10, 0
    %p72 = por %p70, %p71
    %p73 = scmp.ne.s32.totalorder %s65, %s67
    %p74 = scmp.eq.s32.totalorder %s15, 1
    %p75 = por %p73, %p74
    %p76 = scmp.ne.s32.totalorder %s67, %s68
    %p77 = scmp.eq.s32.totalorder %s15, 0
    %p78 = por %p76, %p77
    %p79 = scmp.ne.s32.totalorder %s67, %s68
    %p80 = scmp.eq.s32.totalorder %s16, 1
    %p81 = por %p79, %p80
    %p83 = scmp.ne.s32.totalorder %s68, %s82
    %p84 = scmp.eq.s32.totalorder %s16, 0
    %p85 = por %p83, %p84
    %s86 = ssub.s32 %s10, %s17
    %p87 = scmp.eq.s32.totalorder %s86, 0
    %s89 = sadd.s32 %s88, 1
    %s90 = scalar_select %p87, %s88, %s89
    %p93 = pneg %p87
    %p94 = scmp.eq.s32.totalorder %s10, 1
    %p95 = por %p93, %p94
    %p96 = scmp.ne.s32.totalorder %s88, %s91
    %p97 = scmp.eq.s32.totalorder %s10, 0
    %p98 = por %p96, %p97
    %p99 = scmp.ne.s32.totalorder %s88, %s91
    %p100 = scmp.eq.s32.totalorder %s15, 1
    %p101 = por %p99, %p100
    %p102 = scmp.ne.s32.totalorder %s91, %s92
    %p103 = scmp.eq.s32.totalorder %s15, 0
    %p104 = por %p102, %p103
    %p105 = scmp.ne.s32.totalorder %s91, %s92
    %p106 = scmp.eq.s32.totalorder %s16, 1
    %p107 = por %p105, %p106
    %p109 = scmp.ne.s32.totalorder %s92, %s108
    %p110 = scmp.eq.s32.totalorder %s16, 0
    %p111 = por %p109, %p110
    %s112 = ssub.s32 %s10, %s17
    %p113 = scmp.eq.s32.totalorder %s112, 0
    %s115 = sadd.s32 %s114, 1
    %s116 = scalar_select %p113, %s114, %s115
    %p119 = pneg %p113
    %p120 = scmp.eq.s32.totalorder %s10, 1
    %p121 = por %p119, %p120
    %p122 = scmp.ne.s32.totalorder %s114, %s117
    %p123 = scmp.eq.s32.totalorder %s10, 0
    %p124 = por %p122, %p123
    %p125 = scmp.ne.s32.totalorder %s114, %s117
    %p126 = scmp.eq.s32.totalorder %s15, 1
    %p127 = por %p125, %p126
    %p128 = scmp.ne.s32.totalorder %s117, %s118
    %p129 = scmp.eq.s32.totalorder %s15, 0
    %p130 = por %p128, %p129
    %p131 = scmp.ne.s32.totalorder %s117, %s118
    %p132 = scmp.eq.s32.totalorder %s16, 1
    %p133 = por %p131, %p132
    %p135 = scmp.ne.s32.totalorder %s118, %s134
    %p136 = scmp.eq.s32.totalorder %s16, 0
    %p137 = por %p135, %p136
    %p138 = scmp.le.s32.totalorder 1, %s10
    %p139 = scmp.lt.s32.totalorder %s10, 3
    %p140 = pnand %p138, %p139
    %p141 = pneg %p140
    // Predicated region
    $region9: #{decoder_layer.9} parent=5 // pred_check
      _
    $region10: #{decoder_layer.9} parent=5 // pred_check_branch
      %143 = sbr.rel (%p140) target = $region12
    $region11: #{decoder_layer.9} parent=5 // pred_region
      %s144 = ssub.s32 %s10, 1
      // Predicated region
      $region13: #{decoder_layer.9} parent=11 // pred_check
        %p145 = pneg %p57
      $region14: #{decoder_layer.9} parent=11 // pred_check_branch
        %147 = sbr.rel (%p145) target = $region16
      $region15: #{decoder_layer.9} parent=11 // pred_region
        _
      $region16: #{decoder_layer.9} parent=11 // pred_fallthru
        _
      // Predicated region
      $region17: #{decoder_layer.9} parent=11 // pred_check
        %p148 = pneg %p78
      $region18: #{decoder_layer.9} parent=11 // pred_check_branch
        %150 = sbr.rel (%p148) target = $region20
      $region19: #{decoder_layer.9} parent=11 // pred_region
        _
      $region20: #{decoder_layer.9} parent=11 // pred_fallthru
        _
    $region12: #{decoder_layer.9} parent=5 // pred_fallthru
      _
    %p151 = scmp.lt.s32.totalorder %s10, 2
    // Predicated region
    $region21: #{decoder_layer.9} parent=5 // pred_check
      %p152 = pneg %p151
    $region22: #{decoder_layer.9} parent=5 // pred_check_branch
      %154 = sbr.rel (%p152) target = $region24
    $region23: #{decoder_layer.9} parent=5 // pred_region
      // Predicated region
      $region25: #{decoder_layer.9} parent=23 // pred_check
        %p155 = pneg %p30
      $region26: #{decoder_layer.9} parent=23 // pred_check_branch
        %157 = sbr.rel (%p155) target = $region28
      $region27: #{decoder_layer.9} parent=23 // pred_region
        %p158 = scmp.lt.s32.totalorder %s10, 1
        %s159 = scalar_select %p158, %s10, 1
        %s160 = smul.addr %s159, 8
        %s161 = scalar_lea.vmem %s0, %s160
      $region28: #{decoder_layer.9} parent=23 // pred_fallthru
        _
      // Predicated region
      $region29: #{decoder_layer.9} parent=23 // pred_check
        %p162 = pneg %p98
      $region30: #{decoder_layer.9} parent=23 // pred_check_branch
        %164 = sbr.rel (%p162) target = $region32
      $region31: #{decoder_layer.9} parent=23 // pred_region
        %p165 = scmp.lt.s32.totalorder %s10, 1
        %s166 = scalar_select %p165, %s10, 1
        %s167 = smul.addr %s166, 8
        %s168 = scalar_lea.vmem %s3, %s167
      $region32: #{decoder_layer.9} parent=23 // pred_fallthru
        _
    $region24: #{decoder_layer.9} parent=5 // pred_fallthru
      _
    %p169 = scmp.le.s32.totalorder 1, %s10
    %p170 = scmp.lt.s32.totalorder %s10, 3
    %p171 = pnand %p169, %p170
    %p172 = pneg %p171
    // Predicated region
    $region33: #{decoder_layer.9} parent=5 // pred_check
      _
    $region34: #{decoder_layer.9} parent=5 // pred_check_branch
      %174 = sbr.rel (%p171) target = $region36
    $region35: #{decoder_layer.9} parent=5 // pred_region
      %s175 = ssub.s32 %s10, 1
      %p176 = scmp.lt.s32.totalorder %s15, 1
      %s177 = scalar_select %p176, %s15, 1
      %s178 = smul.addr %s177, 8
      %s179 = scalar_lea.vmem %s0, %s178
      %p180 = pneg %p36
      %p181 = pneg %p33
      %p182 = pneg %p57
      %p183 = pneg %p54
      %p184 = pneg %p78
      %p185 = pneg %p75
      %p186 = scmp.lt.s32.totalorder %s15, 1
      %s187 = scalar_select %p186, %s15, 1
      %s188 = smul.addr %s187, 8
      %s189 = scalar_lea.vmem %s3, %s188
      %p190 = pneg %p104
      %p191 = pneg %p101
      %p192 = pneg %p130
      %p193 = pneg %p127
      %p194 = scmp.lt.s32.totalorder %s15, 1
      %s195 = scalar_select %p194, %s15, 1
      %s196 = smul.addr %s195, 8
      %s197 = scalar_lea.vmem %s4, %s196
      %p198 = scmp.lt.s32.totalorder %s15, 1
      %s199 = scalar_select %p198, %s15, 1
      %s200 = smul.addr %s199, 8
      %s201 = scalar_lea.vmem %s0, %s200
      %p202 = scmp.lt.s32.totalorder %s15, 1
      %s203 = scalar_select %p202, %s15, 1
      %s204 = smul.addr %s203, 8
      %s205 = scalar_lea.vmem %s3, %s204
      %p206 = scmp.lt.s32.totalorder %s15, 1
      %s207 = scalar_select %p206, %s15, 1
      %s208 = smul.addr %s207, 8
      %s209 = scalar_lea.vmem %s4, %s208
      %v210 = vld [vmem:[%s201] sm:$0xff]
      %v211 = vld [vmem:[%s1] sm:$0xff]
      %v212 = vld [vmem:[%s1 + $0x8] sm:$0xff]
      %v213 = vld [vmem:[%s1 + $0x10] sm:$0xff]
      %v214 = vld [vmem:[%s1 + $0x18] sm:$0xff]
      %v215 = vld [vmem:[%s2] sm:$0x1]
      %v217 = vperm.slane %v215, 0
      %vm219 = vcmask 261120
      %v221 = vsel %vm219, %v210, 0
      %223 = vmatpush.msra.mxu0 0.0
      %224 = vmatpush.msra.mxu0 0.0
      %225 = vmatpush.msra.mxu0 0.0
      %226 = vmatpush.msra.mxu0 0.0
      %227 = vmatpush.msra.mxu0 0.0
      %228 = vmatpush.msra.mxu0 0.0
      %229 = vmatpush.msra.mxu0 0.0
      %230 = vmatpush.msra.mxu0 0.0
      %231 = vmatpush.msra.mxu0 0.0
      %232 = vmatpush.msra.mxu0 0.0
      %233 = vmatpush.msra.mxu0 0.0
      %234 = vmatpush.msra.mxu0 0.0
      %235 = vmatpush.msra.mxu0 %v214
      %236 = vmatpush.msra.mxu0 %v213
      %237 = vmatpush.msra.mxu0 %v212
      %238 = vmatpush.msra.mxu0 %v211
      %239 = vmatmul.f32.gmra.mxu0 %v221
      %v240 = vpop.f32.mrf.mxu0
      %v241 = vadd.f32 %v217, %v240
      %242 = vdwg.mxu0
      %v243 = vld [vmem:[%s205] sm:$0xff]
      %v244 = vadd.f32 %v243, %v241
      %245 = vst.msk [vmem:[%s209] sm:$0xff] %vm219, %v244
      %p246 = scmp.lt.s32.totalorder %s15, 1
      %s247 = scalar_select %p246, %s15, 1
      %s248 = smul.addr %s247, 8
      %s249 = scalar_lea.vmem %s4, %s248
      // Predicated region
      $region37: #{decoder_layer.9} parent=35 // pred_check
        %p250 = pneg %p127
      $region38: #{decoder_layer.9} parent=35 // pred_check_branch
        %252 = sbr.rel (%p250) target = $region40
      $region39: #{decoder_layer.9} parent=35 // pred_region
        _
      $region40: #{decoder_layer.9} parent=35 // pred_fallthru
        _
    $region36: #{decoder_layer.9} parent=5 // pred_fallthru
      _
    %p253 = scmp.le.s32.totalorder 2, %s10
    // Predicated region
    $region41: #{decoder_layer.9} parent=5 // pred_check
      %p254 = pneg %p253
    $region42: #{decoder_layer.9} parent=5 // pred_check_branch
      %256 = sbr.rel (%p254) target = $region44
    $region43: #{decoder_layer.9} parent=5 // pred_region
      %s257 = ssub.s32 %s10, 2
      // Predicated region
      $region45: #{decoder_layer.9} parent=43 // pred_check
        %p258 = pneg %p133
      $region46: #{decoder_layer.9} parent=43 // pred_check_branch
        %260 = sbr.rel (%p258) target = $region48
      $region47: #{decoder_layer.9} parent=43 // pred_region
        %p261 = scmp.lt.s32.totalorder %s16, 1
        %s262 = scalar_select %p261, %s16, 1
        %s263 = smul.addr %s262, 8
        %s264 = scalar_lea.vmem %s4, %s263
      $region48: #{decoder_layer.9} parent=43 // pred_fallthru
        _
    $region44: #{decoder_layer.9} parent=5 // pred_fallthru
      _
  $region6: #{decoder_layer.9} parent=0 // loop_footer
    %s14 = sadd.s32 1, %s10
  $region7: #{decoder_layer.9} parent=0 // loop_footer_branch
    %9 = sbr.rel target = $region3
  $region8: #{decoder_layer.9} parent=0 // loop_exit
    _

// kernel: decoder_layer.10
$region0: #{decoder_layer.10}
  #allocation0 [shape = 'u32[]', space=smem, size = 0x4, offset = 0x4, fixed_abs, tag = 'smem constant byte address 0x4 - core index']
  #allocation1 [shape = 'u32[72,128]{1,0:T(1,128)}', space=vmem, size = 0x9000, scoped, tag = 'internal scratch']
  %s0 = inlined_call_operand.vmem [shape: f32[2,8,32], index: 0, kind: input, shape index: {}]
  %s1 = inlined_call_operand.vmem [shape: f32[1,32], index: 1, kind: input, shape index: {}]
  %s2 = inlined_call_operand.vmem [shape: f32[1,32], index: 2, kind: input, shape index: {}]
  %s3 = inlined_call_operand.vmem [shape: f32[32,32], index: 3, kind: input, shape index: {}]
  %s4 = inlined_call_operand.vmem [shape: f32[1,32], index: 4, kind: input, shape index: {}]
  %s5 = inlined_call_operand.vmem [shape: f32[2,8,32], index: 5, kind: input, shape index: {}]
  %s6 = inlined_call_operand.vmem [shape: f32[32,64], index: 6, kind: input, shape index: {}]
  %s7 = inlined_call_operand.vmem [shape: f32[1,64], index: 7, kind: input, shape index: {}]
  %s8 = inlined_call_operand.vmem [shape: f32[2,8,32], index: 8, kind: output, shape index: {0}]
  %s9 = inlined_call_operand.vmem [shape: f32[2,8,64], index: 9, kind: output, shape index: {1}]
  %10 = xla_tuple %s8, %s9
  %s11 = sld [smem:[#allocation0]]
  $region73: #{decoder_layer.10} parent=0
    _
  %s13 = ssub.s32 1, %s11
  %s14 = scalar_select 0, %s13, %s11
  loop: start=0, step=1, limit=4
  $region2: #{decoder_layer.10} parent=0 // loop_pre_header
    _
  $region3: #{decoder_layer.10} parent=0 // loop_header
    %s16 = sphi 0, %s20
    %p17 = scmp.ge.s32.totalorder %s16, 4
    %s26 = sphi 0, %s28
    %s29 = sphi 0, %s26
    %s30 = sphi 0, %s29
    %s46 = sphi 0, %s30
    %s50 = sphi 0, %s50
    %s52 = sphi 0, %s50
    %s53 = sphi 0, %s52
    %s67 = sphi 0, %s53
    %s71 = sphi 0, %s71
    %s73 = sphi 0, %s71
    %s74 = sphi 0, %s73
    %s88 = sphi 0, %s74
    %s92 = sphi 0, %s92
    %s94 = sphi 0, %s92
    %s95 = sphi 0, %s94
    %s109 = sphi 0, %s95
    %s113 = sphi 0, %s113
    %s115 = sphi 0, %s113
    %s116 = sphi 0, %s115
    %s130 = sphi 0, %s116
    %s136 = sphi 0, %s138
    %s139 = sphi 0, %s136
    %s140 = sphi 0, %s139
    %s156 = sphi 0, %s140
    %s160 = sphi 0, %s160
    %s162 = sphi 0, %s160
    %s163 = sphi 0, %s162
    %s177 = sphi 0, %s163
    %s181 = sphi 0, %s181
    %s183 = sphi 0, %s181
    %s184 = sphi 0, %s183
    %s198 = sphi 0, %s184
    %s204 = sphi 0, %s206
    %s207 = sphi 0, %s204
    %s208 = sphi 0, %s207
    %s224 = sphi 0, %s208
    %s230 = sphi 0, %s232
    %s233 = sphi 0, %s230
    %s234 = sphi 0, %s233
    %s250 = sphi 0, %s234
  $region4: #{decoder_layer.10} parent=0 // loop_header_branch
    %19 = sbr.rel (%p17) target = $region8
  $region5: #{decoder_layer.10} parent=0 // loop_body
    %s21 = ssub.s32 %s16, 1
    %s22 = ssub.s32 %s16, 2
    %s23 = sadd.s32 %s16, 1
    %s24 = ssub.s32 %s16, %s23
    %p25 = scmp.eq.s32.totalorder %s24, 0
    %s27 = sadd.s32 %s26, 1
    %s28 = scalar_select %p25, %s26, %s27
    %p31 = pneg %p25
    %p32 = scmp.eq.s32.totalorder %s16, 1
    %p33 = por %p31, %p32
    %p34 = scmp.ne.s32.totalorder %s26, %s29
    %p35 = scmp.eq.s32.totalorder %s16, 0
    %p36 = por %p34, %p35
    %p37 = scmp.ne.s32.totalorder %s26, %s29
    %p38 = scmp.eq.s32.totalorder %s21, 1
    %p39 = por %p37, %p38
    %p40 = scmp.ne.s32.totalorder %s29, %s30
    %p41 = scmp.eq.s32.totalorder %s21, 0
    %p42 = por %p40, %p41
    %p43 = scmp.ne.s32.totalorder %s29, %s30
    %p44 = scmp.eq.s32.totalorder %s22, 1
    %p45 = por %p43, %p44
    %p47 = scmp.ne.s32.totalorder %s30, %s46
    %p48 = scmp.eq.s32.totalorder %s22, 0
    %p49 = por %p47, %p48
    %s51 = sadd.s32 %s50, 1
    %p54 = scmp.eq.s32.totalorder %s16, 1
    %p55 = scmp.ne.s32.totalorder %s50, %s52
    %p56 = scmp.eq.s32.totalorder %s16, 0
    %p57 = por %p55, %p56
    %p58 = scmp.ne.s32.totalorder %s50, %s52
    %p59 = scmp.eq.s32.totalorder %s21, 1
    %p60 = por %p58, %p59
    %p61 = scmp.ne.s32.totalorder %s52, %s53
    %p62 = scmp.eq.s32.totalorder %s21, 0
    %p63 = por %p61, %p62
    %p64 = scmp.ne.s32.totalorder %s52, %s53
    %p65 = scmp.eq.s32.totalorder %s22, 1
    %p66 = por %p64, %p65
    %p68 = scmp.ne.s32.totalorder %s53, %s67
    %p69 = scmp.eq.s32.totalorder %s22, 0
    %p70 = por %p68, %p69
    %s72 = sadd.s32 %s71, 1
    %p75 = scmp.eq.s32.totalorder %s16, 1
    %p76 = scmp.ne.s32.totalorder %s71, %s73
    %p77 = scmp.eq.s32.totalorder %s16, 0
    %p78 = por %p76, %p77
    %p79 = scmp.ne.s32.totalorder %s71, %s73
    %p80 = scmp.eq.s32.totalorder %s21, 1
    %p81 = por %p79, %p80
    %p82 = scmp.ne.s32.totalorder %s73, %s74
    %p83 = scmp.eq.s32.totalorder %s21, 0
    %p84 = por %p82, %p83
    %p85 = scmp.ne.s32.totalorder %s73, %s74
    %p86 = scmp.eq.s32.totalorder %s22, 1
    %p87 = por %p85, %p86
    %p89 = scmp.ne.s32.totalorder %s74, %s88
    %p90 = scmp.eq.s32.totalorder %s22, 0
    %p91 = por %p89, %p90
    %s93 = sadd.s32 %s92, 1
    %p96 = scmp.eq.s32.totalorder %s16, 1
    %p97 = scmp.ne.s32.totalorder %s92, %s94
    %p98 = scmp.eq.s32.totalorder %s16, 0
    %p99 = por %p97, %p98
    %p100 = scmp.ne.s32.totalorder %s92, %s94
    %p101 = scmp.eq.s32.totalorder %s21, 1
    %p102 = por %p100, %p101
    %p103 = scmp.ne.s32.totalorder %s94, %s95
    %p104 = scmp.eq.s32.totalorder %s21, 0
    %p105 = por %p103, %p104
    %p106 = scmp.ne.s32.totalorder %s94, %s95
    %p107 = scmp.eq.s32.totalorder %s22, 1
    %p108 = por %p106, %p107
    %p110 = scmp.ne.s32.totalorder %s95, %s109
    %p111 = scmp.eq.s32.totalorder %s22, 0
    %p112 = por %p110, %p111
    %s114 = sadd.s32 %s113, 1
    %p117 = scmp.eq.s32.totalorder %s16, 1
    %p118 = scmp.ne.s32.totalorder %s113, %s115
    %p119 = scmp.eq.s32.totalorder %s16, 0
    %p120 = por %p118, %p119
    %p121 = scmp.ne.s32.totalorder %s113, %s115
    %p122 = scmp.eq.s32.totalorder %s21, 1
    %p123 = por %p121, %p122
    %p124 = scmp.ne.s32.totalorder %s115, %s116
    %p125 = scmp.eq.s32.totalorder %s21, 0
    %p126 = por %p124, %p125
    %p127 = scmp.ne.s32.totalorder %s115, %s116
    %p128 = scmp.eq.s32.totalorder %s22, 1
    %p129 = por %p127, %p128
    %p131 = scmp.ne.s32.totalorder %s116, %s130
    %p132 = scmp.eq.s32.totalorder %s22, 0
    %p133 = por %p131, %p132
    %s134 = ssub.s32 %s16, %s23
    %p135 = scmp.eq.s32.totalorder %s134, 0
    %s137 = sadd.s32 %s136, 1
    %s138 = scalar_select %p135, %s136, %s137
    %p141 = pneg %p135
    %p142 = scmp.eq.s32.totalorder %s16, 1
    %p143 = por %p141, %p142
    %p144 = scmp.ne.s32.totalorder %s136, %s139
    %p145 = scmp.eq.s32.totalorder %s16, 0
    %p146 = por %p144, %p145
    %p147 = scmp.ne.s32.totalorder %s136, %s139
    %p148 = scmp.eq.s32.totalorder %s21, 1
    %p149 = por %p147, %p148
    %p150 = scmp.ne.s32.totalorder %s139, %s140
    %p151 = scmp.eq.s32.totalorder %s21, 0
    %p152 = por %p150, %p151
    %p153 = scmp.ne.s32.totalorder %s139, %s140
    %p154 = scmp.eq.s32.totalorder %s22, 1
    %p155 = por %p153, %p154
    %p157 = scmp.ne.s32.totalorder %s140, %s156
    %p158 = scmp.eq.s32.totalorder %s22, 0
    %p159 = por %p157, %p158
    %s161 = sadd.s32 %s160, 1
    %p164 = scmp.eq.s32.totalorder %s16, 1
    %p165 = scmp.ne.s32.totalorder %s160, %s162
    %p166 = scmp.eq.s32.totalorder %s16, 0
    %p167 = por %p165, %p166
    %p168 = scmp.ne.s32.totalorder %s160, %s162
    %p169 = scmp.eq.s32.totalorder %s21, 1
    %p170 = por %p168, %p169
    %p171 = scmp.ne.s32.totalorder %s162, %s163
    %p172 = scmp.eq.s32.totalorder %s21, 0
    %p173 = por %p171, %p172
    %p174 = scmp.ne.s32.totalorder %s162, %s163
    %p175 = scmp.eq.s32.totalorder %s22, 1
    %p176 = por %p174, %p175
    %p178 = scmp.ne.s32.totalorder %s163, %s177
    %p179 = scmp.eq.s32.totalorder %s22, 0
    %p180 = por %p178, %p179
    %s182 = sadd.s32 %s181, 1
    %p185 = scmp.eq.s32.totalorder %s16, 1
    %p186 = scmp.ne.s32.totalorder %s181, %s183
    %p187 = scmp.eq.s32.totalorder %s16, 0
    %p188 = por %p186, %p187
    %p189 = scmp.ne.s32.totalorder %s181, %s183
    %p190 = scmp.eq.s32.totalorder %s21, 1
    %p191 = por %p189, %p190
    %p192 = scmp.ne.s32.totalorder %s183, %s184
    %p193 = scmp.eq.s32.totalorder %s21, 0
    %p194 = por %p192, %p193
    %p195 = scmp.ne.s32.totalorder %s183, %s184
    %p196 = scmp.eq.s32.totalorder %s22, 1
    %p197 = por %p195, %p196
    %p199 = scmp.ne.s32.totalorder %s184, %s198
    %p200 = scmp.eq.s32.totalorder %s22, 0
    %p201 = por %p199, %p200
    %s202 = ssub.s32 %s16, %s23
    %p203 = scmp.eq.s32.totalorder %s202, 0
    %s205 = sadd.s32 %s204, 1
    %s206 = scalar_select %p203, %s204, %s205
    %p209 = pneg %p203
    %p210 = scmp.eq.s32.totalorder %s16, 1
    %p211 = por %p209, %p210
    %p212 = scmp.ne.s32.totalorder %s204, %s207
    %p213 = scmp.eq.s32.totalorder %s16, 0
    %p214 = por %p212, %p213
    %p215 = scmp.ne.s32.totalorder %s204, %s207
    %p216 = scmp.eq.s32.totalorder %s21, 1
    %p217 = por %p215, %p216
    %p218 = scmp.ne.s32.totalorder %s207, %s208
    %p219 = scmp.eq.s32.totalorder %s21, 0
    %p220 = por %p218, %p219
    %p221 = scmp.ne.s32.totalorder %s207, %s208
    %p222 = scmp.eq.s32.totalorder %s22, 1
    %p223 = por %p221, %p222
    %p225 = scmp.ne.s32.totalorder %s208, %s224
    %p226 = scmp.eq.s32.totalorder %s22, 0
    %p227 = por %p225, %p226
    %s228 = ssub.s32 %s16, %s23
    %p229 = scmp.eq.s32.totalorder %s228, 0
    %s231 = sadd.s32 %s230, 1
    %s232 = scalar_select %p229, %s230, %s231
    %p235 = pneg %p229
    %p236 = scmp.eq.s32.totalorder %s16, 1
    %p237 = por %p235, %p236
    %p238 = scmp.ne.s32.totalorder %s230, %s233
    %p239 = scmp.eq.s32.totalorder %s16, 0
    %p240 = por %p238, %p239
    %p241 = scmp.ne.s32.totalorder %s230, %s233
    %p242 = scmp.eq.s32.totalorder %s21, 1
    %p243 = por %p241, %p242
    %p244 = scmp.ne.s32.totalorder %s233, %s234
    %p245 = scmp.eq.s32.totalorder %s21, 0
    %p246 = por %p244, %p245
    %p247 = scmp.ne.s32.totalorder %s233, %s234
    %p248 = scmp.eq.s32.totalorder %s22, 1
    %p249 = por %p247, %p248
    %p251 = scmp.ne.s32.totalorder %s234, %s250
    %p252 = scmp.eq.s32.totalorder %s22, 0
    %p253 = por %p251, %p252
    %p254 = scmp.le.s32.totalorder 1, %s16
    %p255 = scmp.lt.s32.totalorder %s16, 3
    %p256 = pnand %p254, %p255
    %p257 = pneg %p256
    // Predicated region
    $region9: #{decoder_layer.10} parent=5 // pred_check
      _
    $region10: #{decoder_layer.10} parent=5 // pred_check_branch
      %259 = sbr.rel (%p256) target = $region12
    $region11: #{decoder_layer.10} parent=5 // pred_region
      %s260 = ssub.s32 %s16, 1
      // Predicated region
      $region13: #{decoder_layer.10} parent=11 // pred_check
        %p261 = pneg %p63
      $region14: #{decoder_layer.10} parent=11 // pred_check_branch
        %263 = sbr.rel (%p261) target = $region16
      $region15: #{decoder_layer.10} parent=11 // pred_region
        _
      $region16: #{decoder_layer.10} parent=11 // pred_fallthru
        _
      // Predicated region
      $region17: #{decoder_layer.10} parent=11 // pred_check
        %p264 = pneg %p84
      $region18: #{decoder_layer.10} parent=11 // pred_check_branch
        %266 = sbr.rel (%p264) target = $region20
      $region19: #{decoder_layer.10} parent=11 // pred_region
        _
      $region20: #{decoder_layer.10} parent=11 // pred_fallthru
        _
      // Predicated region
      $region21: #{decoder_layer.10} parent=11 // pred_check
        %p267 = pneg %p105
      $region22: #{decoder_layer.10} parent=11 // pred_check_branch
        %269 = sbr.rel (%p267) target = $region24
      $region23: #{decoder_layer.10} parent=11 // pred_region
        _
      $region24: #{decoder_layer.10} parent=11 // pred_fallthru
        _
      // Predicated region
      $region25: #{decoder_layer.10} parent=11 // pred_check
        %p270 = pneg %p126
      $region26: #{decoder_layer.10} parent=11 // pred_check_branch
        %272 = sbr.rel (%p270) target = $region28
      $region27: #{decoder_layer.10} parent=11 // pred_region
        _
      $region28: #{decoder_layer.10} parent=11 // pred_fallthru
        _
      // Predicated region
      $region29: #{decoder_layer.10} parent=11 // pred_check
        %p273 = pneg %p173
      $region30: #{decoder_layer.10} parent=11 // pred_check_branch
        %275 = sbr.rel (%p273) target = $region32
      $region31: #{decoder_layer.10} parent=11 // pred_region
        _
      $region32: #{decoder_layer.10} parent=11 // pred_fallthru
        _
      // Predicated region
      $region33: #{decoder_layer.10} parent=11 // pred_check
        %p276 = pneg %p194
      $region34: #{decoder_layer.10} parent=11 // pred_check_branch
        %278 = sbr.rel (%p276) target = $region36
      $region35: #{decoder_layer.10} parent=11 // pred_region
        _
      $region36: #{decoder_layer.10} parent=11 // pred_fallthru
        _
    $region12: #{decoder_layer.10} parent=5 // pred_fallthru
      _
    %p279 = scmp.lt.s32.totalorder %s16, 2
    // Predicated region
    $region37: #{decoder_layer.10} parent=5 // pred_check
      %p280 = pneg %p279
    $region38: #{decoder_layer.10} parent=5 // pred_check_branch
      %282 = sbr.rel (%p280) target = $region40
    $region39: #{decoder_layer.10} parent=5 // pred_region
      // Predicated region
      $region41: #{decoder_layer.10} parent=39 // pred_check
        %p283 = pneg %p36
      $region42: #{decoder_layer.10} parent=39 // pred_check_branch
        %285 = sbr.rel (%p283) target = $region44
      $region43: #{decoder_layer.10} parent=39 // pred_region
        %p286 = scmp.lt.s32.totalorder %s16, 1
        %s287 = scalar_select %p286, %s16, 1
        %s288 = smul.addr %s287, 8
        %s289 = scalar_lea.vmem %s0, %s288
      $region44: #{decoder_layer.10} parent=39 // pred_fallthru
        _
      // Predicated region
      $region45: #{decoder_layer.10} parent=39 // pred_check
        %p290 = pneg %p146
      $region46: #{decoder_layer.10} parent=39 // pred_check_branch
        %292 = sbr.rel (%p290) target = $region48
      $region47: #{decoder_layer.10} parent=39 // pred_region
        %p293 = scmp.lt.s32.totalorder %s16, 1
        %s294 = scalar_select %p293, %s16, 1
        %s295 = smul.addr %s294, 8
        %s296 = scalar_lea.vmem %s5, %s295
      $region48: #{decoder_layer.10} parent=39 // pred_fallthru
        _
    $region40: #{decoder_layer.10} parent=5 // pred_fallthru
      _
    %p297 = scmp.le.s32.totalorder 1, %s16
    %p298 = scmp.lt.s32.totalorder %s16, 3
    %p299 = pnand %p297, %p298
    %p300 = pneg %p299
    // Predicated region
    $region49: #{decoder_layer.10} parent=5 // pred_check
      _
    $region50: #{decoder_layer.10} parent=5 // pred_check_branch
      %302 = sbr.rel (%p299) target = $region52
    $region51: #{decoder_layer.10} parent=5 // pred_region
      %s303 = ssub.s32 %s16, 1
      %p304 = scmp.lt.s32.totalorder %s21, 1
      %s305 = scalar_select %p304, %s21, 1
      %s306 = smul.addr %s305, 8
      %s307 = scalar_lea.vmem %s0, %s306
      %p308 = pneg %p42
      %p309 = pneg %p39
      %p310 = pneg %p63
      %p311 = pneg %p60
      %p312 = pneg %p84
      %p313 = pneg %p81
      %p314 = pneg %p105
      %p315 = pneg %p102
      %p316 = pneg %p126
      %p317 = pneg %p123
      %p318 = scmp.lt.s32.totalorder %s21, 1
      %s319 = scalar_select %p318, %s21, 1
      %s320 = smul.addr %s319, 8
      %s321 = scalar_lea.vmem %s5, %s320
      %p322 = pneg %p152
      %p323 = pneg %p149
      %p324 = pneg %p173
      %p325 = pneg %p170
      %p326 = pneg %p194
      %p327 = pneg %p191
      %p328 = pneg %p220
      %p329 = pneg %p217
      %p330 = scmp.lt.s32.totalorder %s21, 1
      %s331 = scalar_select %p330, %s21, 1
      %s332 = smul.addr %s331, 8
      %s333 = scalar_lea.vmem %s8, %s332
      %p334 = pneg %p246
      %p335 = pneg %p243
      %p336 = scmp.lt.s32.totalorder %s21, 1
      %s337 = scalar_select %p336, %s21, 1
      %s338 = smul.addr %s337, 8
      %s339 = scalar_lea.vmem %s9, %s338
      %p340 = scmp.lt.s32.totalorder %s21, 1
      %s341 = scalar_select %p340, %s21, 1
      %s342 = smul.addr %s341, 8
      %s343 = scalar_lea.vmem %s0, %s342
      %p344 = scmp.lt.s32.totalorder %s21, 1
      %s345 = scalar_select %p344, %s21, 1
      %s346 = smul.addr %s345, 8
      %s347 = scalar_lea.vmem %s5, %s346
      %p348 = scmp.lt.s32.totalorder %s21, 1
      %s349 = scalar_select %p348, %s21, 1
      %s350 = smul.addr %s349, 8
      %s351 = scalar_lea.vmem %s8, %s350
      %p352 = scmp.lt.s32.totalorder %s21, 1
      %s353 = scalar_select %p352, %s21, 1
      %s354 = smul.addr %s353, 8
      %s355 = scalar_lea.vmem %s9, %s354
      %v356 = vld [vmem:[%s343] sm:$0xff]
      %v357 = vld [vmem:[%s1] sm:$0x1]
      %v358 = vld [vmem:[%s2] sm:$0x1]
      %vm359 = vcmask 261120
      %v360 = vsel %vm359, %v356, 0.0
      %361 = vadd.xlane.f32.xlu0 %v360
      %v362 = vpop.xlane.xlu0 %361
      %v363 = vrcp.pop 32.0
      %v364 = vmul.f32 32.0, %v363
      %v365 = vsub.f32 1.0, %v364
      %v366 = vmul.f32 %v363, %v365
      %v367 = vadd.f32 %v363, %v366
      %vm368 = vweird.f32 %v363
      %v369 = vsel %vm368, %v363, %v367
      %v370 = vmul.f32 %v362, %v369
      %v371 = vsub.f32 %v356, %v370
      %v372 = vmul.f32 %v371, %v371
      %v373 = vsel %vm359, %v372, 0.0
      %374 = vadd.xlane.f32.xlu0 %v373
      %v375 = vpop.xlane.xlu0 %374
      %v376 = vrcp.pop 31.0
      %v377 = vmul.f32 31.0, %v376
      %v378 = vsub.f32 1.0, %v377
      %v379 = vmul.f32 %v376, %v378
      %v380 = vadd.f32 %v376, %v379
      %vm381 = vweird.f32 %v376
      %v382 = vsel %vm381, %v376, %v380
      %v383 = vmul.f32 %v375, %v382
      %v384 = vrsqrt.pop %v383
      %v385 = vmul.f32 %v384, %v383
      %v386 = vmul.f32 %v385, %v384
      %v387 = vmul.f32 0.5, %v386
      %v388 = vsub.f32 1.5, %v387
      %v389 = vmul.f32 %v384, %v388
      %v390 = vmul.f32 %v383, %v389
      %vm391 = vcmp.eq.f32.partialorder %v383, inf
      %v392 = vsel %vm391, %v383, %v390
      %vm393 = vcmp.eq.f32.partialorder %v383, 0.0
      %v394 = vand.u32 %v383, 2147483648
      %v395 = vsel %vm393, %v394, %v392
      %v396 = vadd.f32 %v395, 1e-07
      %v397 = vrcp.pop %v396
      %v398 = vmul.f32 %v396, %v397
      %v399 = vsub.f32 1.0, %v398
      %v400 = vmul.f32 %v397, %v399
      %v401 = vadd.f32 %v397, %v400
      %vm402 = vweird.f32 %v396
      %vm403 = vweird.f32 %v397
      %vm404 = vmor %vm402, %vm403
      %v405 = vsel %vm404, %v397, %v401
      %v406 = vand.u32 2147483647, %v396
      %vm407 = vcmp.eq.f32.partialorder %v406, 8.507059e+37
      %v408 = vand.u32 %v396, 2147483648
      %v409 = vor.u32 1.1754944e-38, %v408
      %v410 = vsel %vm407, %v409, %v405
      %v411 = vmul.f32 %v371, %v410
      %v413 = vperm.slane %v357, 0
      %v415 = vmul.f32 %v413, %v411
      %v417 = vperm.slane %v358, 0
      %v419 = vadd.f32 %v415, %v417
      %v420 = vld [vmem:[%s3] sm:$0xff]
      %v421 = vld [vmem:[%s3 + $0x8] sm:$0xff]
      %v422 = vld [vmem:[%s3 + $0x10] sm:$0xff]
      %v423 = vld [vmem:[%s3 + $0x18] sm:$0xff]
      %v424 = vld [vmem:[%s4] sm:$0x1]
      %v426 = vperm.slane %v424, 0
      %v429 = vsel %vm359, %v419, 0
      %431 = vmatpush.msra.mxu0 0.0
      %432 = vmatpush.msra.mxu0 0.0
      %433 = vmatpush.msra.mxu0 0.0
      %434 = vmatpush.msra.mxu0 0.0
      %435 = vmatpush.msra.mxu0 0.0
      %436 = vmatpush.msra.mxu0 0.0
      %437 = vmatpush.msra.mxu0 0.0
      %438 = vmatpush.msra.mxu0 0.0
      %439 = vmatpush.msra.mxu0 0.0
      %440 = vmatpush.msra.mxu0 0.0
      %441 = vmatpush.msra.mxu0 0.0
      %442 = vmatpush.msra.mxu0 0.0
      %443 = vmatpush.msra.mxu0 %v423
      %444 = vmatpush.msra.mxu0 %v422
      %445 = vmatpush.msra.mxu0 %v421
      %446 = vmatpush.msra.mxu0 %v420
      %447 = vmatmul.f32.gmra.mxu0 %v429
      %v448 = vpop.f32.mrf.mxu0
      %v449 = vadd.f32 %v426, %v448
      %450 = vdwg.mxu0
      %451 = vst.msk [vmem:[%s351] sm:$0xff] %vm359, %v449
      %v452 = vld [vmem:[%s347] sm:$0xff]
      %v453 = vld [vmem:[%s6] sm:$0xff]
      %v454 = vld [vmem:[%s6 + $0x8] sm:$0xff]
      %v455 = vld [vmem:[%s6 + $0x10] sm:$0xff]
      %v456 = vld [vmem:[%s6 + $0x18] sm:$0xff]
      %v457 = vld [vmem:[%s7] sm:$0x1]
      %v459 = vperm.slane %v457, 0
      %v462 = vsel %vm359, %v452, 0
      %464 = vmatpush.msra.mxu0 0.0
      %465 = vmatpush.msra.mxu0 0.0
      %466 = vmatpush.msra.mxu0 0.0
      %467 = vmatpush.msra.mxu0 0.0
      %468 = vmatpush.msra.mxu0 0.0
      %469 = vmatpush.msra.mxu0 0.0
      %470 = vmatpush.msra.mxu0 0.0
      %471 = vmatpush.msra.mxu0 0.0
      %472 = vmatpush.msra.mxu0 0.0
      %473 = vmatpush.msra.mxu0 0.0
      %474 = vmatpush.msra.mxu0 0.0
      %475 = vmatpush.msra.mxu0 0.0
      %476 = vmatpush.msra.mxu0 %v456
      %477 = vmatpush.msra.mxu0 %v455
      %478 = vmatpush.msra.mxu0 %v454
      %479 = vmatpush.msra.mxu0 %v453
      %480 = vmatmul.f32.gmra.mxu0 %v462
      %v481 = vpop.f32.mrf.mxu0
      %v482 = vadd.f32 %v459, %v481
      %483 = vdwg.mxu0
      %vm484 = vcmask 523264
      %485 = vst.msk [vmem:[%s355] sm:$0xff] %vm484, %v482
      %p486 = scmp.lt.s32.totalorder %s21, 1
      %s487 = scalar_select %p486, %s21, 1
      %s488 = smul.addr %s487, 8
      %s489 = scalar_lea.vmem %s8, %s488
      %p490 = scmp.lt.s32.totalorder %s21, 1
      %s491 = scalar_select %p490, %s21, 1
      %s492 = smul.addr %s491, 8
      %s493 = scalar_lea.vmem %s9, %s492
      // Predicated region
      $region53: #{decoder_layer.10} parent=51 // pred_check
        %p494 = pneg %p217
      $region54: #{decoder_layer.10} parent=51 // pred_check_branch
        %496 = sbr.rel (%p494) target = $region56
      $region55: #{decoder_layer.10} parent=51 // pred_region
        _
      $region56: #{decoder_layer.10} parent=51 // pred_fallthru
        _
      // Predicated region
      $region57: #{decoder_layer.10} parent=51 // pred_check
        %p497 = pneg %p243
      $region58: #{decoder_layer.10} parent=51 // pred_check_branch
        %499 = sbr.rel (%p497) target = $region60
      $region59: #{decoder_layer.10} parent=51 // pred_region
        _
      $region60: #{decoder_layer.10} parent=51 // pred_fallthru
        _
    $region52: #{decoder_layer.10} parent=5 // pred_fallthru
      _
    %p500 = scmp.le.s32.totalorder 2, %s16
    // Predicated region
    $region61: #{decoder_layer.10} parent=5 // pred_check
      %p501 = pneg %p500
    $region62: #{decoder_layer.10} parent=5 // pred_check_branch
      %503 = sbr.rel (%p501) target = $region64
    $region63: #{decoder_layer.10} parent=5 // pred_region
      %s504 = ssub.s32 %s16, 2
      // Predicated region
      $region65: #{decoder_layer.10} parent=63 // pred_check
        %p505 = pneg %p223
      $region66: #{decoder_layer.10} parent=63 // pred_check_branch
        %507 = sbr.rel (%p505) target = $region68
      $region67: #{decoder_layer.10} parent=63 // pred_region
        %p508 = scmp.lt.s32.totalorder %s22, 1
        %s509 = scalar_select %p508, %s22, 1
        %s510 = smul.addr %s509, 8
        %s511 = scalar_lea.vmem %s8, %s510
      $region68: #{decoder_layer.10} parent=63 // pred_fallthru
        _
      // Predicated region
      $region69: #{decoder_layer.10} parent=63 // pred_check
        %p512 = pneg %p249
      $region70: #{decoder_layer.10} parent=63 // pred_check_branch
        %514 = sbr.rel (%p512) target = $region72
      $region71: #{decoder_layer.10} parent=63 // pred_region
        %p515 = scmp.lt.s32.totalorder %s22, 1
        %s516 = scalar_select %p515, %s22, 1
        %s517 = smul.addr %s516, 8
        %s518 = scalar_lea.vmem %s9, %s517
      $region72: #{decoder_layer.10} parent=63 // pred_fallthru
        _
    $region64: #{decoder_layer.10} parent=5 // pred_fallthru
      _
  $region6: #{decoder_layer.10} parent=0 // loop_footer
    %s20 = sadd.s32 1, %s16
  $region7: #{decoder_layer.10} parent=0 // loop_footer_branch
    %15 = sbr.rel target = $region3
  $region8: #{decoder_layer.10} parent=0 // loop_exit
    _

// kernel: decoder_layer.11
$region0: #{decoder_layer.11}
  #allocation0 [shape = 'u32[]', space=smem, size = 0x4, offset = 0x4, fixed_abs, tag = 'smem constant byte address 0x4 - core index']
  #allocation1 [shape = 'u32[72,128]{1,0:T(1,128)}', space=vmem, size = 0x9000, scoped, tag = 'internal scratch']
  %s0 = inlined_call_operand.vmem [shape: f32[2,4,8,8], index: 0, kind: input, shape index: {}]
  %s1 = inlined_call_operand.vmem [shape: f32[2,4,8,8], index: 1, kind: input, shape index: {}]
  %s2 = inlined_call_operand.vmem [shape: f32[2,4,8,8], index: 2, kind: input, shape index: {}]
  %s3 = inlined_call_operand.vmem [shape: f32[2,1,8], index: 3, kind: input, shape index: {}]
  %s4 = inlined_call_operand.vmem [shape: f32[2,4,8,8], index: 4, kind: output, shape index: {}]
  %s5 = sld [smem:[#allocation0]]
  $region49: #{decoder_layer.11} parent=0
    _
  %s7 = ssub.s32 1, %s5
  %s8 = scalar_select 0, %s7, %s5
  loop: start=0, step=1, limit=10
  $region2: #{decoder_layer.11} parent=0 // loop_pre_header
    _
  $region3: #{decoder_layer.11} parent=0 // loop_header
    %s10 = sphi 0, %s14
    %p11 = scmp.ge.s32.totalorder %s10, 10
    %s17 = sphi 0, %s29
    %s18 = sphi 0, %s25
    %s19 = sphi 0, %s17
    %s20 = sphi 0, %s18
    %s21 = sphi 0, %s19
    %s22 = sphi 0, %s20
    %s34 = sphi 0, %s36
    %s37 = sphi 0, %s34
    %s38 = sphi 0, %s37
    %s54 = sphi 0, %s38
    %s62 = sphi 0, %s64
    %s65 = sphi 0, %s62
    %s66 = sphi 0, %s65
    %s82 = sphi 0, %s66
    %s90 = sphi 0, %s92
    %s93 = sphi 0, %s90
    %s94 = sphi 0, %s93
    %s110 = sphi 0, %s94
    %s116 = sphi 0, %s118
    %s119 = sphi 0, %s116
    %s120 = sphi 0, %s119
    %s136 = sphi 0, %s120
    %s144 = sphi 0, %s146
    %s147 = sphi 0, %s144
    %s148 = sphi 0, %s147
    %s164 = sphi 0, %s148
  $region4: #{decoder_layer.11} parent=0 // loop_header_branch
    %13 = sbr.rel (%p11) target = $region8
  $region5: #{decoder_layer.11} parent=0 // loop_body
    %s15 = ssub.s32 %s10, 1
    %s16 = ssub.s32 %s10, 2
    %s23 = sadd.s32 1, %s18
    %p24 = scmp.ge.s32.totalorder %s23, 4
    %s25 = scalar_select %p24, 0, %s23
    %s26 = sadd.s32 1, %s17
    %s27 = scalar_select %p24, %s26, %s17
    %p28 = scmp.ge.s32.totalorder %s27, 2
    %s29 = scalar_select %p28, 0, %s27
    %s30 = ssub.s32 %s17, %s29
    %s31 = ssub.s32 %s18, %s25
    %s32 = sor.u32 %s30, %s31
    %p33 = scmp.eq.s32.totalorder %s32, 0
    %s35 = sadd.s32 %s34, 1
    %s36 = scalar_select %p33, %s34, %s35
    %p39 = pneg %p33
    %p40 = scmp.eq.s32.totalorder %s10, 7
    %p41 = por %p39, %p40
    %p42 = scmp.ne.s32.totalorder %s34, %s37
    %p43 = scmp.eq.s32.totalorder %s10, 0
    %p44 = por %p42, %p43
    %p45 = scmp.ne.s32.totalorder %s34, %s37
    %p46 = scmp.eq.s32.totalorder %s15, 7
    %p47 = por %p45, %p46
    %p48 = scmp.ne.s32.totalorder %s37, %s38
    %p49 = scmp.eq.s32.totalorder %s15, 0
    %p50 = por %p48, %p49
    %p51 = scmp.ne.s32.totalorder %s37, %s38
    %p52 = scmp.eq.s32.totalorder %s16, 7
    %p53 = por %p51, %p52
    %p55 = scmp.ne.s32.totalorder %s38, %s54
    %p56 = scmp.eq.s32.totalorder %s16, 0
    %p57 = por %p55, %p56
    %s58 = ssub.s32 %s17, %s29
    %s59 = ssub.s32 %s18, %s25
    %s60 = sor.u32 %s58, %s59
    %p61 = scmp.eq.s32.totalorder %s60, 0
    %s63 = sadd.s32 %s62, 1
    %s64 = scalar_select %p61, %s62, %s63
    %p67 = pneg %p61
    %p68 = scmp.eq.s32.totalorder %s10, 7
    %p69 = por %p67, %p68
    %p70 = scmp.ne.s32.totalorder %s62, %s65
    %p71 = scmp.eq.s32.totalorder %s10, 0
    %p72 = por %p70, %p71
    %p73 = scmp.ne.s32.totalorder %s62, %s65
    %p74 = scmp.eq.s32.totalorder %s15, 7
    %p75 = por %p73, %p74
    %p76 = scmp.ne.s32.totalorder %s65, %s66
    %p77 = scmp.eq.s32.totalorder %s15, 0
    %p78 = por %p76, %p77
    %p79 = scmp.ne.s32.totalorder %s65, %s66
    %p80 = scmp.eq.s32.totalorder %s16, 7
    %p81 = por %p79, %p80
    %p83 = scmp.ne.s32.totalorder %s66, %s82
    %p84 = scmp.eq.s32.totalorder %s16, 0
    %p85 = por %p83, %p84
    %s86 = ssub.s32 %s17, %s29
    %s87 = ssub.s32 %s18, %s25
    %s88 = sor.u32 %s86, %s87
    %p89 = scmp.eq.s32.totalorder %s88, 0
    %s91 = sadd.s32 %s90, 1
    %s92 = scalar_select %p89, %s90, %s91
    %p95 = pneg %p89
    %p96 = scmp.eq.s32.totalorder %s10, 7
    %p97 = por %p95, %p96
    %p98 = scmp.ne.s32.totalorder %s90, %s93
    %p99 = scmp.eq.s32.totalorder %s10, 0
    %p100 = por %p98, %p99
    %p101 = scmp.ne.s32.totalorder %s90, %s93
    %p102 = scmp.eq.s32.totalorder %s15, 7
    %p103 = por %p101, %p102
    %p104 = scmp.ne.s32.totalorder %s93, %s94
    %p105 = scmp.eq.s32.totalorder %s15, 0
    %p106 = por %p104, %p105
    %p107 = scmp.ne.s32.totalorder %s93, %s94
    %p108 = scmp.eq.s32.totalorder %s16, 7
    %p109 = por %p107, %p108
    %p111 = scmp.ne.s32.totalorder %s94, %s110
    %p112 = scmp.eq.s32.totalorder %s16, 0
    %p113 = por %p111, %p112
    %s114 = ssub.s32 %s17, %s29
    %p115 = scmp.eq.s32.totalorder %s114, 0
    %s117 = sadd.s32 %s116, 1
    %s118 = scalar_select %p115, %s116, %s117
    %p121 = pneg %p115
    %p122 = scmp.eq.s32.totalorder %s10, 7
    %p123 = por %p121, %p122
    %p124 = scmp.ne.s32.totalorder %s116, %s119
    %p125 = scmp.eq.s32.totalorder %s10, 0
    %p126 = por %p124, %p125
    %p127 = scmp.ne.s32.totalorder %s116, %s119
    %p128 = scmp.eq.s32.totalorder %s15, 7
    %p129 = por %p127, %p128
    %p130 = scmp.ne.s32.totalorder %s119, %s120
    %p131 = scmp.eq.s32.totalorder %s15, 0
    %p132 = por %p130, %p131
    %p133 = scmp.ne.s32.totalorder %s119, %s120
    %p134 = scmp.eq.s32.totalorder %s16, 7
    %p135 = por %p133, %p134
    %p137 = scmp.ne.s32.totalorder %s120, %s136
    %p138 = scmp.eq.s32.totalorder %s16, 0
    %p139 = por %p137, %p138
    %s140 = ssub.s32 %s17, %s29
    %s141 = ssub.s32 %s18, %s25
    %s142 = sor.u32 %s140, %s141
    %p143 = scmp.eq.s32.totalorder %s142, 0
    %s145 = sadd.s32 %s144, 1
    %s146 = scalar_select %p143, %s144, %s145
    %p149 = pneg %p143
    %p150 = scmp.eq.s32.totalorder %s10, 7
    %p151 = por %p149, %p150
    %p152 = scmp.ne.s32.totalorder %s144, %s147
    %p153 = scmp.eq.s32.totalorder %s10, 0
    %p154 = por %p152, %p153
    %p155 = scmp.ne.s32.totalorder %s144, %s147
    %p156 = scmp.eq.s32.totalorder %s15, 7
    %p157 = por %p155, %p156
    %p158 = scmp.ne.s32.totalorder %s147, %s148
    %p159 = scmp.eq.s32.totalorder %s15, 0
    %p160 = por %p158, %p159
    %p161 = scmp.ne.s32.totalorder %s147, %s148
    %p162 = scmp.eq.s32.totalorder %s16, 7
    %p163 = por %p161, %p162
    %p165 = scmp.ne.s32.totalorder %s148, %s164
    %p166 = scmp.eq.s32.totalorder %s16, 0
    %p167 = por %p165, %p166
    %p168 = scmp.le.s32.totalorder 1, %s10
    %p169 = scmp.lt.s32.totalorder %s10, 9
    %p170 = pnand %p168, %p169
    %p171 = pneg %p170
    // Predicated region
    $region9: #{decoder_layer.11} parent=5 // pred_check
      _
    $region10: #{decoder_layer.11} parent=5 // pred_check_branch
      %173 = sbr.rel (%p170) target = $region12
    $region11: #{decoder_layer.11} parent=5 // pred_region
      %s174 = ssub.s32 %s10, 1
    $region12: #{decoder_layer.11} parent=5 // pred_fallthru
      _
    %p175 = scmp.lt.s32.totalorder %s10, 8
    // Predicated region
    $region13: #{decoder_layer.11} parent=5 // pred_check
      %p176 = pneg %p175
    $region14: #{decoder_layer.11} parent=5 // pred_check_branch
      %178 = sbr.rel (%p176) target = $region16
    $region15: #{decoder_layer.11} parent=5 // pred_region
      // Predicated region
      $region17: #{decoder_layer.11} parent=15 // pred_check
        %p179 = pneg %p44
      $region18: #{decoder_layer.11} parent=15 // pred_check_branch
        %181 = sbr.rel (%p179) target = $region20
      $region19: #{decoder_layer.11} parent=15 // pred_region
        %p182 = scmp.lt.s32.totalorder %s17, 1
        %s183 = scalar_select %p182, %s17, 1
        %p184 = scmp.lt.s32.totalorder %s18, 3
        %s185 = scalar_select %p184, %s18, 3
        %s186 = smul.addr %s183, 4
        %s187 = sadd.s32 %s185, %s186
        %s188 = smul.addr %s187, 8
        %s189 = scalar_lea.vmem %s0, %s188
      $region20: #{decoder_layer.11} parent=15 // pred_fallthru
        _
      // Predicated region
      $region21: #{decoder_layer.11} parent=15 // pred_check
        %p190 = pneg %p72
      $region22: #{decoder_layer.11} parent=15 // pred_check_branch
        %192 = sbr.rel (%p190) target = $region24
      $region23: #{decoder_layer.11} parent=15 // pred_region
        %p193 = scmp.lt.s32.totalorder %s17, 1
        %s194 = scalar_select %p193, %s17, 1
        %p195 = scmp.lt.s32.totalorder %s18, 3
        %s196 = scalar_select %p195, %s18, 3
        %s197 = smul.addr %s194, 4
        %s198 = sadd.s32 %s196, %s197
        %s199 = smul.addr %s198, 8
        %s200 = scalar_lea.vmem %s1, %s199
      $region24: #{decoder_layer.11} parent=15 // pred_fallthru
        _
      // Predicated region
      $region25: #{decoder_layer.11} parent=15 // pred_check
        %p201 = pneg %p100
      $region26: #{decoder_layer.11} parent=15 // pred_check_branch
        %203 = sbr.rel (%p201) target = $region28
      $region27: #{decoder_layer.11} parent=15 // pred_region
        %p204 = scmp.lt.s32.totalorder %s17, 1
        %s205 = scalar_select %p204, %s17, 1
        %p206 = scmp.lt.s32.totalorder %s18, 3
        %s207 = scalar_select %p206, %s18, 3
        %s208 = smul.addr %s205, 4
        %s209 = sadd.s32 %s207, %s208
        %s210 = smul.addr %s209, 8
        %s211 = scalar_lea.vmem %s2, %s210
      $region28: #{decoder_layer.11} parent=15 // pred_fallthru
        _
      // Predicated region
      $region29: #{decoder_layer.11} parent=15 // pred_check
        %p212 = pneg %p126
      $region30: #{decoder_layer.11} parent=15 // pred_check_branch
        %214 = sbr.rel (%p212) target = $region32
      $region31: #{decoder_layer.11} parent=15 // pred_region
        %p215 = scmp.lt.s32.totalorder %s17, 1
        %s216 = scalar_select %p215, %s17, 1
        %s217 = scalar_lea.vmem %s3, %s216
      $region32: #{decoder_layer.11} parent=15 // pred_fallthru
        _
    $region16: #{decoder_layer.11} parent=5 // pred_fallthru
      _
    %p218 = scmp.le.s32.totalorder 1, %s10
    %p219 = scmp.lt.s32.totalorder %s10, 9
    %p220 = pnand %p218, %p219
    %p221 = pneg %p220
    // Predicated region
    $region33: #{decoder_layer.11} parent=5 // pred_check
      _
    $region34: #{decoder_layer.11} parent=5 // pred_check_branch
      %223 = sbr.rel (%p220) target = $region36
    $region35: #{decoder_layer.11} parent=5 // pred_region
      %s224 = ssub.s32 %s10, 1
      %p225 = scmp.lt.s32.totalorder %s19, 1
      %s226 = scalar_select %p225, %s19, 1
      %p227 = scmp.lt.s32.totalorder %s20, 3
      %s228 = scalar_select %p227, %s20, 3
      %s229 = smul.addr %s226, 4
      %s230 = sadd.s32 %s228, %s229
      %s231 = smul.addr %s230, 8
      %s232 = scalar_lea.vmem %s0, %s231
      %p233 = pneg %p50
      %p234 = pneg %p47
      %p235 = scmp.lt.s32.totalorder %s19, 1
      %s236 = scalar_select %p235, %s19, 1
      %p237 = scmp.lt.s32.totalorder %s20, 3
      %s238 = scalar_select %p237, %s20, 3
      %s239 = smul.addr %s236, 4
      %s240 = sadd.s32 %s238, %s239
      %s241 = smul.addr %s240, 8
      %s242 = scalar_lea.vmem %s1, %s241
      %p243 = pneg %p78
      %p244 = pneg %p75
      %p245 = scmp.lt.s32.totalorder %s19, 1
      %s246 = scalar_select %p245, %s19, 1
      %p247 = scmp.lt.s32.totalorder %s20, 3
      %s248 = scalar_select %p247, %s20, 3
      %s249 = smul.addr %s246, 4
      %s250 = sadd.s32 %s248, %s249
      %s251 = smul.addr %s250, 8
      %s252 = scalar_lea.vmem %s2, %s251
      %p253 = pneg %p106
      %p254 = pneg %p103
      %p255 = scmp.lt.s32.totalorder %s19, 1
      %s256 = scalar_select %p255, %s19, 1
      %s257 = scalar_lea.vmem %s3, %s256
      %p258 = pneg %p132
      %p259 = pneg %p129
      %p260 = pneg %p160
      %p261 = pneg %p157
      %p262 = scmp.lt.s32.totalorder %s19, 1
      %s263 = scalar_select %p262, %s19, 1
      %p264 = scmp.lt.s32.totalorder %s20, 3
      %s265 = scalar_select %p264, %s20, 3
      %s266 = smul.addr %s263, 4
      %s267 = sadd.s32 %s265, %s266
      %s268 = smul.addr %s267, 8
      %s269 = scalar_lea.vmem %s4, %s268
      %p270 = scmp.lt.s32.totalorder %s19, 1
      %s271 = scalar_select %p270, %s19, 1
      %p272 = scmp.lt.s32.totalorder %s20, 3
      %s273 = scalar_select %p272, %s20, 3
      %s274 = smul.addr %s271, 4
      %s275 = sadd.s32 %s273, %s274
      %s276 = smul.addr %s275, 8
      %s277 = scalar_lea.vmem %s0, %s276
      %p278 = scmp.lt.s32.totalorder %s19, 1
      %s279 = scalar_select %p278, %s19, 1
      %p280 = scmp.lt.s32.totalorder %s20, 3
      %s281 = scalar_select %p280, %s20, 3
      %s282 = smul.addr %s279, 4
      %s283 = sadd.s32 %s281, %s282
      %s284 = smul.addr %s283, 8
      %s285 = scalar_lea.vmem %s1, %s284
      %p286 = scmp.lt.s32.totalorder %s19, 1
      %s287 = scalar_select %p286, %s19, 1
      %p288 = scmp.lt.s32.totalorder %s20, 3
      %s289 = scalar_select %p288, %s20, 3
      %s290 = smul.addr %s287, 4
      %s291 = sadd.s32 %s289, %s290
      %s292 = smul.addr %s291, 8
      %s293 = scalar_lea.vmem %s2, %s292
      %p294 = scmp.lt.s32.totalorder %s19, 1
      %s295 = scalar_select %p294, %s19, 1
      %s296 = scalar_lea.vmem %s3, %s295
      %p297 = scmp.lt.s32.totalorder %s19, 1
      %s298 = scalar_select %p297, %s19, 1
      %p299 = scmp.lt.s32.totalorder %s20, 3
      %s300 = scalar_select %p299, %s20, 3
      %s301 = smul.addr %s298, 4
      %s302 = sadd.s32 %s300, %s301
      %s303 = smul.addr %s302, 8
      %s304 = scalar_lea.vmem %s4, %s303
      %v305 = vld [vmem:[%s277] sm:$0xff]
      %v306 = vld [vmem:[%s285] sm:$0xff]
      %v307 = vld [vmem:[%s293] sm:$0xff]
      %v308 = vld [vmem:[%s296] sm:$0x1]
      %v310 = vperm.slane %v308, 0
      %vm312 = vcmask 64512
      %v314 = vsel %vm312, %v305, 0
      %v317 = vsel %vm312, %v306, 0
      %319 = vmatpush.xpose.msra.mxu0 0.0
      %320 = vmatpush.xpose.msra.mxu0 0.0
      %321 = vmatpush.xpose.msra.mxu0 0.0
      %322 = vmatpush.xpose.msra.mxu0 0.0
      %323 = vmatpush.xpose.msra.mxu0 0.0
      %324 = vmatpush.xpose.msra.mxu0 0.0
      %325 = vmatpush.xpose.msra.mxu0 0.0
      %326 = vmatpush.xpose.msra.mxu0 0.0
      %327 = vmatpush.xpose.msra.mxu0 0.0
      %328 = vmatpush.xpose.msra.mxu0 0.0
      %329 = vmatpush.xpose.msra.mxu0 0.0
      %330 = vmatpush.xpose.msra.mxu0 0.0
      %331 = vmatpush.xpose.msra.mxu0 0.0
      %332 = vmatpush.xpose.msra.mxu0 0.0
      %333 = vmatpush.xpose.msra.mxu0 0.0
      %334 = vmatpush.xpose.msra.mxu0 %v317
      %335 = vmatmul.f32.gmra.mxu0 %v314
      %v336 = vpop.f32.mrf.mxu0
      %v337 = vadd.f32 %v310, %v336
      %338 = vdwg.mxu0
      %v339 = vsel %vm312, %v337, -inf
      %340 = vmax.xlane.f32.xlu0 %v339
      %v341 = vpop.xlane.xlu0 %340
      %v342 = vsub.f32 %v337, %v341
      %v343 = vmul.f32 %v342, 1.442695
      %v344 = vpow.pop %v343
      %v345 = vsel %vm312, %v344, 0.0
      %346 = vadd.xlane.f32.xlu0 %v345
      %v347 = vpop.xlane.xlu0 %346
      %v348 = vrcp.pop %v347
      %v349 = vmul.f32 %v347, %v348
      %v350 = vsub.f32 1.0, %v349
      %v351 = vmul.f32 %v348, %v350
      %v352 = vadd.f32 %v348, %v351
      %vm353 = vweird.f32 %v347
      %vm354 = vweird.f32 %v348
      %vm355 = vmor %vm353, %vm354
      %v356 = vsel %vm355, %v348, %v352
      %v357 = vand.u32 2147483647, %v347
      %vm358 = vcmp.eq.f32.partialorder %v357, 8.507059e+37
      %v359 = vand.u32 %v347, 2147483648
      %v360 = vor.u32 1.1754944e-38, %v359
      %v361 = vsel %vm358, %v360, %v356
      %v362 = vmul.f32 %v344, %v361
      %v364 = vsel %vm312, %v362, 0
      %366 = vmatpush.msra.mxu0 0.0
      %367 = vmatpush.msra.mxu0 0.0
      %368 = vmatpush.msra.mxu0 0.0
      %369 = vmatpush.msra.mxu0 0.0
      %370 = vmatpush.msra.mxu0 0.0
      %371 = vmatpush.msra.mxu0 0.0
      %372 = vmatpush.msra.mxu0 0.0
      %373 = vmatpush.msra.mxu0 0.0
      %374 = vmatpush.msra.mxu0 0.0
      %375 = vmatpush.msra.mxu0 0.0
      %376 = vmatpush.msra.mxu0 0.0
      %377 = vmatpush.msra.mxu0 0.0
      %378 = vmatpush.msra.mxu0 0.0
      %379 = vmatpush.msra.mxu0 0.0
      %380 = vmatpush.msra.mxu0 0.0
      %381 = vmatpush.msra.mxu0 %v307
      %382 = vmatmul.f32.gmra.mxu0 %v364
      %v383 = vpop.f32.mrf.mxu0
      %v384 = vadd.f32 0.0, %v383
      %385 = vdwg.mxu0
      %386 = vst.msk [vmem:[%s304] sm:$0xff] %vm312, %v384
      %p387 = scmp.lt.s32.totalorder %s19, 1
      %s388 = scalar_select %p387, %s19, 1
      %p389 = scmp.lt.s32.totalorder %s20, 3
      %s390 = scalar_select %p389, %s20, 3
      %s391 = smul.addr %s388, 4
      %s392 = sadd.s32 %s390, %s391
      %s393 = smul.addr %s392, 8
      %s394 = scalar_lea.vmem %s4, %s393
      // Predicated region
      $region37: #{decoder_layer.11} parent=35 // pred_check
        %p395 = pneg %p157
      $region38: #{decoder_layer.11} parent=35 // pred_check_branch
        %397 = sbr.rel (%p395) target = $region40
      $region39: #{decoder_layer.11} parent=35 // pred_region
        _
      $region40: #{decoder_layer.11} parent=35 // pred_fallthru
        _
    $region36: #{decoder_layer.11} parent=5 // pred_fallthru
      _
    %p398 = scmp.le.s32.totalorder 2, %s10
    // Predicated region
    $region41: #{decoder_layer.11} parent=5 // pred_check
      %p399 = pneg %p398
    $region42: #{decoder_layer.11} parent=5 // pred_check_branch
      %401 = sbr.rel (%p399) target = $region44
    $region43: #{decoder_layer.11} parent=5 // pred_region
      %s402 = ssub.s32 %s10, 2
      // Predicated region
      $region45: #{decoder_layer.11} parent=43 // pred_check
        %p403 = pneg %p163
      $region46: #{decoder_layer.11} parent=43 // pred_check_branch
        %405 = sbr.rel (%p403) target = $region48
      $region47: #{decoder_layer.11} parent=43 // pred_region
        %p406 = scmp.lt.s32.totalorder %s21, 1
        %s407 = scalar_select %p406, %s21, 1
        %p408 = scmp.lt.s32.totalorder %s22, 3
        %s409 = scalar_select %p408, %s22, 3
        %s410 = smul.addr %s407, 4
        %s411 = sadd.s32 %s409, %s410
        %s412 = smul.addr %s411, 8
        %s413 = scalar_lea.vmem %s4, %s412
      $region48: #{decoder_layer.11} parent=43 // pred_fallthru
        _
    $region44: #{decoder_layer.11} parent=5 // pred_fallthru
      _
  $region6: #{decoder_layer.11} parent=0 // loop_footer
    %s14 = sadd.s32 1, %s10
  $region7: #{decoder_layer.11} parent=0 // loop_footer_branch
    %9 = sbr.rel target = $region3
  $region8: #{decoder_layer.11} parent=0 // loop_exit
    _

// kernel: decoder_layer.13
$region0: #{decoder_layer.13}
  #allocation0 [shape = 'u32[]', space=smem, size = 0x4, offset = 0x4, fixed_abs, tag = 'smem constant byte address 0x4 - core index']
  #allocation1 [shape = 'u32[72,128]{1,0:T(1,128)}', space=vmem, size = 0x9000, scoped, tag = 'internal scratch']
  %s0 = inlined_call_operand.hbm [shape: f32[2,8,32], index: 0, kind: input, shape index: {}, may-alias: {0,7}]
  %s1 = inlined_call_operand.vmem [shape: f32[1,32], index: 1, kind: input, shape index: {}]
  %s2 = inlined_call_operand.vmem [shape: f32[1,32], index: 2, kind: input, shape index: {}]
  %s3 = inlined_call_operand.vmem [shape: f32[32,64], index: 3, kind: input, shape index: {}]
  %s4 = inlined_call_operand.vmem [shape: f32[1,64], index: 4, kind: input, shape index: {}]
  %s5 = inlined_call_operand.vmem [shape: f32[64,32], index: 5, kind: input, shape index: {}]
  %s6 = inlined_call_operand.vmem [shape: f32[1,32], index: 6, kind: input, shape index: {}]
  %s7 = inlined_call_operand.hbm [shape: f32[2,8,32], index: 7, kind: output, shape index: {}, may-alias: {0,7}]
  %s8 = sld [smem:[#allocation0]]
  $region65: #{decoder_layer.13} parent=0
    _
  %s10 = ssub.s32 1, %s8
  %s11 = scalar_select 0, %s10, %s8
  $region1: #{decoder_layer.13} parent=0
    #allocation2 [shape = 'u8[8192]{0}', space=vmem, size = 0x2000, scoped, tag = 'input window, operand 0']
    #allocation3 [shape = 's32[2]{0}', space=sflag, size = 0x8, scoped, tag = 'scoped memory for decoder_layer.13']
    #allocation4 [shape = 's32[2]{0}', space=sflag, size = 0x8, scoped, tag = 'scoped memory for decoder_layer.13']
    #allocation5 [shape = 'u8[8192]{0}', space=vmem, size = 0x2000, scoped, tag = 'output window, operand 0']
    %12 = vsyncpa [#allocation3], 0
    %s13 = scalar_lea.sflag [#allocation3], 1
    %14 = vsyncpa %s13, 0
    %15 = vsyncpa [#allocation4], 0
    %s16 = scalar_lea.sflag [#allocation4], 1
    %17 = vsyncpa %s16, 0
    loop: start=0, step=1, limit=4
    $region2: #{decoder_layer.13} parent=1 // loop_pre_header
      _
    $region3: #{decoder_layer.13} parent=1 // loop_header
      %s19 = sphi 0, %s23
      %p20 = scmp.ge.s32.totalorder %s19, 4
      %s29 = sphi 0, %s31
      %s32 = sphi 0, %s29
      %s33 = sphi 0, %s32
      %s49 = sphi 0, %s33
      %s53 = sphi 0, %s53
      %s55 = sphi 0, %s53
      %s56 = sphi 0, %s55
      %s70 = sphi 0, %s56
      %s74 = sphi 0, %s74
      %s76 = sphi 0, %s74
      %s77 = sphi 0, %s76
      %s91 = sphi 0, %s77
      %s95 = sphi 0, %s95
      %s97 = sphi 0, %s95
      %s98 = sphi 0, %s97
      %s112 = sphi 0, %s98
      %s116 = sphi 0, %s116
      %s118 = sphi 0, %s116
      %s119 = sphi 0, %s118
      %s133 = sphi 0, %s119
      %s137 = sphi 0, %s137
      %s139 = sphi 0, %s137
      %s140 = sphi 0, %s139
      %s154 = sphi 0, %s140
      %s158 = sphi 0, %s158
      %s160 = sphi 0, %s158
      %s161 = sphi 0, %s160
      %s175 = sphi 0, %s161
      %s181 = sphi 0, %s183
      %s184 = sphi 0, %s181
      %s185 = sphi 0, %s184
      %s201 = sphi 0, %s185
    $region4: #{decoder_layer.13} parent=1 // loop_header_branch
      %22 = sbr.rel (%p20) target = $region8
    $region5: #{decoder_layer.13} parent=1 // loop_body
      %s24 = ssub.s32 %s19, 1
      %s25 = ssub.s32 %s19, 2
      %s26 = sadd.s32 %s19, 1
      %s27 = ssub.s32 %s19, %s26
      %p28 = scmp.eq.s32.totalorder %s27, 0
      %s30 = sadd.s32 %s29, 1
      %s31 = scalar_select %p28, %s29, %s30
      %p34 = pneg %p28
      %p35 = scmp.eq.s32.totalorder %s19, 1
      %p36 = por %p34, %p35
      %p37 = scmp.ne.s32.totalorder %s29, %s32
      %p38 = scmp.eq.s32.totalorder %s19, 0
      %p39 = por %p37, %p38
      %p40 = scmp.ne.s32.totalorder %s29, %s32
      %p41 = scmp.eq.s32.totalorder %s24, 1
      %p42 = por %p40, %p41
      %p43 = scmp.ne.s32.totalorder %s32, %s33
      %p44 = scmp.eq.s32.totalorder %s24, 0
      %p45 = por %p43, %p44
      %p46 = scmp.ne.s32.totalorder %s32, %s33
      %p47 = scmp.eq.s32.totalorder %s25, 1
      %p48 = por %p46, %p47
      %p50 = scmp.ne.s32.totalorder %s33, %s49
      %p51 = scmp.eq.s32.totalorder %s25, 0
      %p52 = por %p50, %p51
      %s54 = sadd.s32 %s53, 1
      %p57 = scmp.eq.s32.totalorder %s19, 1
      %p58 = scmp.ne.s32.totalorder %s53, %s55
      %p59 = scmp.eq.s32.totalorder %s19, 0
      %p60 = por %p58, %p59
      %p61 = scmp.ne.s32.totalorder %s53, %s55
      %p62 = scmp.eq.s32.totalorder %s24, 1
      %p63 = por %p61, %p62
      %p64 = scmp.ne.s32.totalorder %s55, %s56
      %p65 = scmp.eq.s32.totalorder %s24, 0
      %p66 = por %p64, %p65
      %p67 = scmp.ne.s32.totalorder %s55, %s56
      %p68 = scmp.eq.s32.totalorder %s25, 1
      %p69 = por %p67, %p68
      %p71 = scmp.ne.s32.totalorder %s56, %s70
      %p72 = scmp.eq.s32.totalorder %s25, 0
      %p73 = por %p71, %p72
      %s75 = sadd.s32 %s74, 1
      %p78 = scmp.eq.s32.totalorder %s19, 1
      %p79 = scmp.ne.s32.totalorder %s74, %s76
      %p80 = scmp.eq.s32.totalorder %s19, 0
      %p81 = por %p79, %p80
      %p82 = scmp.ne.s32.totalorder %s74, %s76
      %p83 = scmp.eq.s32.totalorder %s24, 1
      %p84 = por %p82, %p83
      %p85 = scmp.ne.s32.totalorder %s76, %s77
      %p86 = scmp.eq.s32.totalorder %s24, 0
      %p87 = por %p85, %p86
      %p88 = scmp.ne.s32.totalorder %s76, %s77
      %p89 = scmp.eq.s32.totalorder %s25, 1
      %p90 = por %p88, %p89
      %p92 = scmp.ne.s32.totalorder %s77, %s91
      %p93 = scmp.eq.s32.totalorder %s25, 0
      %p94 = por %p92, %p93
      %s96 = sadd.s32 %s95, 1
      %p99 = scmp.eq.s32.totalorder %s19, 1
      %p100 = scmp.ne.s32.totalorder %s95, %s97
      %p101 = scmp.eq.s32.totalorder %s19, 0
      %p102 = por %p100, %p101
      %p103 = scmp.ne.s32.totalorder %s95, %s97
      %p104 = scmp.eq.s32.totalorder %s24, 1
      %p105 = por %p103, %p104
      %p106 = scmp.ne.s32.totalorder %s97, %s98
      %p107 = scmp.eq.s32.totalorder %s24, 0
      %p108 = por %p106, %p107
      %p109 = scmp.ne.s32.totalorder %s97, %s98
      %p110 = scmp.eq.s32.totalorder %s25, 1
      %p111 = por %p109, %p110
      %p113 = scmp.ne.s32.totalorder %s98, %s112
      %p114 = scmp.eq.s32.totalorder %s25, 0
      %p115 = por %p113, %p114
      %s117 = sadd.s32 %s116, 1
      %p120 = scmp.eq.s32.totalorder %s19, 1
      %p121 = scmp.ne.s32.totalorder %s116, %s118
      %p122 = scmp.eq.s32.totalorder %s19, 0
      %p123 = por %p121, %p122
      %p124 = scmp.ne.s32.totalorder %s116, %s118
      %p125 = scmp.eq.s32.totalorder %s24, 1
      %p126 = por %p124, %p125
      %p127 = scmp.ne.s32.totalorder %s118, %s119
      %p128 = scmp.eq.s32.totalorder %s24, 0
      %p129 = por %p127, %p128
      %p130 = scmp.ne.s32.totalorder %s118, %s119
      %p131 = scmp.eq.s32.totalorder %s25, 1
      %p132 = por %p130, %p131
      %p134 = scmp.ne.s32.totalorder %s119, %s133
      %p135 = scmp.eq.s32.totalorder %s25, 0
      %p136 = por %p134, %p135
      %s138 = sadd.s32 %s137, 1
      %p141 = scmp.eq.s32.totalorder %s19, 1
      %p142 = scmp.ne.s32.totalorder %s137, %s139
      %p143 = scmp.eq.s32.totalorder %s19, 0
      %p144 = por %p142, %p143
      %p145 = scmp.ne.s32.totalorder %s137, %s139
      %p146 = scmp.eq.s32.totalorder %s24, 1
      %p147 = por %p145, %p146
      %p148 = scmp.ne.s32.totalorder %s139, %s140
      %p149 = scmp.eq.s32.totalorder %s24, 0
      %p150 = por %p148, %p149
      %p151 = scmp.ne.s32.totalorder %s139, %s140
      %p152 = scmp.eq.s32.totalorder %s25, 1
      %p153 = por %p151, %p152
      %p155 = scmp.ne.s32.totalorder %s140, %s154
      %p156 = scmp.eq.s32.totalorder %s25, 0
      %p157 = por %p155, %p156
      %s159 = sadd.s32 %s158, 1
      %p162 = scmp.eq.s32.totalorder %s19, 1
      %p163 = scmp.ne.s32.totalorder %s158, %s160
      %p164 = scmp.eq.s32.totalorder %s19, 0
      %p165 = por %p163, %p164
      %p166 = scmp.ne.s32.totalorder %s158, %s160
      %p167 = scmp.eq.s32.totalorder %s24, 1
      %p168 = por %p166, %p167
      %p169 = scmp.ne.s32.totalorder %s160, %s161
      %p170 = scmp.eq.s32.totalorder %s24, 0
      %p171 = por %p169, %p170
      %p172 = scmp.ne.s32.totalorder %s160, %s161
      %p173 = scmp.eq.s32.totalorder %s25, 1
      %p174 = por %p172, %p173
      %p176 = scmp.ne.s32.totalorder %s161, %s175
      %p177 = scmp.eq.s32.totalorder %s25, 0
      %p178 = por %p176, %p177
      %s179 = ssub.s32 %s19, %s26
      %p180 = scmp.eq.s32.totalorder %s179, 0
      %s182 = sadd.s32 %s181, 1
      %s183 = scalar_select %p180, %s181, %s182
      %p186 = pneg %p180
      %p187 = scmp.eq.s32.totalorder %s19, 1
      %p188 = por %p186, %p187
      %p189 = scmp.ne.s32.totalorder %s181, %s184
      %p190 = scmp.eq.s32.totalorder %s19, 0
      %p191 = por %p189, %p190
      %p192 = scmp.ne.s32.totalorder %s181, %s184
      %p193 = scmp.eq.s32.totalorder %s24, 1
      %p194 = por %p192, %p193
      %p195 = scmp.ne.s32.totalorder %s184, %s185
      %p196 = scmp.eq.s32.totalorder %s24, 0
      %p197 = por %p195, %p196
      %p198 = scmp.ne.s32.totalorder %s184, %s185
      %p199 = scmp.eq.s32.totalorder %s25, 1
      %p200 = por %p198, %p199
      %p202 = scmp.ne.s32.totalorder %s185, %s201
      %p203 = scmp.eq.s32.totalorder %s25, 0
      %p204 = por %p202, %p203
      %p205 = scmp.le.s32.totalorder 1, %s19
      %p206 = scmp.lt.s32.totalorder %s19, 3
      %p207 = pnand %p205, %p206
      %p208 = pneg %p207
      // Predicated region
      $region9: #{decoder_layer.13} parent=5 // pred_check
        _
      $region10: #{decoder_layer.13} parent=5 // pred_check_branch
        %210 = sbr.rel (%p207) target = $region12
      $region11: #{decoder_layer.13} parent=5 // pred_region
        %s211 = ssub.s32 %s19, 1
        // Predicated region
        $region13: #{decoder_layer.13} parent=11 // pred_check
          %p212 = pneg %p66
        $region14: #{decoder_layer.13} parent=11 // pred_check_branch
          %214 = sbr.rel (%p212) target = $region16
        $region15: #{decoder_layer.13} parent=11 // pred_region
          _
        $region16: #{decoder_layer.13} parent=11 // pred_fallthru
          _
        // Predicated region
        $region17: #{decoder_layer.13} parent=11 // pred_check
          %p215 = pneg %p87
        $region18: #{decoder_layer.13} parent=11 // pred_check_branch
          %217 = sbr.rel (%p215) target = $region20
        $region19: #{decoder_layer.13} parent=11 // pred_region
          _
        $region20: #{decoder_layer.13} parent=11 // pred_fallthru
          _
        // Predicated region
        $region21: #{decoder_layer.13} parent=11 // pred_check
          %p218 = pneg %p108
        $region22: #{decoder_layer.13} parent=11 // pred_check_branch
          %220 = sbr.rel (%p218) target = $region24
        $region23: #{decoder_layer.13} parent=11 // pred_region
          _
        $region24: #{decoder_layer.13} parent=11 // pred_fallthru
          _
        // Predicated region
        $region25: #{decoder_layer.13} parent=11 // pred_check
          %p221 = pneg %p129
        $region26: #{decoder_layer.13} parent=11 // pred_check_branch
          %223 = sbr.rel (%p221) target = $region28
        $region27: #{decoder_layer.13} parent=11 // pred_region
          _
        $region28: #{decoder_layer.13} parent=11 // pred_fallthru
          _
        // Predicated region
        $region29: #{decoder_layer.13} parent=11 // pred_check
          %p224 = pneg %p150
        $region30: #{decoder_layer.13} parent=11 // pred_check_branch
          %226 = sbr.rel (%p224) target = $region32
        $region31: #{decoder_layer.13} parent=11 // pred_region
          _
        $region32: #{decoder_layer.13} parent=11 // pred_fallthru
          _
        // Predicated region
        $region33: #{decoder_layer.13} parent=11 // pred_check
          %p227 = pneg %p171
        $region34: #{decoder_layer.13} parent=11 // pred_check_branch
          %229 = sbr.rel (%p227) target = $region36
        $region35: #{decoder_layer.13} parent=11 // pred_region
          _
        $region36: #{decoder_layer.13} parent=11 // pred_fallthru
          _
      $region12: #{decoder_layer.13} parent=5 // pred_fallthru
        _
      %p230 = scmp.lt.s32.totalorder %s19, 2
      // Predicated region
      $region37: #{decoder_layer.13} parent=5 // pred_check
        %p231 = pneg %p230
      $region38: #{decoder_layer.13} parent=5 // pred_check_branch
        %233 = sbr.rel (%p231) target = $region40
      $region39: #{decoder_layer.13} parent=5 // pred_region
        // Predicated region
        $region41: #{decoder_layer.13} parent=39 // pred_check
          %p234 = pneg %p39
        $region42: #{decoder_layer.13} parent=39 // pred_check_branch
          %236 = sbr.rel (%p234) target = $region44
        $region43: #{decoder_layer.13} parent=39 // pred_region
          %s237 = sand.u32 %s29, 1
          %s238 = scalar_lea.sflag [#allocation3], %s237
          %s239 = sand.u32 %s29, 1
          %s240 = smul.addr %s239, 8
          %s241 = scalar_lea.vmem [#allocation2], %s240
          %243 = vsyncadd %s238, 0
          %s244 = smul.addr %s19, 8
          %s245 = scalar_lea.hbm %s0, %s244
          %s247 = sshll.u32 %s245, 4
          %s248 = int_to_ptr.hbm [resolvable:$true] %s247
          %s249 = sshll.u32 %s241, 4
          %s250 = int_to_ptr.vmem [resolvable:$true] %s249
          %252 = dma.hbm_to_vmem [thread:$0]  %s248, 128, %s250, %s238
        $region44: #{decoder_layer.13} parent=39 // pred_fallthru
          _
      $region40: #{decoder_layer.13} parent=5 // pred_fallthru
        _
      %p253 = scmp.le.s32.totalorder 1, %s19
      %p254 = scmp.lt.s32.totalorder %s19, 3
      %p255 = pnand %p253, %p254
      %p256 = pneg %p255
      // Predicated region
      $region45: #{decoder_layer.13} parent=5 // pred_check
        _
      $region46: #{decoder_layer.13} parent=5 // pred_check_branch
        %258 = sbr.rel (%p255) target = $region48
      $region47: #{decoder_layer.13} parent=5 // pred_region
        %s259 = ssub.s32 %s19, 1
        %s260 = sand.u32 %s32, 1
        %s261 = scalar_lea.sflag [#allocation3], %s260
        %s262 = sand.u32 %s32, 1
        %s263 = smul.addr %s262, 8
        %s264 = scalar_lea.vmem [#allocation2], %s263
        // Predicated region
        $region49: #{decoder_layer.13} parent=47 // pred_check
          %p265 = pneg %p45
        $region50: #{decoder_layer.13} parent=47 // pred_check_branch
          %267 = sbr.rel (%p265) target = $region52
        $region51: #{decoder_layer.13} parent=47 // pred_region
          %269 = dma.done %s261, 128
        $region52: #{decoder_layer.13} parent=47 // pred_fallthru
          _
        %s270 = sand.u32 %s32, 1
        %s271 = scalar_lea.sflag [#allocation3], %s270
        %s272 = sand.u32 %s32, 1
        %s273 = smul.addr %s272, 8
        %s274 = scalar_lea.vmem [#allocation2], %s273
        %p275 = pneg %p45
        %p276 = pneg %p42
        %p277 = pneg %p66
        %p278 = pneg %p63
        %p279 = pneg %p87
        %p280 = pneg %p84
        %p281 = pneg %p108
        %p282 = pneg %p105
        %p283 = pneg %p129
        %p284 = pneg %p126
        %p285 = pneg %p150
        %p286 = pneg %p147
        %p287 = pneg %p171
        %p288 = pneg %p168
        %p289 = pneg %p197
        %p290 = pneg %p194
        %s291 = sand.u32 %s184, 1
        %s292 = scalar_lea.sflag [#allocation4], %s291
        %s293 = sand.u32 %s184, 1
        %s294 = smul.addr %s293, 8
        %s295 = scalar_lea.vmem [#allocation5], %s294
        %v296 = vld [vmem:[%s264] sm:$0xff]
        %v297 = vld [vmem:[%s1] sm:$0x1]
        %v298 = vld [vmem:[%s2] sm:$0x1]
        %vm299 = vcmask 261120
        %v300 = vsel %vm299, %v296, 0.0
        %301 = vadd.xlane.f32.xlu0 %v300
        %v302 = vpop.xlane.xlu0 %301
        %v303 = vrcp.pop 32.0
        %v304 = vmul.f32 32.0, %v303
        %v305 = vsub.f32 1.0, %v304
        %v306 = vmul.f32 %v303, %v305
        %v307 = vadd.f32 %v303, %v306
        %vm308 = vweird.f32 %v303
        %v309 = vsel %vm308, %v303, %v307
        %v310 = vmul.f32 %v302, %v309
        %v311 = vsub.f32 %v296, %v310
        %v312 = vmul.f32 %v311, %v311
        %v313 = vsel %vm299, %v312, 0.0
        %314 = vadd.xlane.f32.xlu0 %v313
        %v315 = vpop.xlane.xlu0 %314
        %v316 = vrcp.pop 31.0
        %v317 = vmul.f32 31.0, %v316
        %v318 = vsub.f32 1.0, %v317
        %v319 = vmul.f32 %v316, %v318
        %v320 = vadd.f32 %v316, %v319
        %vm321 = vweird.f32 %v316
        %v322 = vsel %vm321, %v316, %v320
        %v323 = vmul.f32 %v315, %v322
        %v324 = vrsqrt.pop %v323
        %v325 = vmul.f32 %v324, %v323
        %v326 = vmul.f32 %v325, %v324
        %v327 = vmul.f32 0.5, %v326
        %v328 = vsub.f32 1.5, %v327
        %v329 = vmul.f32 %v324, %v328
        %v330 = vmul.f32 %v323, %v329
        %vm331 = vcmp.eq.f32.partialorder %v323, inf
        %v332 = vsel %vm331, %v323, %v330
        %vm333 = vcmp.eq.f32.partialorder %v323, 0.0
        %v334 = vand.u32 %v323, 2147483648
        %v335 = vsel %vm333, %v334, %v332
        %v336 = vadd.f32 %v335, 1e-07
        %v337 = vrcp.pop %v336
        %v338 = vmul.f32 %v336, %v337
        %v339 = vsub.f32 1.0, %v338
        %v340 = vmul.f32 %v337, %v339
        %v341 = vadd.f32 %v337, %v340
        %vm342 = vweird.f32 %v336
        %vm343 = vweird.f32 %v337
        %vm344 = vmor %vm342, %vm343
        %v345 = vsel %vm344, %v337, %v341
        %v346 = vand.u32 2147483647, %v336
        %vm347 = vcmp.eq.f32.partialorder %v346, 8.507059e+37
        %v348 = vand.u32 %v336, 2147483648
        %v349 = vor.u32 1.1754944e-38, %v348
        %v350 = vsel %vm347, %v349, %v345
        %v351 = vmul.f32 %v311, %v350
        %v353 = vperm.slane %v297, 0
        %v355 = vmul.f32 %v353, %v351
        %v357 = vperm.slane %v298, 0
        %v359 = vadd.f32 %v355, %v357
        %v360 = vld [vmem:[%s3] sm:$0xff]
        %v361 = vld [vmem:[%s3 + $0x8] sm:$0xff]
        %v362 = vld [vmem:[%s3 + $0x10] sm:$0xff]
        %v363 = vld [vmem:[%s3 + $0x18] sm:$0xff]
        %v364 = vld [vmem:[%s4] sm:$0x1]
        %v366 = vperm.slane %v364, 0
        %v369 = vsel %vm299, %v359, 0
        %371 = vmatpush.msra.mxu0 0.0
        %372 = vmatpush.msra.mxu0 0.0
        %373 = vmatpush.msra.mxu0 0.0
        %374 = vmatpush.msra.mxu0 0.0
        %375 = vmatpush.msra.mxu0 0.0
        %376 = vmatpush.msra.mxu0 0.0
        %377 = vmatpush.msra.mxu0 0.0
        %378 = vmatpush.msra.mxu0 0.0
        %379 = vmatpush.msra.mxu0 0.0
        %380 = vmatpush.msra.mxu0 0.0
        %381 = vmatpush.msra.mxu0 0.0
        %382 = vmatpush.msra.mxu0 0.0
        %383 = vmatpush.msra.mxu0 %v363
        %384 = vmatpush.msra.mxu0 %v362
        %385 = vmatpush.msra.mxu0 %v361
        %386 = vmatpush.msra.mxu0 %v360
        %387 = vmatmul.f32.gmra.mxu0 %v369
        %v388 = vpop.f32.mrf.mxu0
        %v389 = vadd.f32 %v366, %v388
        %390 = vdwg.mxu0
        %v391 = vmax.f32 %v389, 0.0
        %v392 = vld [vmem:[%s5] sm:$0xff]
        %v393 = vld [vmem:[%s5 + $0x8] sm:$0xff]
        %v394 = vld [vmem:[%s5 + $0x10] sm:$0xff]
        %v395 = vld [vmem:[%s5 + $0x18] sm:$0xff]
        %v396 = vld [vmem:[%s5 + $0x20] sm:$0xff]
        %v397 = vld [vmem:[%s5 + $0x28] sm:$0xff]
        %v398 = vld [vmem:[%s5 + $0x30] sm:$0xff]
        %v399 = vld [vmem:[%s5 + $0x38] sm:$0xff]
        %v400 = vld [vmem:[%s6] sm:$0x1]
        %v402 = vperm.slane %v400, 0
        %vm404 = vcmask 523264
        %v406 = vsel %vm404, %v391, 0
        %408 = vmatpush.msra.mxu0 0.0
        %409 = vmatpush.msra.mxu0 0.0
        %410 = vmatpush.msra.mxu0 0.0
        %411 = vmatpush.msra.mxu0 0.0
        %412 = vmatpush.msra.mxu0 0.0
        %413 = vmatpush.msra.mxu0 0.0
        %414 = vmatpush.msra.mxu0 0.0
        %415 = vmatpush.msra.mxu0 0.0
        %416 = vmatpush.msra.mxu0 %v399
        %417 = vmatpush.msra.mxu0 %v398
        %418 = vmatpush.msra.mxu0 %v397
        %419 = vmatpush.msra.mxu0 %v396
        %420 = vmatpush.msra.mxu0 %v395
        %421 = vmatpush.msra.mxu0 %v394
        %422 = vmatpush.msra.mxu0 %v393
        %423 = vmatpush.msra.mxu0 %v392
        %424 = vmatmul.f32.gmra.mxu0 %v406
        %v425 = vpop.f32.mrf.mxu0
        %v426 = vadd.f32 %v402, %v425
        %427 = vdwg.mxu0
        %v428 = vadd.f32 %v296, %v426
        %429 = vst.msk [vmem:[%s295] sm:$0xff] %vm299, %v428
        %s430 = sand.u32 %s184, 1
        %s431 = scalar_lea.sflag [#allocation4], %s430
        %s432 = sand.u32 %s184, 1
        %s433 = smul.addr %s432, 8
        %s434 = scalar_lea.vmem [#allocation5], %s433
        // Predicated region
        $region53: #{decoder_layer.13} parent=47 // pred_check
          %p435 = pneg %p194
        $region54: #{decoder_layer.13} parent=47 // pred_check_branch
          %437 = sbr.rel (%p435) target = $region56
        $region55: #{decoder_layer.13} parent=47 // pred_region
          %439 = vsyncadd %s431, 0
          %s440 = smul.addr %s24, 8
          %s441 = scalar_lea.hbm %s7, %s440
          %s443 = sshll.u32 %s434, 4
          %s444 = int_to_ptr.vmem [resolvable:$true] %s443
          %s445 = sshll.u32 %s441, 4
          %s446 = int_to_ptr.hbm [resolvable:$true] %s445
          %448 = dma.vmem_to_hbm [thread:$0]  %s444, 128, %s446, %s431
        $region56: #{decoder_layer.13} parent=47 // pred_fallthru
          _
      $region48: #{decoder_layer.13} parent=5 // pred_fallthru
        _
      %p449 = scmp.le.s32.totalorder 2, %s19
      // Predicated region
      $region57: #{decoder_layer.13} parent=5 // pred_check
        %p450 = pneg %p449
      $region58: #{decoder_layer.13} parent=5 // pred_check_branch
        %452 = sbr.rel (%p450) target = $region60
      $region59: #{decoder_layer.13} parent=5 // pred_region
        %s453 = ssub.s32 %s19, 2
        // Predicated region
        $region61: #{decoder_layer.13} parent=59 // pred_check
          %p454 = pneg %p200
        $region62: #{decoder_layer.13} parent=59 // pred_check_branch
          %456 = sbr.rel (%p454) target = $region64
        $region63: #{decoder_layer.13} parent=59 // pred_region
          %s457 = sand.u32 %s185, 1
          %s458 = scalar_lea.sflag [#allocation4], %s457
          %s459 = sand.u32 %s185, 1
          %s460 = smul.addr %s459, 8
          %s461 = scalar_lea.vmem [#allocation5], %s460
          %463 = dma.done %s458, 128
        $region64: #{decoder_layer.13} parent=59 // pred_fallthru
          _
      $region60: #{decoder_layer.13} parent=5 // pred_fallthru
        _
    $region6: #{decoder_layer.13} parent=1 // loop_footer
      %s23 = sadd.s32 1, %s19
    $region7: #{decoder_layer.13} parent=1 // loop_footer_branch
      %18 = sbr.rel target = $region3
    $region8: #{decoder_layer.13} parent=1 // loop_exit
      _
    %464 = vsyncpa [#allocation3], 1
    %s465 = scalar_lea.sflag [#allocation3], 1
    %466 = vsyncpa %s465, 1
    %467 = vsyncpa [#allocation4], 1
    %s468 = scalar_lea.sflag [#allocation4], 1
    %469 = vsyncpa %s468, 1

</llo_original>
